<compile_context>
chip_gen: v5e
topology: v5e:2x2
jax: 0.10.0
libtpu: 0.0.40
codegen_flags: <defaults>
</compile_context>

<pallas_src>
import functools

import jax
import jax.numpy as jnp
from jax import lax
from jax.experimental import pallas as pl
from jax.experimental.pallas import tpu as pltpu

_SUBLANE = 8
_LANE = 128


def _round_up(v, m):
    return (v + m - 1) // m * m


# -----------------------------------------------------------------------------
# Fused Pallas kernel: pipelined GRU layer 0 + GRU layer 1 -> FC head
# -----------------------------------------------------------------------------
def _gru_fused_kernel(x2d_ref,
                      wih0_ref, whh0_ref, b0_pre_ref, b0_hn_ref,
                      w1big_ref, b1_fold_ref,
                      wfc_ref, bfc_ref,
                      out_ref,
                      gi0_ref,
                      *, seq_len, batch_pad, hidden_size):
    T, BP, H = seq_len, batch_pad, hidden_size
    f32, bf16 = jnp.float32, jnp.bfloat16

    # ---- Prologue (off the serial chain): layer-0 input projection for ALL t ----
    # gi0 already contains b_ih0 (+ b_hh0 for the r,z gates).
    gi0_ref[...] = (jnp.dot(x2d_ref[...], wih0_ref[...],
                            preferred_element_type=f32) + b0_pre_ref[...])

    # ---- Hoist loop-invariant weight reads and bias broadcasts out of the loop ----
    whh0 = whh0_ref[...]                                        # (H, 3H)   bf16
    w1 = w1big_ref[...]                                         # (2H, 4H)  bf16
    b0_hn = jnp.broadcast_to(b0_hn_ref[...], (BP, H))           # n-gate hidden bias
    b1f = jnp.broadcast_to(b1_fold_ref[...], (BP, 4 * H))       # layer-1 folded biases

    def layer0_step(t, h0):
        off = pl.multiple_of(t * BP, BP)
        gi = gi0_ref[pl.ds(off, BP), :]                          # (BP, 3H)
        gh = jnp.dot(h0.astype(bf16), whh0, preferred_element_type=f32)
        r = jax.nn.sigmoid(gi[:, 0:H] + gh[:, 0:H])
        z = jax.nn.sigmoid(gi[:, H:2 * H] + gh[:, H:2 * H])
        n = jnp.tanh(gi[:, 2 * H:3 * H] + r * (gh[:, 2 * H:3 * H] + b0_hn))
        return (1.0 - z) * n + z * h0

    def layer1_step(h0_in, h1):
        # Fused gi+gh: single K=2H matmul; output blocks [r_comb | z_comb | n_in | n_hid].
        cat = jnp.concatenate([h0_in, h1], axis=1).astype(bf16)  # (BP, 2H)
        p = jnp.dot(cat, w1, preferred_element_type=f32) + b1f   # (BP, 4H)
        r = jax.nn.sigmoid(p[:, 0:H])
        z = jax.nn.sigmoid(p[:, H:2 * H])
        n = jnp.tanh(p[:, 2 * H:3 * H] + r * p[:, 3 * H:4 * H])
        return (1.0 - z) * n + z * h1

    # ---- Software-pipelined recurrence: T+1 supersteps instead of 2T steps ----
    h0 = layer0_step(0, jnp.zeros((BP, H), f32))                 # layer-0, t=0
    h1 = jnp.zeros((BP, H), f32)

    def superstep(s, carry):
        h0_c, h1_c = carry
        h1_n = layer1_step(h0_c, h1_c)    # layer-1 at step s-1 (uses old h0)
        h0_n = layer0_step(s, h0_c)       # layer-0 at step s   (independent matmul)
        return (h0_n, h1_n)

    # Unrolled so the scheduler sees the full (short, fixed-T) dependency chain.
    h0, h1 = lax.fori_loop(1, T, superstep, (h0, h1), unroll=True)
    h_last = layer1_step(h0, h1)          # layer-1 at step T-1 (final hidden)

    # ---- FC head epilogue: bf16 MXU operands, fp32 accumulate + bias, lane-dense ----
    out_ref[...] = (jnp.dot(h_last.astype(bf16), wfc_ref[...],
                            preferred_element_type=f32) + bfc_ref[...])


# -----------------------------------------------------------------------------
# Wrapper
# -----------------------------------------------------------------------------
def gru_model(x_btd, params):
    """Forward pass of the PyTorch module: 2-layer GRU (batch_first) -> out[:, -1] -> Linear."""
    assert len(params["gru"]) == 2, "fused kernel is specialized to num_layers=2"
    B, T, D = x_btd.shape
    H = params["gru"][0]["w_hh"].shape[1]
    C = params["fc_w"].shape[0]
    BP = _round_up(B, _SUBLANE)          # pad batch to sublane granularity
    CP = _round_up(C, _LANE)             # lane-dense FC output
    DP = _round_up(D, 32)                # bf16 K-operand tile for the prologue matmul

    # (B,T,D) -> time-major, batch+feature padded, bf16, flattened to (T*BP, DP):
    # the layer-0 input projection becomes one matmul in the kernel prologue.
    x_tbd = jnp.transpose(x_btd, (1, 0, 2))
    x_tbd = jnp.pad(x_tbd, ((0, 0), (0, BP - B), (0, DP - D)))
    x2d = x_tbd.reshape(T * BP, DP).astype(jnp.bfloat16)

    # ---- Layer 0 weights ----
    g0 = params["gru"][0]
    wih0 = jnp.pad(jnp.transpose(g0["w_ih"]),
                   ((0, DP - D), (0, 0))).astype(jnp.bfloat16)            # (DP, 3H)
    whh0 = jnp.transpose(g0["w_hh"]).astype(jnp.bfloat16)                 # (H, 3H)
    # Fold b_hh for r,z into the hoisted bias; keep b_hh_n separate (inside r*(..)).
    b0_pre = (g0["b_ih"] + jnp.concatenate(
        [g0["b_hh"][:2 * H], jnp.zeros((H,), g0["b_hh"].dtype)])
    ).reshape(1, 3 * H).astype(jnp.float32)
    b0_hn = g0["b_hh"][2 * H:].reshape(1, H).astype(jnp.float32)

    # ---- Layer 1: fused (2H, 4H) weight, blocks = [r_comb | z_comb | n_in | n_hid] ----
    g1 = params["gru"][1]
    wih1_t = jnp.transpose(g1["w_ih"])                                    # (H, 3H)
    whh1_t = jnp.transpose(g1["w_hh"])                                    # (H, 3H)
    zH = jnp.zeros((H, H), wih1_t.dtype)
    w1_top = jnp.concatenate([wih1_t, zH], axis=1)                        # h0 rows
    w1_bot = jnp.concatenate([whh1_t[:, :2 * H], zH, whh1_t[:, 2 * H:]], axis=1)  # h1 rows
    w1big = jnp.concatenate([w1_top, w1_bot], axis=0).astype(jnp.bfloat16)  # (2H, 4H)
    b1_fold = jnp.concatenate(
        [g1["b_ih"][:2 * H] + g1["b_hh"][:2 * H],      # r,z combined biases
         g1["b_ih"][2 * H:],                           # n-gate input bias
         g1["b_hh"][2 * H:]]                           # n-gate hidden bias (inside r*(..))
    ).reshape(1, 4 * H).astype(jnp.float32)

    # ---- FC head ----
    wfc = jnp.pad(jnp.transpose(params["fc_w"]),
                  ((0, 0), (0, CP - C))).astype(jnp.bfloat16)             # (H, CP)
    bfc = jnp.pad(params["fc_b"], (0, CP - C)).reshape(1, CP).astype(jnp.float32)

    kernel = functools.partial(_gru_fused_kernel, seq_len=T, batch_pad=BP,
                               hidden_size=H)
    out_pad = pl.pallas_call(
        kernel,
        out_shape=jax.ShapeDtypeStruct((BP, CP), jnp.float32),
        scratch_shapes=[
            pltpu.VMEM((T * BP, 3 * H), jnp.float32),   # layer-0 hoisted input proj.
        ],
        compiler_params=pltpu.CompilerParams(vmem_limit_bytes=16 * 1024 * 1024),
    )(x2d, wih0, whh0, b0_pre, b0_hn, w1big, b1_fold, wfc, bfc)
    return out_pad[:B, :C]


# -----------------------------------------------------------------------------
# Pure-JAX fp32 reference (PyTorch nn.GRU semantics) for correctness check
# -----------------------------------------------------------------------------
def _gru_layer_ref(x_tbd, w_ih, w_hh, b_ih, b_hh):
    H = w_hh.shape[1]

    def step(h, x_t):
        gi = x_t @ w_ih.T + b_ih
        gh = h @ w_hh.T + b_hh
        r = jax.nn.sigmoid(gi[:, :H] + gh[:, :H])
        z = jax.nn.sigmoid(gi[:, H:2 * H] + gh[:, H:2 * H])
        n = jnp.tanh(gi[:, 2 * H:] + r * gh[:, 2 * H:])
        h_new = (1.0 - z) * n + z * h
        return h_new, h_new

    h0 = jnp.zeros((x_tbd.shape[1], H), jnp.float32)
    _, ys = lax.scan(step, h0, x_tbd)
    return ys


def gru_model_ref(x_btd, params):
    x_tbd = jnp.transpose(x_btd, (1, 0, 2))
    h_seq = x_tbd
    for layer in params["gru"]:
        h_seq = _gru_layer_ref(h_seq, layer["w_ih"], layer["w_hh"],
                               layer["b_ih"], layer["b_hh"])
    return h_seq[-1] @ params["fc_w"].T + params["fc_b"]


# -----------------------------------------------------------------------------
# Deterministic parameter init (PyTorch-style uniform(-1/sqrt(H), 1/sqrt(H)))
# -----------------------------------------------------------------------------
def init_params(key, input_size, hidden_size, num_layers, num_classes):
    k = 1.0 / jnp.sqrt(hidden_size)
    params = {"gru": []}
    for layer in range(num_layers):
        d_in = input_size if layer == 0 else hidden_size
        key, k1, k2, k3, k4 = jax.random.split(key, 5)
        params["gru"].append({
            "w_ih": jax.random.uniform(k1, (3 * hidden_size, d_in), jnp.float32, -k, k),
            "w_hh": jax.random.uniform(k2, (3 * hidden_size, hidden_size), jnp.float32, -k, k),
            "b_ih": jax.random.uniform(k3, (3 * hidden_size,), jnp.float32, -k, k),
            "b_hh": jax.random.uniform(k4, (3 * hidden_size,), jnp.float32, -k, k),
        })
    key, k1, k2 = jax.random.split(key, 3)
    params["fc_w"] = jax.random.uniform(k1, (num_classes, hidden_size), jnp.float32, -k, k)
    params["fc_b"] = jax.random.uniform(k2, (num_classes,), jnp.float32, -k, k)
    return params


if __name__ == "__main__":
    # Small shapes consistent with the module: (batch, seq, input_size)
    B, T, D = 4, 8, 28
    H, C, L = 128, 10, 2    # hidden=128 keeps gate slices lane-aligned; num_layers=2

    key = jax.random.PRNGKey(0)
    key, kp, kx = jax.random.split(key, 3)
    params = init_params(kp, D, H, L, C)
    x = jax.random.normal(kx, (B, T, D), jnp.float32)

    fwd = jax.jit(gru_model)
    out = jax.block_until_ready(fwd(x, params))

    ref = gru_model_ref(x, params)
    assert out.shape == (B, C)
    # Kernel uses bf16 MXU operands with fp32 accumulation; compare against the pure
    # fp32 reference with a correspondingly relaxed tolerance.
    assert jnp.allclose(out, ref, atol=2e-2, rtol=2e-2), "mismatch vs pure-JAX reference"

    print("KERNEL_OK")
</pallas_src>

<mosaic_0001>
module attributes {stable_mosaic.version = 11 : i64} {
  func.func @_gru_fused_kernel(%arg0: memref<64x32xbf16, #tpu.memory_space<vmem>>, %arg1: memref<32x384xbf16, #tpu.memory_space<vmem>>, %arg2: memref<128x384xbf16, #tpu.memory_space<vmem>>, %arg3: memref<1x384xf32, #tpu.memory_space<vmem>>, %arg4: memref<1x128xf32, #tpu.memory_space<vmem>>, %arg5: memref<256x512xbf16, #tpu.memory_space<vmem>>, %arg6: memref<1x512xf32, #tpu.memory_space<vmem>>, %arg7: memref<128x128xbf16, #tpu.memory_space<vmem>>, %arg8: memref<1x128xf32, #tpu.memory_space<vmem>>, %arg9: memref<8x128xf32, #tpu.memory_space<vmem>>, %arg10: memref<64x384xf32, #tpu.memory_space<vmem>>) attributes {dimension_semantics = [], scalar_prefetch = 0 : i64, scratch_operands = 1 : i64, tpu.core_type = #tpu.core_type<tc>} {
    %c0 = arith.constant 0 : index
    %c0_0 = arith.constant 0 : index
    %0 = vector.load %arg0[%c0, %c0_0] : memref<64x32xbf16, #tpu.memory_space<vmem>>, vector<64x32xbf16>
    %c0_1 = arith.constant 0 : index
    %c0_2 = arith.constant 0 : index
    %1 = vector.load %arg1[%c0_1, %c0_2] : memref<32x384xbf16, #tpu.memory_space<vmem>>, vector<32x384xbf16>
    %cst = arith.constant dense<0.000000e+00> : vector<64x384xf32>
    %2 = tpu.matmul %0, %1, %cst {dimension_numbers = #tpu.dot_dimension_numbers<[1], [0], [0], [1], [0, 0, 1, 1], [], []>} : vector<64x32xbf16>, vector<32x384xbf16>, vector<64x384xf32> -> vector<64x384xf32>
    %c0_3 = arith.constant 0 : index
    %c0_4 = arith.constant 0 : index
    %3 = vector.load %arg3[%c0_3, %c0_4] : memref<1x384xf32, #tpu.memory_space<vmem>>, vector<1x384xf32>
    %4 = vector.broadcast %3 : vector<1x384xf32> to vector<64x384xf32>
    %5 = arith.addf %2, %4 : vector<64x384xf32>
    %c0_5 = arith.constant 0 : index
    %c0_6 = arith.constant 0 : index
    %6 = vector.load %arg10[%c0_5, %c0_6] : memref<64x384xf32, #tpu.memory_space<vmem>>, vector<64x384xf32>
    tpu.vector_store %arg10[%c0_5, %c0_6], %5 {strides = array<i32>} : memref<64x384xf32, #tpu.memory_space<vmem>>, vector<64x384xf32>,
    %c0_7 = arith.constant 0 : index
    %c0_8 = arith.constant 0 : index
    %7 = vector.load %arg2[%c0_7, %c0_8] : memref<128x384xbf16, #tpu.memory_space<vmem>>, vector<128x384xbf16>
    %c0_9 = arith.constant 0 : index
    %c0_10 = arith.constant 0 : index
    %8 = vector.load %arg5[%c0_9, %c0_10] : memref<256x512xbf16, #tpu.memory_space<vmem>>, vector<256x512xbf16>
    %c0_11 = arith.constant 0 : index
    %c0_12 = arith.constant 0 : index
    %9 = vector.load %arg4[%c0_11, %c0_12] : memref<1x128xf32, #tpu.memory_space<vmem>>, vector<1x128xf32>
    %10 = vector.shape_cast %9 : vector<1x128xf32> to vector<1x128xf32>
    %11 = vector.broadcast %10 : vector<1x128xf32> to vector<8x128xf32>
    %c0_13 = arith.constant 0 : index
    %c0_14 = arith.constant 0 : index
    %12 = vector.load %arg6[%c0_13, %c0_14] : memref<1x512xf32, #tpu.memory_space<vmem>>, vector<1x512xf32>
    %13 = vector.shape_cast %12 : vector<1x512xf32> to vector<1x512xf32>
    %14 = vector.broadcast %13 : vector<1x512xf32> to vector<8x512xf32>
    %cst_15 = arith.constant 0.000000e+00 : f32
    %15 = vector.broadcast %cst_15 : f32 to vector<8x128xf32>
    %c0_i32 = arith.constant 0 : i32
    %16 = tpu.assume_multiple %c0_i32, 8 : i32
    %17 = arith.index_cast %16 : i32 to index
    %c0_16 = arith.constant 0 : index
    %18 = vector.load %arg10[%17, %c0_16] : memref<64x384xf32, #tpu.memory_space<vmem>>, vector<8x384xf32>
    %19 = arith.truncf %15 : vector<8x128xf32> to vector<8x128xbf16>
    %cst_17 = arith.constant dense<0.000000e+00> : vector<8x384xf32>
    %20 = tpu.matmul %19, %7, %cst_17 {dimension_numbers = #tpu.dot_dimension_numbers<[1], [0], [0], [1], [0, 0, 1, 1], [], []>} : vector<8x128xbf16>, vector<128x384xbf16>, vector<8x384xf32> -> vector<8x384xf32>
    %21 = vector.extract_strided_slice %18 {offsets = [0, 0], sizes = [8, 128], strides = [1, 1]} : vector<8x384xf32> to vector<8x128xf32>
    %22 = vector.extract_strided_slice %20 {offsets = [0, 0], sizes = [8, 128], strides = [1, 1]} : vector<8x384xf32> to vector<8x128xf32>
    %23 = arith.addf %21, %22 : vector<8x128xf32>
    %24 = arith.negf %23 : vector<8x128xf32>
    %25 = math.exp %24 : vector<8x128xf32>
    %cst_18 = arith.constant 1.000000e+00 : f32
    %26 = vector.broadcast %cst_18 : f32 to vector<8x128xf32>
    %27 = arith.addf %26, %25 : vector<8x128xf32>
    %28 = arith.divf %26, %27 : vector<8x128xf32>
    %29 = vector.extract_strided_slice %18 {offsets = [0, 128], sizes = [8, 128], strides = [1, 1]} : vector<8x384xf32> to vector<8x128xf32>
    %30 = vector.extract_strided_slice %20 {offsets = [0, 128], sizes = [8, 128], strides = [1, 1]} : vector<8x384xf32> to vector<8x128xf32>
    %31 = arith.addf %29, %30 : vector<8x128xf32>
    %32 = arith.negf %31 : vector<8x128xf32>
    %33 = math.exp %32 : vector<8x128xf32>
    %cst_19 = arith.constant 1.000000e+00 : f32
    %34 = vector.broadcast %cst_19 : f32 to vector<8x128xf32>
    %35 = arith.addf %34, %33 : vector<8x128xf32>
    %36 = arith.divf %34, %35 : vector<8x128xf32>
    %37 = vector.extract_strided_slice %18 {offsets = [0, 256], sizes = [8, 128], strides = [1, 1]} : vector<8x384xf32> to vector<8x128xf32>
    %38 = vector.extract_strided_slice %20 {offsets = [0, 256], sizes = [8, 128], strides = [1, 1]} : vector<8x384xf32> to vector<8x128xf32>
    %39 = arith.addf %38, %11 : vector<8x128xf32>
    %40 = arith.mulf %28, %39 : vector<8x128xf32>
    %41 = arith.addf %37, %40 : vector<8x128xf32>
    %42 = math.tanh %41 : vector<8x128xf32>
    %cst_20 = arith.constant 1.000000e+00 : f32
    %43 = vector.broadcast %cst_20 : f32 to vector<8x128xf32>
    %44 = arith.subf %43, %36 : vector<8x128xf32>
    %45 = arith.mulf %44, %42 : vector<8x128xf32>
    %46 = arith.mulf %36, %15 : vector<8x128xf32>
    %47 = arith.addf %45, %46 : vector<8x128xf32>
    %cst_21 = arith.constant 0.000000e+00 : f32
    %48 = vector.broadcast %cst_21 : f32 to vector<8x128xf32>
    %c1_i32 = arith.constant 1 : i32
    %49 = tpu.concatenate %47, %48 in 1 : vector<8x128xf32>, vector<8x128xf32> -> vector<8x256xf32>
    %50 = arith.truncf %49 : vector<8x256xf32> to vector<8x256xbf16>
    %cst_22 = arith.constant dense<0.000000e+00> : vector<8x512xf32>
    %51 = tpu.matmul %50, %8, %cst_22 {dimension_numbers = #tpu.dot_dimension_numbers<[1], [0], [0], [1], [0, 0, 1, 1], [], []>} : vector<8x256xbf16>, vector<256x512xbf16>, vector<8x512xf32> -> vector<8x512xf32>
    %52 = arith.addf %51, %14 : vector<8x512xf32>
    %53 = vector.extract_strided_slice %52 {offsets = [0, 0], sizes = [8, 128], strides = [1, 1]} : vector<8x512xf32> to vector<8x128xf32>
    %54 = arith.negf %53 : vector<8x128xf32>
    %55 = math.exp %54 : vector<8x128xf32>
    %cst_23 = arith.constant 1.000000e+00 : f32
    %56 = vector.broadcast %cst_23 : f32 to vector<8x128xf32>
    %57 = arith.addf %56, %55 : vector<8x128xf32>
    %58 = arith.divf %56, %57 : vector<8x128xf32>
    %59 = vector.extract_strided_slice %52 {offsets = [0, 128], sizes = [8, 128], strides = [1, 1]} : vector<8x512xf32> to vector<8x128xf32>
    %60 = arith.negf %59 : vector<8x128xf32>
    %61 = math.exp %60 : vector<8x128xf32>
    %cst_24 = arith.constant 1.000000e+00 : f32
    %62 = vector.broadcast %cst_24 : f32 to vector<8x128xf32>
    %63 = arith.addf %62, %61 : vector<8x128xf32>
    %64 = arith.divf %62, %63 : vector<8x128xf32>
    %65 = vector.extract_strided_slice %52 {offsets = [0, 256], sizes = [8, 128], strides = [1, 1]} : vector<8x512xf32> to vector<8x128xf32>
    %66 = vector.extract_strided_slice %52 {offsets = [0, 384], sizes = [8, 128], strides = [1, 1]} : vector<8x512xf32> to vector<8x128xf32>
    %67 = arith.mulf %58, %66 : vector<8x128xf32>
    %68 = arith.addf %65, %67 : vector<8x128xf32>
    %69 = math.tanh %68 : vector<8x128xf32>
    %cst_25 = arith.constant 1.000000e+00 : f32
    %70 = vector.broadcast %cst_25 : f32 to vector<8x128xf32>
    %71 = arith.subf %70, %64 : vector<8x128xf32>
    %72 = arith.mulf %71, %69 : vector<8x128xf32>
    %73 = arith.mulf %64, %48 : vector<8x128xf32>
    %74 = arith.addf %72, %73 : vector<8x128xf32>
    %c8_i32 = arith.constant 8 : i32
    %75 = arith.muli %c1_i32, %c8_i32 : i32
    %76 = tpu.assume_multiple %75, 8 : i32
    %77 = arith.index_cast %76 : i32 to index
    %c0_26 = arith.constant 0 : index
    %78 = vector.load %arg10[%77, %c0_26] : memref<64x384xf32, #tpu.memory_space<vmem>>, vector<8x384xf32>
    %79 = arith.truncf %47 : vector<8x128xf32> to vector<8x128xbf16>
    %cst_27 = arith.constant dense<0.000000e+00> : vector<8x384xf32>
    %80 = tpu.matmul %79, %7, %cst_27 {dimension_numbers = #tpu.dot_dimension_numbers<[1], [0], [0], [1], [0, 0, 1, 1], [], []>} : vector<8x128xbf16>, vector<128x384xbf16>, vector<8x384xf32> -> vector<8x384xf32>
    %81 = vector.extract_strided_slice %78 {offsets = [0, 0], sizes = [8, 128], strides = [1, 1]} : vector<8x384xf32> to vector<8x128xf32>
    %82 = vector.extract_strided_slice %80 {offsets = [0, 0], sizes = [8, 128], strides = [1, 1]} : vector<8x384xf32> to vector<8x128xf32>
    %83 = arith.addf %81, %82 : vector<8x128xf32>
    %84 = arith.negf %83 : vector<8x128xf32>
    %85 = math.exp %84 : vector<8x128xf32>
    %cst_28 = arith.constant 1.000000e+00 : f32
    %86 = vector.broadcast %cst_28 : f32 to vector<8x128xf32>
    %87 = arith.addf %86, %85 : vector<8x128xf32>
    %88 = arith.divf %86, %87 : vector<8x128xf32>
    %89 = vector.extract_strided_slice %78 {offsets = [0, 128], sizes = [8, 128], strides = [1, 1]} : vector<8x384xf32> to vector<8x128xf32>
    %90 = vector.extract_strided_slice %80 {offsets = [0, 128], sizes = [8, 128], strides = [1, 1]} : vector<8x384xf32> to vector<8x128xf32>
    %91 = arith.addf %89, %90 : vector<8x128xf32>
    %92 = arith.negf %91 : vector<8x128xf32>
    %93 = math.exp %92 : vector<8x128xf32>
    %cst_29 = arith.constant 1.000000e+00 : f32
    %94 = vector.broadcast %cst_29 : f32 to vector<8x128xf32>
    %95 = arith.addf %94, %93 : vector<8x128xf32>
    %96 = arith.divf %94, %95 : vector<8x128xf32>
    %97 = vector.extract_strided_slice %78 {offsets = [0, 256], sizes = [8, 128], strides = [1, 1]} : vector<8x384xf32> to vector<8x128xf32>
    %98 = vector.extract_strided_slice %80 {offsets = [0, 256], sizes = [8, 128], strides = [1, 1]} : vector<8x384xf32> to vector<8x128xf32>
    %99 = arith.addf %98, %11 : vector<8x128xf32>
    %100 = arith.mulf %88, %99 : vector<8x128xf32>
    %101 = arith.addf %97, %100 : vector<8x128xf32>
    %102 = math.tanh %101 : vector<8x128xf32>
    %cst_30 = arith.constant 1.000000e+00 : f32
    %103 = vector.broadcast %cst_30 : f32 to vector<8x128xf32>
    %104 = arith.subf %103, %96 : vector<8x128xf32>
    %105 = arith.mulf %104, %102 : vector<8x128xf32>
    %106 = arith.mulf %96, %47 : vector<8x128xf32>
    %107 = arith.addf %105, %106 : vector<8x128xf32>
    %c2_i32 = arith.constant 2 : i32
    %108 = tpu.concatenate %107, %74 in 1 : vector<8x128xf32>, vector<8x128xf32> -> vector<8x256xf32>
    %109 = arith.truncf %108 : vector<8x256xf32> to vector<8x256xbf16>
    %cst_31 = arith.constant dense<0.000000e+00> : vector<8x512xf32>
    %110 = tpu.matmul %109, %8, %cst_31 {dimension_numbers = #tpu.dot_dimension_numbers<[1], [0], [0], [1], [0, 0, 1, 1], [], []>} : vector<8x256xbf16>, vector<256x512xbf16>, vector<8x512xf32> -> vector<8x512xf32>
    %111 = arith.addf %110, %14 : vector<8x512xf32>
    %112 = vector.extract_strided_slice %111 {offsets = [0, 0], sizes = [8, 128], strides = [1, 1]} : vector<8x512xf32> to vector<8x128xf32>
    %113 = arith.negf %112 : vector<8x128xf32>
    %114 = math.exp %113 : vector<8x128xf32>
    %cst_32 = arith.constant 1.000000e+00 : f32
    %115 = vector.broadcast %cst_32 : f32 to vector<8x128xf32>
    %116 = arith.addf %115, %114 : vector<8x128xf32>
    %117 = arith.divf %115, %116 : vector<8x128xf32>
    %118 = vector.extract_strided_slice %111 {offsets = [0, 128], sizes = [8, 128], strides = [1, 1]} : vector<8x512xf32> to vector<8x128xf32>
    %119 = arith.negf %118 : vector<8x128xf32>
    %120 = math.exp %119 : vector<8x128xf32>
    %cst_33 = arith.constant 1.000000e+00 : f32
    %121 = vector.broadcast %cst_33 : f32 to vector<8x128xf32>
    %122 = arith.addf %121, %120 : vector<8x128xf32>
    %123 = arith.divf %121, %122 : vector<8x128xf32>
    %124 = vector.extract_strided_slice %111 {offsets = [0, 256], sizes = [8, 128], strides = [1, 1]} : vector<8x512xf32> to vector<8x128xf32>
    %125 = vector.extract_strided_slice %111 {offsets = [0, 384], sizes = [8, 128], strides = [1, 1]} : vector<8x512xf32> to vector<8x128xf32>
    %126 = arith.mulf %117, %125 : vector<8x128xf32>
    %127 = arith.addf %124, %126 : vector<8x128xf32>
    %128 = math.tanh %127 : vector<8x128xf32>
    %cst_34 = arith.constant 1.000000e+00 : f32
    %129 = vector.broadcast %cst_34 : f32 to vector<8x128xf32>
    %130 = arith.subf %129, %123 : vector<8x128xf32>
    %131 = arith.mulf %130, %128 : vector<8x128xf32>
    %132 = arith.mulf %123, %74 : vector<8x128xf32>
    %133 = arith.addf %131, %132 : vector<8x128xf32>
    %c8_i32_35 = arith.constant 8 : i32
    %134 = arith.muli %c2_i32, %c8_i32_35 : i32
    %135 = tpu.assume_multiple %134, 8 : i32
    %136 = arith.index_cast %135 : i32 to index
    %c0_36 = arith.constant 0 : index
    %137 = vector.load %arg10[%136, %c0_36] : memref<64x384xf32, #tpu.memory_space<vmem>>, vector<8x384xf32>
    %138 = arith.truncf %107 : vector<8x128xf32> to vector<8x128xbf16>
    %cst_37 = arith.constant dense<0.000000e+00> : vector<8x384xf32>
    %139 = tpu.matmul %138, %7, %cst_37 {dimension_numbers = #tpu.dot_dimension_numbers<[1], [0], [0], [1], [0, 0, 1, 1], [], []>} : vector<8x128xbf16>, vector<128x384xbf16>, vector<8x384xf32> -> vector<8x384xf32>
    %140 = vector.extract_strided_slice %137 {offsets = [0, 0], sizes = [8, 128], strides = [1, 1]} : vector<8x384xf32> to vector<8x128xf32>
    %141 = vector.extract_strided_slice %139 {offsets = [0, 0], sizes = [8, 128], strides = [1, 1]} : vector<8x384xf32> to vector<8x128xf32>
    %142 = arith.addf %140, %141 : vector<8x128xf32>
    %143 = arith.negf %142 : vector<8x128xf32>
    %144 = math.exp %143 : vector<8x128xf32>
    %cst_38 = arith.constant 1.000000e+00 : f32
    %145 = vector.broadcast %cst_38 : f32 to vector<8x128xf32>
    %146 = arith.addf %145, %144 : vector<8x128xf32>
    %147 = arith.divf %145, %146 : vector<8x128xf32>
    %148 = vector.extract_strided_slice %137 {offsets = [0, 128], sizes = [8, 128], strides = [1, 1]} : vector<8x384xf32> to vector<8x128xf32>
    %149 = vector.extract_strided_slice %139 {offsets = [0, 128], sizes = [8, 128], strides = [1, 1]} : vector<8x384xf32> to vector<8x128xf32>
    %150 = arith.addf %148, %149 : vector<8x128xf32>
    %151 = arith.negf %150 : vector<8x128xf32>
    %152 = math.exp %151 : vector<8x128xf32>
    %cst_39 = arith.constant 1.000000e+00 : f32
    %153 = vector.broadcast %cst_39 : f32 to vector<8x128xf32>
    %154 = arith.addf %153, %152 : vector<8x128xf32>
    %155 = arith.divf %153, %154 : vector<8x128xf32>
    %156 = vector.extract_strided_slice %137 {offsets = [0, 256], sizes = [8, 128], strides = [1, 1]} : vector<8x384xf32> to vector<8x128xf32>
    %157 = vector.extract_strided_slice %139 {offsets = [0, 256], sizes = [8, 128], strides = [1, 1]} : vector<8x384xf32> to vector<8x128xf32>
    %158 = arith.addf %157, %11 : vector<8x128xf32>
    %159 = arith.mulf %147, %158 : vector<8x128xf32>
    %160 = arith.addf %156, %159 : vector<8x128xf32>
    %161 = math.tanh %160 : vector<8x128xf32>
    %cst_40 = arith.constant 1.000000e+00 : f32
    %162 = vector.broadcast %cst_40 : f32 to vector<8x128xf32>
    %163 = arith.subf %162, %155 : vector<8x128xf32>
    %164 = arith.mulf %163, %161 : vector<8x128xf32>
    %165 = arith.mulf %155, %107 : vector<8x128xf32>
    %166 = arith.addf %164, %165 : vector<8x128xf32>
    %c3_i32 = arith.constant 3 : i32
    %167 = tpu.concatenate %166, %133 in 1 : vector<8x128xf32>, vector<8x128xf32> -> vector<8x256xf32>
    %168 = arith.truncf %167 : vector<8x256xf32> to vector<8x256xbf16>
    %cst_41 = arith.constant dense<0.000000e+00> : vector<8x512xf32>
    %169 = tpu.matmul %168, %8, %cst_41 {dimension_numbers = #tpu.dot_dimension_numbers<[1], [0], [0], [1], [0, 0, 1, 1], [], []>} : vector<8x256xbf16>, vector<256x512xbf16>, vector<8x512xf32> -> vector<8x512xf32>
    %170 = arith.addf %169, %14 : vector<8x512xf32>
    %171 = vector.extract_strided_slice %170 {offsets = [0, 0], sizes = [8, 128], strides = [1, 1]} : vector<8x512xf32> to vector<8x128xf32>
    %172 = arith.negf %171 : vector<8x128xf32>
    %173 = math.exp %172 : vector<8x128xf32>
    %cst_42 = arith.constant 1.000000e+00 : f32
    %174 = vector.broadcast %cst_42 : f32 to vector<8x128xf32>
    %175 = arith.addf %174, %173 : vector<8x128xf32>
    %176 = arith.divf %174, %175 : vector<8x128xf32>
    %177 = vector.extract_strided_slice %170 {offsets = [0, 128], sizes = [8, 128], strides = [1, 1]} : vector<8x512xf32> to vector<8x128xf32>
    %178 = arith.negf %177 : vector<8x128xf32>
    %179 = math.exp %178 : vector<8x128xf32>
    %cst_43 = arith.constant 1.000000e+00 : f32
    %180 = vector.broadcast %cst_43 : f32 to vector<8x128xf32>
    %181 = arith.addf %180, %179 : vector<8x128xf32>
    %182 = arith.divf %180, %181 : vector<8x128xf32>
    %183 = vector.extract_strided_slice %170 {offsets = [0, 256], sizes = [8, 128], strides = [1, 1]} : vector<8x512xf32> to vector<8x128xf32>
    %184 = vector.extract_strided_slice %170 {offsets = [0, 384], sizes = [8, 128], strides = [1, 1]} : vector<8x512xf32> to vector<8x128xf32>
    %185 = arith.mulf %176, %184 : vector<8x128xf32>
    %186 = arith.addf %183, %185 : vector<8x128xf32>
    %187 = math.tanh %186 : vector<8x128xf32>
    %cst_44 = arith.constant 1.000000e+00 : f32
    %188 = vector.broadcast %cst_44 : f32 to vector<8x128xf32>
    %189 = arith.subf %188, %182 : vector<8x128xf32>
    %190 = arith.mulf %189, %187 : vector<8x128xf32>
    %191 = arith.mulf %182, %133 : vector<8x128xf32>
    %192 = arith.addf %190, %191 : vector<8x128xf32>
    %c8_i32_45 = arith.constant 8 : i32
    %193 = arith.muli %c3_i32, %c8_i32_45 : i32
    %194 = tpu.assume_multiple %193, 8 : i32
    %195 = arith.index_cast %194 : i32 to index
    %c0_46 = arith.constant 0 : index
    %196 = vector.load %arg10[%195, %c0_46] : memref<64x384xf32, #tpu.memory_space<vmem>>, vector<8x384xf32>
    %197 = arith.truncf %166 : vector<8x128xf32> to vector<8x128xbf16>
    %cst_47 = arith.constant dense<0.000000e+00> : vector<8x384xf32>
    %198 = tpu.matmul %197, %7, %cst_47 {dimension_numbers = #tpu.dot_dimension_numbers<[1], [0], [0], [1], [0, 0, 1, 1], [], []>} : vector<8x128xbf16>, vector<128x384xbf16>, vector<8x384xf32> -> vector<8x384xf32>
    %199 = vector.extract_strided_slice %196 {offsets = [0, 0], sizes = [8, 128], strides = [1, 1]} : vector<8x384xf32> to vector<8x128xf32>
    %200 = vector.extract_strided_slice %198 {offsets = [0, 0], sizes = [8, 128], strides = [1, 1]} : vector<8x384xf32> to vector<8x128xf32>
    %201 = arith.addf %199, %200 : vector<8x128xf32>
    %202 = arith.negf %201 : vector<8x128xf32>
    %203 = math.exp %202 : vector<8x128xf32>
    %cst_48 = arith.constant 1.000000e+00 : f32
    %204 = vector.broadcast %cst_48 : f32 to vector<8x128xf32>
    %205 = arith.addf %204, %203 : vector<8x128xf32>
    %206 = arith.divf %204, %205 : vector<8x128xf32>
    %207 = vector.extract_strided_slice %196 {offsets = [0, 128], sizes = [8, 128], strides = [1, 1]} : vector<8x384xf32> to vector<8x128xf32>
    %208 = vector.extract_strided_slice %198 {offsets = [0, 128], sizes = [8, 128], strides = [1, 1]} : vector<8x384xf32> to vector<8x128xf32>
    %209 = arith.addf %207, %208 : vector<8x128xf32>
    %210 = arith.negf %209 : vector<8x128xf32>
    %211 = math.exp %210 : vector<8x128xf32>
    %cst_49 = arith.constant 1.000000e+00 : f32
    %212 = vector.broadcast %cst_49 : f32 to vector<8x128xf32>
    %213 = arith.addf %212, %211 : vector<8x128xf32>
    %214 = arith.divf %212, %213 : vector<8x128xf32>
    %215 = vector.extract_strided_slice %196 {offsets = [0, 256], sizes = [8, 128], strides = [1, 1]} : vector<8x384xf32> to vector<8x128xf32>
    %216 = vector.extract_strided_slice %198 {offsets = [0, 256], sizes = [8, 128], strides = [1, 1]} : vector<8x384xf32> to vector<8x128xf32>
    %217 = arith.addf %216, %11 : vector<8x128xf32>
    %218 = arith.mulf %206, %217 : vector<8x128xf32>
    %219 = arith.addf %215, %218 : vector<8x128xf32>
    %220 = math.tanh %219 : vector<8x128xf32>
    %cst_50 = arith.constant 1.000000e+00 : f32
    %221 = vector.broadcast %cst_50 : f32 to vector<8x128xf32>
    %222 = arith.subf %221, %214 : vector<8x128xf32>
    %223 = arith.mulf %222, %220 : vector<8x128xf32>
    %224 = arith.mulf %214, %166 : vector<8x128xf32>
    %225 = arith.addf %223, %224 : vector<8x128xf32>
    %c4_i32 = arith.constant 4 : i32
    %226 = tpu.concatenate %225, %192 in 1 : vector<8x128xf32>, vector<8x128xf32> -> vector<8x256xf32>
    %227 = arith.truncf %226 : vector<8x256xf32> to vector<8x256xbf16>
    %cst_51 = arith.constant dense<0.000000e+00> : vector<8x512xf32>
    %228 = tpu.matmul %227, %8, %cst_51 {dimension_numbers = #tpu.dot_dimension_numbers<[1], [0], [0], [1], [0, 0, 1, 1], [], []>} : vector<8x256xbf16>, vector<256x512xbf16>, vector<8x512xf32> -> vector<8x512xf32>
    %229 = arith.addf %228, %14 : vector<8x512xf32>
    %230 = vector.extract_strided_slice %229 {offsets = [0, 0], sizes = [8, 128], strides = [1, 1]} : vector<8x512xf32> to vector<8x128xf32>
    %231 = arith.negf %230 : vector<8x128xf32>
    %232 = math.exp %231 : vector<8x128xf32>
    %cst_52 = arith.constant 1.000000e+00 : f32
    %233 = vector.broadcast %cst_52 : f32 to vector<8x128xf32>
    %234 = arith.addf %233, %232 : vector<8x128xf32>
    %235 = arith.divf %233, %234 : vector<8x128xf32>
    %236 = vector.extract_strided_slice %229 {offsets = [0, 128], sizes = [8, 128], strides = [1, 1]} : vector<8x512xf32> to vector<8x128xf32>
    %237 = arith.negf %236 : vector<8x128xf32>
    %238 = math.exp %237 : vector<8x128xf32>
    %cst_53 = arith.constant 1.000000e+00 : f32
    %239 = vector.broadcast %cst_53 : f32 to vector<8x128xf32>
    %240 = arith.addf %239, %238 : vector<8x128xf32>
    %241 = arith.divf %239, %240 : vector<8x128xf32>
    %242 = vector.extract_strided_slice %229 {offsets = [0, 256], sizes = [8, 128], strides = [1, 1]} : vector<8x512xf32> to vector<8x128xf32>
    %243 = vector.extract_strided_slice %229 {offsets = [0, 384], sizes = [8, 128], strides = [1, 1]} : vector<8x512xf32> to vector<8x128xf32>
    %244 = arith.mulf %235, %243 : vector<8x128xf32>
    %245 = arith.addf %242, %244 : vector<8x128xf32>
    %246 = math.tanh %245 : vector<8x128xf32>
    %cst_54 = arith.constant 1.000000e+00 : f32
    %247 = vector.broadcast %cst_54 : f32 to vector<8x128xf32>
    %248 = arith.subf %247, %241 : vector<8x128xf32>
    %249 = arith.mulf %248, %246 : vector<8x128xf32>
    %250 = arith.mulf %241, %192 : vector<8x128xf32>
    %251 = arith.addf %249, %250 : vector<8x128xf32>
    %c8_i32_55 = arith.constant 8 : i32
    %252 = arith.muli %c4_i32, %c8_i32_55 : i32
    %253 = tpu.assume_multiple %252, 8 : i32
    %254 = arith.index_cast %253 : i32 to index
    %c0_56 = arith.constant 0 : index
    %255 = vector.load %arg10[%254, %c0_56] : memref<64x384xf32, #tpu.memory_space<vmem>>, vector<8x384xf32>
    %256 = arith.truncf %225 : vector<8x128xf32> to vector<8x128xbf16>
    %cst_57 = arith.constant dense<0.000000e+00> : vector<8x384xf32>
    %257 = tpu.matmul %256, %7, %cst_57 {dimension_numbers = #tpu.dot_dimension_numbers<[1], [0], [0], [1], [0, 0, 1, 1], [], []>} : vector<8x128xbf16>, vector<128x384xbf16>, vector<8x384xf32> -> vector<8x384xf32>
    %258 = vector.extract_strided_slice %255 {offsets = [0, 0], sizes = [8, 128], strides = [1, 1]} : vector<8x384xf32> to vector<8x128xf32>
    %259 = vector.extract_strided_slice %257 {offsets = [0, 0], sizes = [8, 128], strides = [1, 1]} : vector<8x384xf32> to vector<8x128xf32>
    %260 = arith.addf %258, %259 : vector<8x128xf32>
    %261 = arith.negf %260 : vector<8x128xf32>
    %262 = math.exp %261 : vector<8x128xf32>
    %cst_58 = arith.constant 1.000000e+00 : f32
    %263 = vector.broadcast %cst_58 : f32 to vector<8x128xf32>
    %264 = arith.addf %263, %262 : vector<8x128xf32>
    %265 = arith.divf %263, %264 : vector<8x128xf32>
    %266 = vector.extract_strided_slice %255 {offsets = [0, 128], sizes = [8, 128], strides = [1, 1]} : vector<8x384xf32> to vector<8x128xf32>
    %267 = vector.extract_strided_slice %257 {offsets = [0, 128], sizes = [8, 128], strides = [1, 1]} : vector<8x384xf32> to vector<8x128xf32>
    %268 = arith.addf %266, %267 : vector<8x128xf32>
    %269 = arith.negf %268 : vector<8x128xf32>
    %270 = math.exp %269 : vector<8x128xf32>
    %cst_59 = arith.constant 1.000000e+00 : f32
    %271 = vector.broadcast %cst_59 : f32 to vector<8x128xf32>
    %272 = arith.addf %271, %270 : vector<8x128xf32>
    %273 = arith.divf %271, %272 : vector<8x128xf32>
    %274 = vector.extract_strided_slice %255 {offsets = [0, 256], sizes = [8, 128], strides = [1, 1]} : vector<8x384xf32> to vector<8x128xf32>
    %275 = vector.extract_strided_slice %257 {offsets = [0, 256], sizes = [8, 128], strides = [1, 1]} : vector<8x384xf32> to vector<8x128xf32>
    %276 = arith.addf %275, %11 : vector<8x128xf32>
    %277 = arith.mulf %265, %276 : vector<8x128xf32>
    %278 = arith.addf %274, %277 : vector<8x128xf32>
    %279 = math.tanh %278 : vector<8x128xf32>
    %cst_60 = arith.constant 1.000000e+00 : f32
    %280 = vector.broadcast %cst_60 : f32 to vector<8x128xf32>
    %281 = arith.subf %280, %273 : vector<8x128xf32>
    %282 = arith.mulf %281, %279 : vector<8x128xf32>
    %283 = arith.mulf %273, %225 : vector<8x128xf32>
    %284 = arith.addf %282, %283 : vector<8x128xf32>
    %c5_i32 = arith.constant 5 : i32
    %285 = tpu.concatenate %284, %251 in 1 : vector<8x128xf32>, vector<8x128xf32> -> vector<8x256xf32>
    %286 = arith.truncf %285 : vector<8x256xf32> to vector<8x256xbf16>
    %cst_61 = arith.constant dense<0.000000e+00> : vector<8x512xf32>
    %287 = tpu.matmul %286, %8, %cst_61 {dimension_numbers = #tpu.dot_dimension_numbers<[1], [0], [0], [1], [0, 0, 1, 1], [], []>} : vector<8x256xbf16>, vector<256x512xbf16>, vector<8x512xf32> -> vector<8x512xf32>
    %288 = arith.addf %287, %14 : vector<8x512xf32>
    %289 = vector.extract_strided_slice %288 {offsets = [0, 0], sizes = [8, 128], strides = [1, 1]} : vector<8x512xf32> to vector<8x128xf32>
    %290 = arith.negf %289 : vector<8x128xf32>
    %291 = math.exp %290 : vector<8x128xf32>
    %cst_62 = arith.constant 1.000000e+00 : f32
    %292 = vector.broadcast %cst_62 : f32 to vector<8x128xf32>
    %293 = arith.addf %292, %291 : vector<8x128xf32>
    %294 = arith.divf %292, %293 : vector<8x128xf32>
    %295 = vector.extract_strided_slice %288 {offsets = [0, 128], sizes = [8, 128], strides = [1, 1]} : vector<8x512xf32> to vector<8x128xf32>
    %296 = arith.negf %295 : vector<8x128xf32>
    %297 = math.exp %296 : vector<8x128xf32>
    %cst_63 = arith.constant 1.000000e+00 : f32
    %298 = vector.broadcast %cst_63 : f32 to vector<8x128xf32>
    %299 = arith.addf %298, %297 : vector<8x128xf32>
    %300 = arith.divf %298, %299 : vector<8x128xf32>
    %301 = vector.extract_strided_slice %288 {offsets = [0, 256], sizes = [8, 128], strides = [1, 1]} : vector<8x512xf32> to vector<8x128xf32>
    %302 = vector.extract_strided_slice %288 {offsets = [0, 384], sizes = [8, 128], strides = [1, 1]} : vector<8x512xf32> to vector<8x128xf32>
    %303 = arith.mulf %294, %302 : vector<8x128xf32>
    %304 = arith.addf %301, %303 : vector<8x128xf32>
    %305 = math.tanh %304 : vector<8x128xf32>
    %cst_64 = arith.constant 1.000000e+00 : f32
    %306 = vector.broadcast %cst_64 : f32 to vector<8x128xf32>
    %307 = arith.subf %306, %300 : vector<8x128xf32>
    %308 = arith.mulf %307, %305 : vector<8x128xf32>
    %309 = arith.mulf %300, %251 : vector<8x128xf32>
    %310 = arith.addf %308, %309 : vector<8x128xf32>
    %c8_i32_65 = arith.constant 8 : i32
    %311 = arith.muli %c5_i32, %c8_i32_65 : i32
    %312 = tpu.assume_multiple %311, 8 : i32
    %313 = arith.index_cast %312 : i32 to index
    %c0_66 = arith.constant 0 : index
    %314 = vector.load %arg10[%313, %c0_66] : memref<64x384xf32, #tpu.memory_space<vmem>>, vector<8x384xf32>
    %315 = arith.truncf %284 : vector<8x128xf32> to vector<8x128xbf16>
    %cst_67 = arith.constant dense<0.000000e+00> : vector<8x384xf32>
    %316 = tpu.matmul %315, %7, %cst_67 {dimension_numbers = #tpu.dot_dimension_numbers<[1], [0], [0], [1], [0, 0, 1, 1], [], []>} : vector<8x128xbf16>, vector<128x384xbf16>, vector<8x384xf32> -> vector<8x384xf32>
    %317 = vector.extract_strided_slice %314 {offsets = [0, 0], sizes = [8, 128], strides = [1, 1]} : vector<8x384xf32> to vector<8x128xf32>
    %318 = vector.extract_strided_slice %316 {offsets = [0, 0], sizes = [8, 128], strides = [1, 1]} : vector<8x384xf32> to vector<8x128xf32>
    %319 = arith.addf %317, %318 : vector<8x128xf32>
    %320 = arith.negf %319 : vector<8x128xf32>
    %321 = math.exp %320 : vector<8x128xf32>
    %cst_68 = arith.constant 1.000000e+00 : f32
    %322 = vector.broadcast %cst_68 : f32 to vector<8x128xf32>
    %323 = arith.addf %322, %321 : vector<8x128xf32>
    %324 = arith.divf %322, %323 : vector<8x128xf32>
    %325 = vector.extract_strided_slice %314 {offsets = [0, 128], sizes = [8, 128], strides = [1, 1]} : vector<8x384xf32> to vector<8x128xf32>
    %326 = vector.extract_strided_slice %316 {offsets = [0, 128], sizes = [8, 128], strides = [1, 1]} : vector<8x384xf32> to vector<8x128xf32>
    %327 = arith.addf %325, %326 : vector<8x128xf32>
    %328 = arith.negf %327 : vector<8x128xf32>
    %329 = math.exp %328 : vector<8x128xf32>
    %cst_69 = arith.constant 1.000000e+00 : f32
    %330 = vector.broadcast %cst_69 : f32 to vector<8x128xf32>
    %331 = arith.addf %330, %329 : vector<8x128xf32>
    %332 = arith.divf %330, %331 : vector<8x128xf32>
    %333 = vector.extract_strided_slice %314 {offsets = [0, 256], sizes = [8, 128], strides = [1, 1]} : vector<8x384xf32> to vector<8x128xf32>
    %334 = vector.extract_strided_slice %316 {offsets = [0, 256], sizes = [8, 128], strides = [1, 1]} : vector<8x384xf32> to vector<8x128xf32>
    %335 = arith.addf %334, %11 : vector<8x128xf32>
    %336 = arith.mulf %324, %335 : vector<8x128xf32>
    %337 = arith.addf %333, %336 : vector<8x128xf32>
    %338 = math.tanh %337 : vector<8x128xf32>
    %cst_70 = arith.constant 1.000000e+00 : f32
    %339 = vector.broadcast %cst_70 : f32 to vector<8x128xf32>
    %340 = arith.subf %339, %332 : vector<8x128xf32>
    %341 = arith.mulf %340, %338 : vector<8x128xf32>
    %342 = arith.mulf %332, %284 : vector<8x128xf32>
    %343 = arith.addf %341, %342 : vector<8x128xf32>
    %c6_i32 = arith.constant 6 : i32
    %344 = tpu.concatenate %343, %310 in 1 : vector<8x128xf32>, vector<8x128xf32> -> vector<8x256xf32>
    %345 = arith.truncf %344 : vector<8x256xf32> to vector<8x256xbf16>
    %cst_71 = arith.constant dense<0.000000e+00> : vector<8x512xf32>
    %346 = tpu.matmul %345, %8, %cst_71 {dimension_numbers = #tpu.dot_dimension_numbers<[1], [0], [0], [1], [0, 0, 1, 1], [], []>} : vector<8x256xbf16>, vector<256x512xbf16>, vector<8x512xf32> -> vector<8x512xf32>
    %347 = arith.addf %346, %14 : vector<8x512xf32>
    %348 = vector.extract_strided_slice %347 {offsets = [0, 0], sizes = [8, 128], strides = [1, 1]} : vector<8x512xf32> to vector<8x128xf32>
    %349 = arith.negf %348 : vector<8x128xf32>
    %350 = math.exp %349 : vector<8x128xf32>
    %cst_72 = arith.constant 1.000000e+00 : f32
    %351 = vector.broadcast %cst_72 : f32 to vector<8x128xf32>
    %352 = arith.addf %351, %350 : vector<8x128xf32>
    %353 = arith.divf %351, %352 : vector<8x128xf32>
    %354 = vector.extract_strided_slice %347 {offsets = [0, 128], sizes = [8, 128], strides = [1, 1]} : vector<8x512xf32> to vector<8x128xf32>
    %355 = arith.negf %354 : vector<8x128xf32>
    %356 = math.exp %355 : vector<8x128xf32>
    %cst_73 = arith.constant 1.000000e+00 : f32
    %357 = vector.broadcast %cst_73 : f32 to vector<8x128xf32>
    %358 = arith.addf %357, %356 : vector<8x128xf32>
    %359 = arith.divf %357, %358 : vector<8x128xf32>
    %360 = vector.extract_strided_slice %347 {offsets = [0, 256], sizes = [8, 128], strides = [1, 1]} : vector<8x512xf32> to vector<8x128xf32>
    %361 = vector.extract_strided_slice %347 {offsets = [0, 384], sizes = [8, 128], strides = [1, 1]} : vector<8x512xf32> to vector<8x128xf32>
    %362 = arith.mulf %353, %361 : vector<8x128xf32>
    %363 = arith.addf %360, %362 : vector<8x128xf32>
    %364 = math.tanh %363 : vector<8x128xf32>
    %cst_74 = arith.constant 1.000000e+00 : f32
    %365 = vector.broadcast %cst_74 : f32 to vector<8x128xf32>
    %366 = arith.subf %365, %359 : vector<8x128xf32>
    %367 = arith.mulf %366, %364 : vector<8x128xf32>
    %368 = arith.mulf %359, %310 : vector<8x128xf32>
    %369 = arith.addf %367, %368 : vector<8x128xf32>
    %c8_i32_75 = arith.constant 8 : i32
    %370 = arith.muli %c6_i32, %c8_i32_75 : i32
    %371 = tpu.assume_multiple %370, 8 : i32
    %372 = arith.index_cast %371 : i32 to index
    %c0_76 = arith.constant 0 : index
    %373 = vector.load %arg10[%372, %c0_76] : memref<64x384xf32, #tpu.memory_space<vmem>>, vector<8x384xf32>
    %374 = arith.truncf %343 : vector<8x128xf32> to vector<8x128xbf16>
    %cst_77 = arith.constant dense<0.000000e+00> : vector<8x384xf32>
    %375 = tpu.matmul %374, %7, %cst_77 {dimension_numbers = #tpu.dot_dimension_numbers<[1], [0], [0], [1], [0, 0, 1, 1], [], []>} : vector<8x128xbf16>, vector<128x384xbf16>, vector<8x384xf32> -> vector<8x384xf32>
    %376 = vector.extract_strided_slice %373 {offsets = [0, 0], sizes = [8, 128], strides = [1, 1]} : vector<8x384xf32> to vector<8x128xf32>
    %377 = vector.extract_strided_slice %375 {offsets = [0, 0], sizes = [8, 128], strides = [1, 1]} : vector<8x384xf32> to vector<8x128xf32>
    %378 = arith.addf %376, %377 : vector<8x128xf32>
    %379 = arith.negf %378 : vector<8x128xf32>
    %380 = math.exp %379 : vector<8x128xf32>
    %cst_78 = arith.constant 1.000000e+00 : f32
    %381 = vector.broadcast %cst_78 : f32 to vector<8x128xf32>
    %382 = arith.addf %381, %380 : vector<8x128xf32>
    %383 = arith.divf %381, %382 : vector<8x128xf32>
    %384 = vector.extract_strided_slice %373 {offsets = [0, 128], sizes = [8, 128], strides = [1, 1]} : vector<8x384xf32> to vector<8x128xf32>
    %385 = vector.extract_strided_slice %375 {offsets = [0, 128], sizes = [8, 128], strides = [1, 1]} : vector<8x384xf32> to vector<8x128xf32>
    %386 = arith.addf %384, %385 : vector<8x128xf32>
    %387 = arith.negf %386 : vector<8x128xf32>
    %388 = math.exp %387 : vector<8x128xf32>
    %cst_79 = arith.constant 1.000000e+00 : f32
    %389 = vector.broadcast %cst_79 : f32 to vector<8x128xf32>
    %390 = arith.addf %389, %388 : vector<8x128xf32>
    %391 = arith.divf %389, %390 : vector<8x128xf32>
    %392 = vector.extract_strided_slice %373 {offsets = [0, 256], sizes = [8, 128], strides = [1, 1]} : vector<8x384xf32> to vector<8x128xf32>
    %393 = vector.extract_strided_slice %375 {offsets = [0, 256], sizes = [8, 128], strides = [1, 1]} : vector<8x384xf32> to vector<8x128xf32>
    %394 = arith.addf %393, %11 : vector<8x128xf32>
    %395 = arith.mulf %383, %394 : vector<8x128xf32>
    %396 = arith.addf %392, %395 : vector<8x128xf32>
    %397 = math.tanh %396 : vector<8x128xf32>
    %cst_80 = arith.constant 1.000000e+00 : f32
    %398 = vector.broadcast %cst_80 : f32 to vector<8x128xf32>
    %399 = arith.subf %398, %391 : vector<8x128xf32>
    %400 = arith.mulf %399, %397 : vector<8x128xf32>
    %401 = arith.mulf %391, %343 : vector<8x128xf32>
    %402 = arith.addf %400, %401 : vector<8x128xf32>
    %c7_i32 = arith.constant 7 : i32
    %403 = tpu.concatenate %402, %369 in 1 : vector<8x128xf32>, vector<8x128xf32> -> vector<8x256xf32>
    %404 = arith.truncf %403 : vector<8x256xf32> to vector<8x256xbf16>
    %cst_81 = arith.constant dense<0.000000e+00> : vector<8x512xf32>
    %405 = tpu.matmul %404, %8, %cst_81 {dimension_numbers = #tpu.dot_dimension_numbers<[1], [0], [0], [1], [0, 0, 1, 1], [], []>} : vector<8x256xbf16>, vector<256x512xbf16>, vector<8x512xf32> -> vector<8x512xf32>
    %406 = arith.addf %405, %14 : vector<8x512xf32>
    %407 = vector.extract_strided_slice %406 {offsets = [0, 0], sizes = [8, 128], strides = [1, 1]} : vector<8x512xf32> to vector<8x128xf32>
    %408 = arith.negf %407 : vector<8x128xf32>
    %409 = math.exp %408 : vector<8x128xf32>
    %cst_82 = arith.constant 1.000000e+00 : f32
    %410 = vector.broadcast %cst_82 : f32 to vector<8x128xf32>
    %411 = arith.addf %410, %409 : vector<8x128xf32>
    %412 = arith.divf %410, %411 : vector<8x128xf32>
    %413 = vector.extract_strided_slice %406 {offsets = [0, 128], sizes = [8, 128], strides = [1, 1]} : vector<8x512xf32> to vector<8x128xf32>
    %414 = arith.negf %413 : vector<8x128xf32>
    %415 = math.exp %414 : vector<8x128xf32>
    %cst_83 = arith.constant 1.000000e+00 : f32
    %416 = vector.broadcast %cst_83 : f32 to vector<8x128xf32>
    %417 = arith.addf %416, %415 : vector<8x128xf32>
    %418 = arith.divf %416, %417 : vector<8x128xf32>
    %419 = vector.extract_strided_slice %406 {offsets = [0, 256], sizes = [8, 128], strides = [1, 1]} : vector<8x512xf32> to vector<8x128xf32>
    %420 = vector.extract_strided_slice %406 {offsets = [0, 384], sizes = [8, 128], strides = [1, 1]} : vector<8x512xf32> to vector<8x128xf32>
    %421 = arith.mulf %412, %420 : vector<8x128xf32>
    %422 = arith.addf %419, %421 : vector<8x128xf32>
    %423 = math.tanh %422 : vector<8x128xf32>
    %cst_84 = arith.constant 1.000000e+00 : f32
    %424 = vector.broadcast %cst_84 : f32 to vector<8x128xf32>
    %425 = arith.subf %424, %418 : vector<8x128xf32>
    %426 = arith.mulf %425, %423 : vector<8x128xf32>
    %427 = arith.mulf %418, %369 : vector<8x128xf32>
    %428 = arith.addf %426, %427 : vector<8x128xf32>
    %c8_i32_85 = arith.constant 8 : i32
    %429 = arith.muli %c7_i32, %c8_i32_85 : i32
    %430 = tpu.assume_multiple %429, 8 : i32
    %431 = arith.index_cast %430 : i32 to index
    %c0_86 = arith.constant 0 : index
    %432 = vector.load %arg10[%431, %c0_86] : memref<64x384xf32, #tpu.memory_space<vmem>>, vector<8x384xf32>
    %433 = arith.truncf %402 : vector<8x128xf32> to vector<8x128xbf16>
    %cst_87 = arith.constant dense<0.000000e+00> : vector<8x384xf32>
    %434 = tpu.matmul %433, %7, %cst_87 {dimension_numbers = #tpu.dot_dimension_numbers<[1], [0], [0], [1], [0, 0, 1, 1], [], []>} : vector<8x128xbf16>, vector<128x384xbf16>, vector<8x384xf32> -> vector<8x384xf32>
    %435 = vector.extract_strided_slice %432 {offsets = [0, 0], sizes = [8, 128], strides = [1, 1]} : vector<8x384xf32> to vector<8x128xf32>
    %436 = vector.extract_strided_slice %434 {offsets = [0, 0], sizes = [8, 128], strides = [1, 1]} : vector<8x384xf32> to vector<8x128xf32>
    %437 = arith.addf %435, %436 : vector<8x128xf32>
    %438 = arith.negf %437 : vector<8x128xf32>
    %439 = math.exp %438 : vector<8x128xf32>
    %cst_88 = arith.constant 1.000000e+00 : f32
    %440 = vector.broadcast %cst_88 : f32 to vector<8x128xf32>
    %441 = arith.addf %440, %439 : vector<8x128xf32>
    %442 = arith.divf %440, %441 : vector<8x128xf32>
    %443 = vector.extract_strided_slice %432 {offsets = [0, 128], sizes = [8, 128], strides = [1, 1]} : vector<8x384xf32> to vector<8x128xf32>
    %444 = vector.extract_strided_slice %434 {offsets = [0, 128], sizes = [8, 128], strides = [1, 1]} : vector<8x384xf32> to vector<8x128xf32>
    %445 = arith.addf %443, %444 : vector<8x128xf32>
    %446 = arith.negf %445 : vector<8x128xf32>
    %447 = math.exp %446 : vector<8x128xf32>
    %cst_89 = arith.constant 1.000000e+00 : f32
    %448 = vector.broadcast %cst_89 : f32 to vector<8x128xf32>
    %449 = arith.addf %448, %447 : vector<8x128xf32>
    %450 = arith.divf %448, %449 : vector<8x128xf32>
    %451 = vector.extract_strided_slice %432 {offsets = [0, 256], sizes = [8, 128], strides = [1, 1]} : vector<8x384xf32> to vector<8x128xf32>
    %452 = vector.extract_strided_slice %434 {offsets = [0, 256], sizes = [8, 128], strides = [1, 1]} : vector<8x384xf32> to vector<8x128xf32>
    %453 = arith.addf %452, %11 : vector<8x128xf32>
    %454 = arith.mulf %442, %453 : vector<8x128xf32>
    %455 = arith.addf %451, %454 : vector<8x128xf32>
    %456 = math.tanh %455 : vector<8x128xf32>
    %cst_90 = arith.constant 1.000000e+00 : f32
    %457 = vector.broadcast %cst_90 : f32 to vector<8x128xf32>
    %458 = arith.subf %457, %450 : vector<8x128xf32>
    %459 = arith.mulf %458, %456 : vector<8x128xf32>
    %460 = arith.mulf %450, %402 : vector<8x128xf32>
    %461 = arith.addf %459, %460 : vector<8x128xf32>
    %c7_i32_91 = arith.constant 7 : i32
    %462 = tpu.concatenate %461, %428 in 1 : vector<8x128xf32>, vector<8x128xf32> -> vector<8x256xf32>
    %463 = arith.truncf %462 : vector<8x256xf32> to vector<8x256xbf16>
    %cst_92 = arith.constant dense<0.000000e+00> : vector<8x512xf32>
    %464 = tpu.matmul %463, %8, %cst_92 {dimension_numbers = #tpu.dot_dimension_numbers<[1], [0], [0], [1], [0, 0, 1, 1], [], []>} : vector<8x256xbf16>, vector<256x512xbf16>, vector<8x512xf32> -> vector<8x512xf32>
    %465 = arith.addf %464, %14 : vector<8x512xf32>
    %466 = vector.extract_strided_slice %465 {offsets = [0, 0], sizes = [8, 128], strides = [1, 1]} : vector<8x512xf32> to vector<8x128xf32>
    %467 = arith.negf %466 : vector<8x128xf32>
    %468 = math.exp %467 : vector<8x128xf32>
    %cst_93 = arith.constant 1.000000e+00 : f32
    %469 = vector.broadcast %cst_93 : f32 to vector<8x128xf32>
    %470 = arith.addf %469, %468 : vector<8x128xf32>
    %471 = arith.divf %469, %470 : vector<8x128xf32>
    %472 = vector.extract_strided_slice %465 {offsets = [0, 128], sizes = [8, 128], strides = [1, 1]} : vector<8x512xf32> to vector<8x128xf32>
    %473 = arith.negf %472 : vector<8x128xf32>
    %474 = math.exp %473 : vector<8x128xf32>
    %cst_94 = arith.constant 1.000000e+00 : f32
    %475 = vector.broadcast %cst_94 : f32 to vector<8x128xf32>
    %476 = arith.addf %475, %474 : vector<8x128xf32>
    %477 = arith.divf %475, %476 : vector<8x128xf32>
    %478 = vector.extract_strided_slice %465 {offsets = [0, 256], sizes = [8, 128], strides = [1, 1]} : vector<8x512xf32> to vector<8x128xf32>
    %479 = vector.extract_strided_slice %465 {offsets = [0, 384], sizes = [8, 128], strides = [1, 1]} : vector<8x512xf32> to vector<8x128xf32>
    %480 = arith.mulf %471, %479 : vector<8x128xf32>
    %481 = arith.addf %478, %480 : vector<8x128xf32>
    %482 = math.tanh %481 : vector<8x128xf32>
    %cst_95 = arith.constant 1.000000e+00 : f32
    %483 = vector.broadcast %cst_95 : f32 to vector<8x128xf32>
    %484 = arith.subf %483, %477 : vector<8x128xf32>
    %485 = arith.mulf %484, %482 : vector<8x128xf32>
    %486 = arith.mulf %477, %428 : vector<8x128xf32>
    %487 = arith.addf %485, %486 : vector<8x128xf32>
    %488 = arith.truncf %487 : vector<8x128xf32> to vector<8x128xbf16>
    %c0_96 = arith.constant 0 : index
    %c0_97 = arith.constant 0 : index
    %489 = vector.load %arg7[%c0_96, %c0_97] : memref<128x128xbf16, #tpu.memory_space<vmem>>, vector<128x128xbf16>
    %cst_98 = arith.constant dense<0.000000e+00> : vector<8x128xf32>
    %490 = tpu.matmul %488, %489, %cst_98 {dimension_numbers = #tpu.dot_dimension_numbers<[1], [0], [0], [1], [0, 0, 1, 1], [], []>} : vector<8x128xbf16>, vector<128x128xbf16>, vector<8x128xf32> -> vector<8x128xf32>
    %c0_99 = arith.constant 0 : index
    %c0_100 = arith.constant 0 : index
    %491 = vector.load %arg8[%c0_99, %c0_100] : memref<1x128xf32, #tpu.memory_space<vmem>>, vector<1x128xf32>
    %492 = vector.broadcast %491 : vector<1x128xf32> to vector<8x128xf32>
    %493 = arith.addf %490, %492 : vector<8x128xf32>
    %c0_101 = arith.constant 0 : index
    %c0_102 = arith.constant 0 : index
    %494 = vector.load %arg9[%c0_101, %c0_102] : memref<8x128xf32, #tpu.memory_space<vmem>>, vector<8x128xf32>
    tpu.vector_store %arg9[%c0_101, %c0_102], %493 {strides = array<i32>} : memref<8x128xf32, #tpu.memory_space<vmem>>, vector<8x128xf32>,
    return
  }
}

</mosaic_0001>

<llo_original>
// kernel: gru_model.1
$region0: #{gru_model.1}
  #allocation0 [shape = 'u32[]', space=smem, size = 0x4, offset = 0x4, fixed_abs, tag = 'smem constant byte address 0x4 - core index']
  #allocation1 [shape = 'u32[72,128]{1,0:T(1,128)}', space=vmem, size = 0x9000, scoped, tag = 'internal scratch']
  #allocation2 [shape = 'f32[64,384]{1,0:T(8,128)}', space=vmem, size = 0x18000, scoped, tag = 'scratch operand']
  %s0 = inlined_call_operand.vmem [shape: bf16[64,32], index: 0, kind: input, shape index: {}]
  %s1 = inlined_call_operand.vmem [shape: bf16[32,384], index: 1, kind: input, shape index: {}]
  %s2 = inlined_call_operand.vmem [shape: bf16[128,384], index: 2, kind: input, shape index: {}]
  %s3 = inlined_call_operand.vmem [shape: f32[1,384], index: 3, kind: input, shape index: {}]
  %s4 = inlined_call_operand.vmem [shape: f32[1,128], index: 4, kind: input, shape index: {}]
  %s5 = inlined_call_operand.vmem [shape: bf16[256,512], index: 5, kind: input, shape index: {}]
  %s6 = inlined_call_operand.vmem [shape: f32[1,512], index: 6, kind: input, shape index: {}]
  %s7 = inlined_call_operand.vmem [shape: bf16[128,128], index: 7, kind: input, shape index: {}]
  %s8 = inlined_call_operand.vmem [shape: f32[1,128], index: 8, kind: input, shape index: {}]
  %s9 = inlined_call_operand.vmem [shape: f32[8,128], index: 9, kind: output, shape index: {}]
  %s10 = sld [smem:[#allocation0]]
  $region46: #{gru_model.1} parent=0
    _
  %s12 = ssub.s32 1, %s10
  %s13 = scalar_select 0, %s12, %s10
  // Predicated region
  $region2: #{gru_model.1} parent=0 // pred_check
    _
  $region3: #{gru_model.1} parent=0 // pred_check_branch
    %15 = sbr.rel (0) target = $region5
  $region4: #{gru_model.1} parent=0 // pred_region
    _
  $region5: #{gru_model.1} parent=0 // pred_fallthru
    _
  // Predicated region
  $region6: #{gru_model.1} parent=0 // pred_check
    _
  $region7: #{gru_model.1} parent=0 // pred_check_branch
    %17 = sbr.rel (0) target = $region9
  $region8: #{gru_model.1} parent=0 // pred_region
    _
  $region9: #{gru_model.1} parent=0 // pred_fallthru
    _
  // Predicated region
  $region10: #{gru_model.1} parent=0 // pred_check
    _
  $region11: #{gru_model.1} parent=0 // pred_check_branch
    %19 = sbr.rel (0) target = $region13
  $region12: #{gru_model.1} parent=0 // pred_region
    _
  $region13: #{gru_model.1} parent=0 // pred_fallthru
    _
  // Predicated region
  $region14: #{gru_model.1} parent=0 // pred_check
    _
  $region15: #{gru_model.1} parent=0 // pred_check_branch
    %21 = sbr.rel (0) target = $region17
  $region16: #{gru_model.1} parent=0 // pred_region
    _
  $region17: #{gru_model.1} parent=0 // pred_fallthru
    _
  // Predicated region
  $region18: #{gru_model.1} parent=0 // pred_check
    _
  $region19: #{gru_model.1} parent=0 // pred_check_branch
    %23 = sbr.rel (0) target = $region21
  $region20: #{gru_model.1} parent=0 // pred_region
    _
  $region21: #{gru_model.1} parent=0 // pred_fallthru
    _
  // Predicated region
  $region22: #{gru_model.1} parent=0 // pred_check
    _
  $region23: #{gru_model.1} parent=0 // pred_check_branch
    %25 = sbr.rel (0) target = $region25
  $region24: #{gru_model.1} parent=0 // pred_region
    _
  $region25: #{gru_model.1} parent=0 // pred_fallthru
    _
  // Predicated region
  $region26: #{gru_model.1} parent=0 // pred_check
    _
  $region27: #{gru_model.1} parent=0 // pred_check_branch
    %27 = sbr.rel (0) target = $region29
  $region28: #{gru_model.1} parent=0 // pred_region
    _
  $region29: #{gru_model.1} parent=0 // pred_fallthru
    _
  // Predicated region
  $region30: #{gru_model.1} parent=0 // pred_check
    _
  $region31: #{gru_model.1} parent=0 // pred_check_branch
    %29 = sbr.rel (0) target = $region33
  $region32: #{gru_model.1} parent=0 // pred_region
    _
  $region33: #{gru_model.1} parent=0 // pred_fallthru
    _
  // Predicated region
  $region34: #{gru_model.1} parent=0 // pred_check
    _
  $region35: #{gru_model.1} parent=0 // pred_check_branch
    %31 = sbr.rel (0) target = $region37
  $region36: #{gru_model.1} parent=0 // pred_region
    _
  $region37: #{gru_model.1} parent=0 // pred_fallthru
    _
  %v33 = vld [vmem:[%s0] sm:$0xf]
  %v34 = vld [vmem:[%s0 + $0x4] sm:$0xf]
  %v35 = vld [vmem:[%s0 + $0x8] sm:$0xf]
  %v36 = vld [vmem:[%s0 + $0xc] sm:$0xf]
  %v37 = vld [vmem:[%s0 + $0x10] sm:$0xf]
  %v38 = vld [vmem:[%s0 + $0x14] sm:$0xf]
  %v39 = vld [vmem:[%s0 + $0x18] sm:$0xf]
  %v40 = vld [vmem:[%s0 + $0x1c] sm:$0xf]
  %v41 = vld [vmem:[%s1] sm:$0xff]
  %v42 = vld [vmem:[%s1 + $0x8] sm:$0xf]
  %v43 = vld [vmem:[%s1 + $0xc] sm:$0xff]
  %v44 = vld [vmem:[%s1 + $0x14] sm:$0xf]
  %v45 = vld [vmem:[%s1 + $0x18] sm:$0xff]
  %v46 = vld [vmem:[%s1 + $0x20] sm:$0xf]
  %v47 = vld [vmem:[%s1 + $0x24] sm:$0xff]
  %v48 = vld [vmem:[%s1 + $0x2c] sm:$0xf]
  %v49 = vld [vmem:[%s3] sm:$0x7]
  %v51 = vperm.slane %v49, 0
  %v52 = vperm.slane %v49, 1
  %v53 = vperm.slane %v49, 2
  %v65 = vunpack.c.l.b16 %v33
  %v66 = vunpack.c.l.b16 %v34
  %v67 = vunpack.c.l.b16 %v35
  %v68 = vunpack.c.l.b16 %v36
  %v69 = vunpack.c.l.b16 %v37
  %v70 = vunpack.c.l.b16 %v38
  %v71 = vunpack.c.l.b16 %v39
  %v72 = vunpack.c.l.b16 %v40
  %v73 = vpack.c.b16 %v66, %v65
  %v74 = vpack.c.b16 %v68, %v67
  %v75 = vpack.c.b16 %v70, %v69
  %v76 = vpack.c.b16 %v72, %v71
  %v85 = vunpack.c.l.b16 %v41
  %v86 = vunpack.c.h.b16 %v41
  %v87 = vunpack.c.l.b16 %v42
  %v88 = vunpack.c.l.b16 %v43
  %v89 = vunpack.c.h.b16 %v43
  %v90 = vunpack.c.l.b16 %v44
  %v91 = vunpack.c.l.b16 %v45
  %v92 = vunpack.c.h.b16 %v45
  %v93 = vunpack.c.l.b16 %v46
  %v94 = vunpack.c.l.b16 %v47
  %v95 = vunpack.c.h.b16 %v47
  %v96 = vunpack.c.l.b16 %v48
  %v97 = vpack.c.b16 %v88, %v85
  %v98 = vpack.c.b16 %v89, %v86
  %v99 = vpack.c.b16 %v90, %v87
  %v100 = vpack.c.b16 %v94, %v91
  %v101 = vpack.c.b16 %v95, %v92
  %v102 = vpack.c.b16 %v96, %v93
  %vm109 = vcmask 261120
  %v111 = vsel %vm109, %v73, 0
  %v114 = vsel %vm109, %v74, 0
  %v117 = vsel %vm109, %v75, 0
  %v120 = vsel %vm109, %v76, 0
  %122 = vmatpush.bf16.msra.mxu0 0
  %123 = vmatpush.bf16.msra.mxu0 0
  %124 = vmatpush.bf16.msra.mxu0 0
  %125 = vmatpush.bf16.msra.mxu0 0
  %126 = vmatpush.bf16.msra.mxu0 0
  %127 = vmatpush.bf16.msra.mxu0 0
  %128 = vmatpush.bf16.msra.mxu0 %v100
  %129 = vmatpush.bf16.msra.mxu0 %v97
  %130 = vmatmul.bf16.gmra.mxu0 %v111
  %v131 = vpop.f32.mrf.mxu0
  %v132 = vadd.f32 %v51, %v131
  %v133 = vpop.f32.mrf.mxu0
  %v134 = vadd.f32 %v51, %v133
  %135 = vmatmul.bf16.gmra.mxu0 %v114
  %v136 = vpop.f32.mrf.mxu0
  %v137 = vadd.f32 %v51, %v136
  %v138 = vpop.f32.mrf.mxu0
  %v139 = vadd.f32 %v51, %v138
  %140 = vmatmul.bf16.gmra.mxu0 %v117
  %v141 = vpop.f32.mrf.mxu0
  %v142 = vadd.f32 %v51, %v141
  %v143 = vpop.f32.mrf.mxu0
  %v144 = vadd.f32 %v51, %v143
  %145 = vmatmul.bf16.gmra.mxu0 %v120
  %v146 = vpop.f32.mrf.mxu0
  %v147 = vadd.f32 %v51, %v146
  %v148 = vpop.f32.mrf.mxu0
  %v149 = vadd.f32 %v51, %v148
  %150 = vdwg.mxu0
  %151 = vmatpush.bf16.msra.mxu0 0
  %152 = vmatpush.bf16.msra.mxu0 0
  %153 = vmatpush.bf16.msra.mxu0 0
  %154 = vmatpush.bf16.msra.mxu0 0
  %155 = vmatpush.bf16.msra.mxu0 0
  %156 = vmatpush.bf16.msra.mxu0 0
  %157 = vmatpush.bf16.msra.mxu0 %v101
  %158 = vmatpush.bf16.msra.mxu0 %v98
  %159 = vmatmul.bf16.gmra.mxu0 %v111
  %v160 = vpop.f32.mrf.mxu0
  %v161 = vadd.f32 %v52, %v160
  %v162 = vpop.f32.mrf.mxu0
  %v163 = vadd.f32 %v52, %v162
  %164 = vmatmul.bf16.gmra.mxu0 %v114
  %v165 = vpop.f32.mrf.mxu0
  %v166 = vadd.f32 %v52, %v165
  %v167 = vpop.f32.mrf.mxu0
  %v168 = vadd.f32 %v52, %v167
  %169 = vmatmul.bf16.gmra.mxu0 %v117
  %v170 = vpop.f32.mrf.mxu0
  %v171 = vadd.f32 %v52, %v170
  %v172 = vpop.f32.mrf.mxu0
  %v173 = vadd.f32 %v52, %v172
  %174 = vmatmul.bf16.gmra.mxu0 %v120
  %v175 = vpop.f32.mrf.mxu0
  %v176 = vadd.f32 %v52, %v175
  %v177 = vpop.f32.mrf.mxu0
  %v178 = vadd.f32 %v52, %v177
  %179 = vdwg.mxu0
  %180 = vmatpush.bf16.msra.mxu0 0
  %181 = vmatpush.bf16.msra.mxu0 0
  %182 = vmatpush.bf16.msra.mxu0 0
  %183 = vmatpush.bf16.msra.mxu0 0
  %184 = vmatpush.bf16.msra.mxu0 0
  %185 = vmatpush.bf16.msra.mxu0 0
  %186 = vmatpush.bf16.msra.mxu0 %v102
  %187 = vmatpush.bf16.msra.mxu0 %v99
  %188 = vmatmul.bf16.gmra.mxu0 %v111
  %v189 = vpop.f32.mrf.mxu0
  %v190 = vadd.f32 %v53, %v189
  %v191 = vpop.f32.mrf.mxu0
  %v192 = vadd.f32 %v53, %v191
  %193 = vmatmul.bf16.gmra.mxu0 %v114
  %v194 = vpop.f32.mrf.mxu0
  %v195 = vadd.f32 %v53, %v194
  %v196 = vpop.f32.mrf.mxu0
  %v197 = vadd.f32 %v53, %v196
  %198 = vmatmul.bf16.gmra.mxu0 %v117
  %v199 = vpop.f32.mrf.mxu0
  %v200 = vadd.f32 %v53, %v199
  %v201 = vpop.f32.mrf.mxu0
  %v202 = vadd.f32 %v53, %v201
  %203 = vmatmul.bf16.gmra.mxu0 %v120
  %v204 = vpop.f32.mrf.mxu0
  %v205 = vadd.f32 %v53, %v204
  %v206 = vpop.f32.mrf.mxu0
  %v207 = vadd.f32 %v53, %v206
  %208 = vdwg.mxu0
  %209 = vst [vmem:[#allocation2] sm:$0xff] %v132
  %210 = vst [vmem:[#allocation2 + $0x8] sm:$0xff] %v161
  %211 = vst [vmem:[#allocation2 + $0x10] sm:$0xff] %v190
  %212 = vst [vmem:[#allocation2 + $0x18] sm:$0xff] %v134
  %213 = vst [vmem:[#allocation2 + $0x20] sm:$0xff] %v163
  %214 = vst [vmem:[#allocation2 + $0x28] sm:$0xff] %v192
  %215 = vst [vmem:[#allocation2 + $0x30] sm:$0xff] %v137
  %216 = vst [vmem:[#allocation2 + $0x38] sm:$0xff] %v166
  %217 = vst [vmem:[#allocation2 + $0x40] sm:$0xff] %v195
  %218 = vst [vmem:[#allocation2 + $0x48] sm:$0xff] %v139
  %219 = vst [vmem:[#allocation2 + $0x50] sm:$0xff] %v168
  %220 = vst [vmem:[#allocation2 + $0x58] sm:$0xff] %v197
  %221 = vst [vmem:[#allocation2 + $0x60] sm:$0xff] %v142
  %222 = vst [vmem:[#allocation2 + $0x68] sm:$0xff] %v171
  %223 = vst [vmem:[#allocation2 + $0x70] sm:$0xff] %v200
  %224 = vst [vmem:[#allocation2 + $0x78] sm:$0xff] %v144
  %225 = vst [vmem:[#allocation2 + $0x80] sm:$0xff] %v173
  %226 = vst [vmem:[#allocation2 + $0x88] sm:$0xff] %v202
  %227 = vst [vmem:[#allocation2 + $0x90] sm:$0xff] %v147
  %228 = vst [vmem:[#allocation2 + $0x98] sm:$0xff] %v176
  %229 = vst [vmem:[#allocation2 + $0xa0] sm:$0xff] %v205
  %230 = vst [vmem:[#allocation2 + $0xa8] sm:$0xff] %v149
  %231 = vst [vmem:[#allocation2 + $0xb0] sm:$0xff] %v178
  %232 = vst [vmem:[#allocation2 + $0xb8] sm:$0xff] %v207
  %v233 = vld [vmem:[%s2] sm:$0xff]
  %v234 = vld [vmem:[%s2 + $0x8] sm:$0xf]
  %v235 = vld [vmem:[%s2 + $0xc] sm:$0xff]
  %v236 = vld [vmem:[%s2 + $0x14] sm:$0xf]
  %v237 = vld [vmem:[%s2 + $0x18] sm:$0xff]
  %v238 = vld [vmem:[%s2 + $0x20] sm:$0xf]
  %v239 = vld [vmem:[%s2 + $0x24] sm:$0xff]
  %v240 = vld [vmem:[%s2 + $0x2c] sm:$0xf]
  %v241 = vld [vmem:[%s2 + $0x30] sm:$0xff]
  %v242 = vld [vmem:[%s2 + $0x38] sm:$0xf]
  %v243 = vld [vmem:[%s2 + $0x3c] sm:$0xff]
  %v244 = vld [vmem:[%s2 + $0x44] sm:$0xf]
  %v245 = vld [vmem:[%s2 + $0x48] sm:$0xff]
  %v246 = vld [vmem:[%s2 + $0x50] sm:$0xf]
  %v247 = vld [vmem:[%s2 + $0x54] sm:$0xff]
  %v248 = vld [vmem:[%s2 + $0x5c] sm:$0xf]
  %v249 = vld [vmem:[%s2 + $0x60] sm:$0xff]
  %v250 = vld [vmem:[%s2 + $0x68] sm:$0xf]
  %v251 = vld [vmem:[%s2 + $0x6c] sm:$0xff]
  %v252 = vld [vmem:[%s2 + $0x74] sm:$0xf]
  %v253 = vld [vmem:[%s2 + $0x78] sm:$0xff]
  %v254 = vld [vmem:[%s2 + $0x80] sm:$0xf]
  %v255 = vld [vmem:[%s2 + $0x84] sm:$0xff]
  %v256 = vld [vmem:[%s2 + $0x8c] sm:$0xf]
  %v257 = vld [vmem:[%s2 + $0x90] sm:$0xff]
  %v258 = vld [vmem:[%s2 + $0x98] sm:$0xf]
  %v259 = vld [vmem:[%s2 + $0x9c] sm:$0xff]
  %v260 = vld [vmem:[%s2 + $0xa4] sm:$0xf]
  %v261 = vld [vmem:[%s2 + $0xa8] sm:$0xff]
  %v262 = vld [vmem:[%s2 + $0xb0] sm:$0xf]
  %v263 = vld [vmem:[%s2 + $0xb4] sm:$0xff]
  %v264 = vld [vmem:[%s2 + $0xbc] sm:$0xf]
  %v265 = vld [vmem:[%s5] sm:$0xff]
  %v266 = vld [vmem:[%s5 + $0x8] sm:$0xff]
  %v267 = vld [vmem:[%s5 + $0x10] sm:$0xff]
  %v268 = vld [vmem:[%s5 + $0x18] sm:$0xff]
  %v269 = vld [vmem:[%s5 + $0x20] sm:$0xff]
  %v270 = vld [vmem:[%s5 + $0x28] sm:$0xff]
  %v271 = vld [vmem:[%s5 + $0x30] sm:$0xff]
  %v272 = vld [vmem:[%s5 + $0x38] sm:$0xff]
  %v273 = vld [vmem:[%s5 + $0x40] sm:$0xff]
  %v274 = vld [vmem:[%s5 + $0x48] sm:$0xff]
  %v275 = vld [vmem:[%s5 + $0x50] sm:$0xff]
  %v276 = vld [vmem:[%s5 + $0x58] sm:$0xff]
  %v277 = vld [vmem:[%s5 + $0x60] sm:$0xff]
  %v278 = vld [vmem:[%s5 + $0x68] sm:$0xff]
  %v279 = vld [vmem:[%s5 + $0x70] sm:$0xff]
  %v280 = vld [vmem:[%s5 + $0x78] sm:$0xff]
  %v281 = vld [vmem:[%s5 + $0x80] sm:$0xff]
  %v282 = vld [vmem:[%s5 + $0x88] sm:$0xff]
  %v283 = vld [vmem:[%s5 + $0x90] sm:$0xff]
  %v284 = vld [vmem:[%s5 + $0x98] sm:$0xff]
  %v285 = vld [vmem:[%s5 + $0xa0] sm:$0xff]
  %v286 = vld [vmem:[%s5 + $0xa8] sm:$0xff]
  %v287 = vld [vmem:[%s5 + $0xb0] sm:$0xff]
  %v288 = vld [vmem:[%s5 + $0xb8] sm:$0xff]
  %v289 = vld [vmem:[%s5 + $0xc0] sm:$0xff]
  %v290 = vld [vmem:[%s5 + $0xc8] sm:$0xff]
  %v291 = vld [vmem:[%s5 + $0xd0] sm:$0xff]
  %v292 = vld [vmem:[%s5 + $0xd8] sm:$0xff]
  %v293 = vld [vmem:[%s5 + $0xe0] sm:$0xff]
  %v294 = vld [vmem:[%s5 + $0xe8] sm:$0xff]
  %v295 = vld [vmem:[%s5 + $0xf0] sm:$0xff]
  %v296 = vld [vmem:[%s5 + $0xf8] sm:$0xff]
  %v297 = vld [vmem:[%s5 + $0x100] sm:$0xff]
  %v298 = vld [vmem:[%s5 + $0x108] sm:$0xff]
  %v299 = vld [vmem:[%s5 + $0x110] sm:$0xff]
  %v300 = vld [vmem:[%s5 + $0x118] sm:$0xff]
  %v301 = vld [vmem:[%s5 + $0x120] sm:$0xff]
  %v302 = vld [vmem:[%s5 + $0x128] sm:$0xff]
  %v303 = vld [vmem:[%s5 + $0x130] sm:$0xff]
  %v304 = vld [vmem:[%s5 + $0x138] sm:$0xff]
  %v305 = vld [vmem:[%s5 + $0x140] sm:$0xff]
  %v306 = vld [vmem:[%s5 + $0x148] sm:$0xff]
  %v307 = vld [vmem:[%s5 + $0x150] sm:$0xff]
  %v308 = vld [vmem:[%s5 + $0x158] sm:$0xff]
  %v309 = vld [vmem:[%s5 + $0x160] sm:$0xff]
  %v310 = vld [vmem:[%s5 + $0x168] sm:$0xff]
  %v311 = vld [vmem:[%s5 + $0x170] sm:$0xff]
  %v312 = vld [vmem:[%s5 + $0x178] sm:$0xff]
  %v313 = vld [vmem:[%s5 + $0x180] sm:$0xff]
  %v314 = vld [vmem:[%s5 + $0x188] sm:$0xff]
  %v315 = vld [vmem:[%s5 + $0x190] sm:$0xff]
  %v316 = vld [vmem:[%s5 + $0x198] sm:$0xff]
  %v317 = vld [vmem:[%s5 + $0x1a0] sm:$0xff]
  %v318 = vld [vmem:[%s5 + $0x1a8] sm:$0xff]
  %v319 = vld [vmem:[%s5 + $0x1b0] sm:$0xff]
  %v320 = vld [vmem:[%s5 + $0x1b8] sm:$0xff]
  %v321 = vld [vmem:[%s5 + $0x1c0] sm:$0xff]
  %v322 = vld [vmem:[%s5 + $0x1c8] sm:$0xff]
  %v323 = vld [vmem:[%s5 + $0x1d0] sm:$0xff]
  %v324 = vld [vmem:[%s5 + $0x1d8] sm:$0xff]
  %v325 = vld [vmem:[%s5 + $0x1e0] sm:$0xff]
  %v326 = vld [vmem:[%s5 + $0x1e8] sm:$0xff]
  %v327 = vld [vmem:[%s5 + $0x1f0] sm:$0xff]
  %v328 = vld [vmem:[%s5 + $0x1f8] sm:$0xff]
  %v329 = vld [vmem:[%s4] sm:$0x1]
  %v331 = vperm.slane %v329, 0
  %v333 = vld [vmem:[%s6] sm:$0xf]
  %v335 = vperm.slane %v333, 0
  %v336 = vperm.slane %v333, 1
  %v337 = vperm.slane %v333, 2
  %v338 = vperm.slane %v333, 3
  %s343 = smul.u32 0, 3
  %s344 = smul.addr %s343, 8
  %s345 = scalar_lea.vmem [#allocation2], %s344
  %v346 = vld [vmem:[%s345] sm:$0xff]
  %v347 = vld [vmem:[%s345 + $0x8] sm:$0xff]
  %v348 = vld [vmem:[%s345 + $0x10] sm:$0xff]
  %v381 = vunpack.c.l.b16 %v233
  %v382 = vunpack.c.h.b16 %v233
  %v383 = vunpack.c.l.b16 %v234
  %v384 = vunpack.c.l.b16 %v235
  %v385 = vunpack.c.h.b16 %v235
  %v386 = vunpack.c.l.b16 %v236
  %v387 = vunpack.c.l.b16 %v237
  %v388 = vunpack.c.h.b16 %v237
  %v389 = vunpack.c.l.b16 %v238
  %v390 = vunpack.c.l.b16 %v239
  %v391 = vunpack.c.h.b16 %v239
  %v392 = vunpack.c.l.b16 %v240
  %v393 = vunpack.c.l.b16 %v241
  %v394 = vunpack.c.h.b16 %v241
  %v395 = vunpack.c.l.b16 %v242
  %v396 = vunpack.c.l.b16 %v243
  %v397 = vunpack.c.h.b16 %v243
  %v398 = vunpack.c.l.b16 %v244
  %v399 = vunpack.c.l.b16 %v245
  %v400 = vunpack.c.h.b16 %v245
  %v401 = vunpack.c.l.b16 %v246
  %v402 = vunpack.c.l.b16 %v247
  %v403 = vunpack.c.h.b16 %v247
  %v404 = vunpack.c.l.b16 %v248
  %v405 = vunpack.c.l.b16 %v249
  %v406 = vunpack.c.h.b16 %v249
  %v407 = vunpack.c.l.b16 %v250
  %v408 = vunpack.c.l.b16 %v251
  %v409 = vunpack.c.h.b16 %v251
  %v410 = vunpack.c.l.b16 %v252
  %v411 = vunpack.c.l.b16 %v253
  %v412 = vunpack.c.h.b16 %v253
  %v413 = vunpack.c.l.b16 %v254
  %v414 = vunpack.c.l.b16 %v255
  %v415 = vunpack.c.h.b16 %v255
  %v416 = vunpack.c.l.b16 %v256
  %v417 = vunpack.c.l.b16 %v257
  %v418 = vunpack.c.h.b16 %v257
  %v419 = vunpack.c.l.b16 %v258
  %v420 = vunpack.c.l.b16 %v259
  %v421 = vunpack.c.h.b16 %v259
  %v422 = vunpack.c.l.b16 %v260
  %v423 = vunpack.c.l.b16 %v261
  %v424 = vunpack.c.h.b16 %v261
  %v425 = vunpack.c.l.b16 %v262
  %v426 = vunpack.c.l.b16 %v263
  %v427 = vunpack.c.h.b16 %v263
  %v428 = vunpack.c.l.b16 %v264
  %v429 = vpack.c.b16 %v384, %v381
  %v430 = vpack.c.b16 %v385, %v382
  %v431 = vpack.c.b16 %v386, %v383
  %v432 = vpack.c.b16 %v390, %v387
  %v433 = vpack.c.b16 %v391, %v388
  %v434 = vpack.c.b16 %v392, %v389
  %v435 = vpack.c.b16 %v396, %v393
  %v436 = vpack.c.b16 %v397, %v394
  %v437 = vpack.c.b16 %v398, %v395
  %v438 = vpack.c.b16 %v402, %v399
  %v439 = vpack.c.b16 %v403, %v400
  %v440 = vpack.c.b16 %v404, %v401
  %v441 = vpack.c.b16 %v408, %v405
  %v442 = vpack.c.b16 %v409, %v406
  %v443 = vpack.c.b16 %v410, %v407
  %v444 = vpack.c.b16 %v414, %v411
  %v445 = vpack.c.b16 %v415, %v412
  %v446 = vpack.c.b16 %v416, %v413
  %v447 = vpack.c.b16 %v420, %v417
  %v448 = vpack.c.b16 %v421, %v418
  %v449 = vpack.c.b16 %v422, %v419
  %v450 = vpack.c.b16 %v426, %v423
  %v451 = vpack.c.b16 %v427, %v424
  %v452 = vpack.c.b16 %v428, %v425
  %477 = vmatpush.bf16.msra.mxu0 %v450
  %478 = vmatpush.bf16.msra.mxu0 %v447
  %479 = vmatpush.bf16.msra.mxu0 %v444
  %480 = vmatpush.bf16.msra.mxu0 %v441
  %481 = vmatpush.bf16.msra.mxu0 %v438
  %482 = vmatpush.bf16.msra.mxu0 %v435
  %483 = vmatpush.bf16.msra.mxu0 %v432
  %484 = vmatpush.bf16.msra.mxu0 %v429
  %485 = vmatmul.bf16.gmra.mxu0 0
  %v486 = vpop.f32.mrf.mxu0
  %v487 = vadd.f32 0.0, %v486
  %v488 = vpop.f32.mrf.mxu0
  %489 = vdwg.mxu0
  %490 = vmatpush.bf16.msra.mxu0 %v451
  %491 = vmatpush.bf16.msra.mxu0 %v448
  %492 = vmatpush.bf16.msra.mxu0 %v445
  %493 = vmatpush.bf16.msra.mxu0 %v442
  %494 = vmatpush.bf16.msra.mxu0 %v439
  %495 = vmatpush.bf16.msra.mxu0 %v436
  %496 = vmatpush.bf16.msra.mxu0 %v433
  %497 = vmatpush.bf16.msra.mxu0 %v430
  %498 = vmatmul.bf16.gmra.mxu0 0
  %v499 = vpop.f32.mrf.mxu0
  %v500 = vadd.f32 0.0, %v499
  %v501 = vpop.f32.mrf.mxu0
  %502 = vdwg.mxu0
  %503 = vmatpush.bf16.msra.mxu0 %v452
  %504 = vmatpush.bf16.msra.mxu0 %v449
  %505 = vmatpush.bf16.msra.mxu0 %v446
  %506 = vmatpush.bf16.msra.mxu0 %v443
  %507 = vmatpush.bf16.msra.mxu0 %v440
  %508 = vmatpush.bf16.msra.mxu0 %v437
  %509 = vmatpush.bf16.msra.mxu0 %v434
  %510 = vmatpush.bf16.msra.mxu0 %v431
  %511 = vmatmul.bf16.gmra.mxu0 0
  %v512 = vpop.f32.mrf.mxu0
  %v513 = vadd.f32 0.0, %v512
  %v514 = vpop.f32.mrf.mxu0
  %515 = vdwg.mxu0
  %v516 = vadd.f32 %v346, %v487
  %v517 = vxor.u32 %v516, 2147483648
  %v518 = vmul.f32 %v517, 1.442695
  %v519 = vpow.pop %v518
  %v520 = vadd.f32 %v519, 1.0
  %v521 = vrcp.pop %v520
  %v522 = vmul.f32 %v520, %v521
  %v523 = vsub.f32 1.0, %v522
  %v524 = vmul.f32 %v521, %v523
  %v525 = vadd.f32 %v521, %v524
  %vm526 = vweird.f32 %v520
  %vm527 = vweird.f32 %v521
  %vm528 = vmor %vm526, %vm527
  %v529 = vsel %vm528, %v521, %v525
  %v530 = vand.u32 2147483647, %v520
  %vm531 = vcmp.eq.f32.partialorder %v530, 8.507059e+37
  %v532 = vand.u32 %v520, 2147483648
  %v533 = vor.u32 1.1754944e-38, %v532
  %v534 = vsel %vm531, %v533, %v529
  %v535 = vmul.f32 1.0, %v534
  %v536 = vadd.f32 %v347, %v500
  %v537 = vxor.u32 %v536, 2147483648
  %v538 = vmul.f32 %v537, 1.442695
  %v539 = vpow.pop %v538
  %v540 = vadd.f32 %v539, 1.0
  %v541 = vrcp.pop %v540
  %v542 = vmul.f32 %v540, %v541
  %v543 = vsub.f32 1.0, %v542
  %v544 = vmul.f32 %v541, %v543
  %v545 = vadd.f32 %v541, %v544
  %vm546 = vweird.f32 %v540
  %vm547 = vweird.f32 %v541
  %vm548 = vmor %vm546, %vm547
  %v549 = vsel %vm548, %v541, %v545
  %v550 = vand.u32 2147483647, %v540
  %vm551 = vcmp.eq.f32.partialorder %v550, 8.507059e+37
  %v552 = vand.u32 %v540, 2147483648
  %v553 = vor.u32 1.1754944e-38, %v552
  %v554 = vsel %vm551, %v553, %v549
  %v555 = vmul.f32 1.0, %v554
  %v556 = vadd.f32 %v513, %v331
  %v557 = vmul.f32 %v535, %v556
  %v558 = vadd.f32 %v348, %v557
  %v559 = vtanh.pop %v558
  %v560 = vsub.f32 1.0, %v555
  %v561 = vmul.f32 %v560, %v559
  %v562 = vmul.f32 %v555, 0.0
  %v563 = vadd.f32 %v561, %v562
  %v564 = vpack.c.bf16 %v563, %v563
  %v565 = vpack.c.bf16 0.0, 0.0
  %v630 = vunpack.c.l.b16 %v265
  %v631 = vunpack.c.h.b16 %v265
  %v632 = vunpack.c.l.b16 %v266
  %v633 = vunpack.c.h.b16 %v266
  %v634 = vunpack.c.l.b16 %v267
  %v635 = vunpack.c.h.b16 %v267
  %v636 = vunpack.c.l.b16 %v268
  %v637 = vunpack.c.h.b16 %v268
  %v638 = vunpack.c.l.b16 %v269
  %v639 = vunpack.c.h.b16 %v269
  %v640 = vunpack.c.l.b16 %v270
  %v641 = vunpack.c.h.b16 %v270
  %v642 = vunpack.c.l.b16 %v271
  %v643 = vunpack.c.h.b16 %v271
  %v644 = vunpack.c.l.b16 %v272
  %v645 = vunpack.c.h.b16 %v272
  %v646 = vunpack.c.l.b16 %v273
  %v647 = vunpack.c.h.b16 %v273
  %v648 = vunpack.c.l.b16 %v274
  %v649 = vunpack.c.h.b16 %v274
  %v650 = vunpack.c.l.b16 %v275
  %v651 = vunpack.c.h.b16 %v275
  %v652 = vunpack.c.l.b16 %v276
  %v653 = vunpack.c.h.b16 %v276
  %v654 = vunpack.c.l.b16 %v277
  %v655 = vunpack.c.h.b16 %v277
  %v656 = vunpack.c.l.b16 %v278
  %v657 = vunpack.c.h.b16 %v278
  %v658 = vunpack.c.l.b16 %v279
  %v659 = vunpack.c.h.b16 %v279
  %v660 = vunpack.c.l.b16 %v280
  %v661 = vunpack.c.h.b16 %v280
  %v662 = vunpack.c.l.b16 %v281
  %v663 = vunpack.c.h.b16 %v281
  %v664 = vunpack.c.l.b16 %v282
  %v665 = vunpack.c.h.b16 %v282
  %v666 = vunpack.c.l.b16 %v283
  %v667 = vunpack.c.h.b16 %v283
  %v668 = vunpack.c.l.b16 %v284
  %v669 = vunpack.c.h.b16 %v284
  %v670 = vunpack.c.l.b16 %v285
  %v671 = vunpack.c.h.b16 %v285
  %v672 = vunpack.c.l.b16 %v286
  %v673 = vunpack.c.h.b16 %v286
  %v674 = vunpack.c.l.b16 %v287
  %v675 = vunpack.c.h.b16 %v287
  %v676 = vunpack.c.l.b16 %v288
  %v677 = vunpack.c.h.b16 %v288
  %v678 = vunpack.c.l.b16 %v289
  %v679 = vunpack.c.h.b16 %v289
  %v680 = vunpack.c.l.b16 %v290
  %v681 = vunpack.c.h.b16 %v290
  %v682 = vunpack.c.l.b16 %v291
  %v683 = vunpack.c.h.b16 %v291
  %v684 = vunpack.c.l.b16 %v292
  %v685 = vunpack.c.h.b16 %v292
  %v686 = vunpack.c.l.b16 %v293
  %v687 = vunpack.c.h.b16 %v293
  %v688 = vunpack.c.l.b16 %v294
  %v689 = vunpack.c.h.b16 %v294
  %v690 = vunpack.c.l.b16 %v295
  %v691 = vunpack.c.h.b16 %v295
  %v692 = vunpack.c.l.b16 %v296
  %v693 = vunpack.c.h.b16 %v296
  %v694 = vunpack.c.l.b16 %v297
  %v695 = vunpack.c.h.b16 %v297
  %v696 = vunpack.c.l.b16 %v298
  %v697 = vunpack.c.h.b16 %v298
  %v698 = vunpack.c.l.b16 %v299
  %v699 = vunpack.c.h.b16 %v299
  %v700 = vunpack.c.l.b16 %v300
  %v701 = vunpack.c.h.b16 %v300
  %v702 = vunpack.c.l.b16 %v301
  %v703 = vunpack.c.h.b16 %v301
  %v704 = vunpack.c.l.b16 %v302
  %v705 = vunpack.c.h.b16 %v302
  %v706 = vunpack.c.l.b16 %v303
  %v707 = vunpack.c.h.b16 %v303
  %v708 = vunpack.c.l.b16 %v304
  %v709 = vunpack.c.h.b16 %v304
  %v710 = vunpack.c.l.b16 %v305
  %v711 = vunpack.c.h.b16 %v305
  %v712 = vunpack.c.l.b16 %v306
  %v713 = vunpack.c.h.b16 %v306
  %v714 = vunpack.c.l.b16 %v307
  %v715 = vunpack.c.h.b16 %v307
  %v716 = vunpack.c.l.b16 %v308
  %v717 = vunpack.c.h.b16 %v308
  %v718 = vunpack.c.l.b16 %v309
  %v719 = vunpack.c.h.b16 %v309
  %v720 = vunpack.c.l.b16 %v310
  %v721 = vunpack.c.h.b16 %v310
  %v722 = vunpack.c.l.b16 %v311
  %v723 = vunpack.c.h.b16 %v311
  %v724 = vunpack.c.l.b16 %v312
  %v725 = vunpack.c.h.b16 %v312
  %v726 = vunpack.c.l.b16 %v313
  %v727 = vunpack.c.h.b16 %v313
  %v728 = vunpack.c.l.b16 %v314
  %v729 = vunpack.c.h.b16 %v314
  %v730 = vunpack.c.l.b16 %v315
  %v731 = vunpack.c.h.b16 %v315
  %v732 = vunpack.c.l.b16 %v316
  %v733 = vunpack.c.h.b16 %v316
  %v734 = vunpack.c.l.b16 %v317
  %v735 = vunpack.c.h.b16 %v317
  %v736 = vunpack.c.l.b16 %v318
  %v737 = vunpack.c.h.b16 %v318
  %v738 = vunpack.c.l.b16 %v319
  %v739 = vunpack.c.h.b16 %v319
  %v740 = vunpack.c.l.b16 %v320
  %v741 = vunpack.c.h.b16 %v320
  %v742 = vunpack.c.l.b16 %v321
  %v743 = vunpack.c.h.b16 %v321
  %v744 = vunpack.c.l.b16 %v322
  %v745 = vunpack.c.h.b16 %v322
  %v746 = vunpack.c.l.b16 %v323
  %v747 = vunpack.c.h.b16 %v323
  %v748 = vunpack.c.l.b16 %v324
  %v749 = vunpack.c.h.b16 %v324
  %v750 = vunpack.c.l.b16 %v325
  %v751 = vunpack.c.h.b16 %v325
  %v752 = vunpack.c.l.b16 %v326
  %v753 = vunpack.c.h.b16 %v326
  %v754 = vunpack.c.l.b16 %v327
  %v755 = vunpack.c.h.b16 %v327
  %v756 = vunpack.c.l.b16 %v328
  %v757 = vunpack.c.h.b16 %v328
  %v758 = vpack.c.b16 %v634, %v630
  %v759 = vpack.c.b16 %v635, %v631
  %v760 = vpack.c.b16 %v636, %v632
  %v761 = vpack.c.b16 %v637, %v633
  %v762 = vpack.c.b16 %v642, %v638
  %v763 = vpack.c.b16 %v643, %v639
  %v764 = vpack.c.b16 %v644, %v640
  %v765 = vpack.c.b16 %v645, %v641
  %v766 = vpack.c.b16 %v650, %v646
  %v767 = vpack.c.b16 %v651, %v647
  %v768 = vpack.c.b16 %v652, %v648
  %v769 = vpack.c.b16 %v653, %v649
  %v770 = vpack.c.b16 %v658, %v654
  %v771 = vpack.c.b16 %v659, %v655
  %v772 = vpack.c.b16 %v660, %v656
  %v773 = vpack.c.b16 %v661, %v657
  %v774 = vpack.c.b16 %v666, %v662
  %v775 = vpack.c.b16 %v667, %v663
  %v776 = vpack.c.b16 %v668, %v664
  %v777 = vpack.c.b16 %v669, %v665
  %v778 = vpack.c.b16 %v674, %v670
  %v779 = vpack.c.b16 %v675, %v671
  %v780 = vpack.c.b16 %v676, %v672
  %v781 = vpack.c.b16 %v677, %v673
  %v782 = vpack.c.b16 %v682, %v678
  %v783 = vpack.c.b16 %v683, %v679
  %v784 = vpack.c.b16 %v684, %v680
  %v785 = vpack.c.b16 %v685, %v681
  %v786 = vpack.c.b16 %v690, %v686
  %v787 = vpack.c.b16 %v691, %v687
  %v788 = vpack.c.b16 %v692, %v688
  %v789 = vpack.c.b16 %v693, %v689
  %v790 = vpack.c.b16 %v698, %v694
  %v791 = vpack.c.b16 %v699, %v695
  %v792 = vpack.c.b16 %v700, %v696
  %v793 = vpack.c.b16 %v701, %v697
  %v794 = vpack.c.b16 %v706, %v702
  %v795 = vpack.c.b16 %v707, %v703
  %v796 = vpack.c.b16 %v708, %v704
  %v797 = vpack.c.b16 %v709, %v705
  %v798 = vpack.c.b16 %v714, %v710
  %v799 = vpack.c.b16 %v715, %v711
  %v800 = vpack.c.b16 %v716, %v712
  %v801 = vpack.c.b16 %v717, %v713
  %v802 = vpack.c.b16 %v722, %v718
  %v803 = vpack.c.b16 %v723, %v719
  %v804 = vpack.c.b16 %v724, %v720
  %v805 = vpack.c.b16 %v725, %v721
  %v806 = vpack.c.b16 %v730, %v726
  %v807 = vpack.c.b16 %v731, %v727
  %v808 = vpack.c.b16 %v732, %v728
  %v809 = vpack.c.b16 %v733, %v729
  %v810 = vpack.c.b16 %v738, %v734
  %v811 = vpack.c.b16 %v739, %v735
  %v812 = vpack.c.b16 %v740, %v736
  %v813 = vpack.c.b16 %v741, %v737
  %v814 = vpack.c.b16 %v746, %v742
  %v815 = vpack.c.b16 %v747, %v743
  %v816 = vpack.c.b16 %v748, %v744
  %v817 = vpack.c.b16 %v749, %v745
  %v818 = vpack.c.b16 %v754, %v750
  %v819 = vpack.c.b16 %v755, %v751
  %v820 = vpack.c.b16 %v756, %v752
  %v821 = vpack.c.b16 %v757, %v753
  %886 = vmatpush.bf16.msra.mxu0 %v786
  %887 = vmatpush.bf16.msra.mxu0 %v782
  %888 = vmatpush.bf16.msra.mxu0 %v778
  %889 = vmatpush.bf16.msra.mxu0 %v774
  %890 = vmatpush.bf16.msra.mxu0 %v770
  %891 = vmatpush.bf16.msra.mxu0 %v766
  %892 = vmatpush.bf16.msra.mxu0 %v762
  %893 = vmatpush.bf16.msra.mxu0 %v758
  %894 = vmatmul.bf16.gmra.mxu0 %v564
  %v895 = vpop.f32.mrf.mxu0
  %v896 = vadd.f32 %v335, %v895
  %v897 = vpop.f32.mrf.mxu0
  %898 = vdwg.mxu0
  %899 = vmatpush.bf16.msra.mxu0 %v818
  %900 = vmatpush.bf16.msra.mxu0 %v814
  %901 = vmatpush.bf16.msra.mxu0 %v810
  %902 = vmatpush.bf16.msra.mxu0 %v806
  %903 = vmatpush.bf16.msra.mxu0 %v802
  %904 = vmatpush.bf16.msra.mxu0 %v798
  %905 = vmatpush.bf16.msra.mxu0 %v794
  %906 = vmatpush.bf16.msra.mxu0 %v790
  %907 = vmatmul.bf16.gmra.mxu0 %v565
  %v908 = vpop.f32.mrf.mxu0
  %v909 = vadd.f32 %v896, %v908
  %v910 = vpop.f32.mrf.mxu0
  %911 = vdwg.mxu0
  %912 = vmatpush.bf16.msra.mxu0 %v787
  %913 = vmatpush.bf16.msra.mxu0 %v783
  %914 = vmatpush.bf16.msra.mxu0 %v779
  %915 = vmatpush.bf16.msra.mxu0 %v775
  %916 = vmatpush.bf16.msra.mxu0 %v771
  %917 = vmatpush.bf16.msra.mxu0 %v767
  %918 = vmatpush.bf16.msra.mxu0 %v763
  %919 = vmatpush.bf16.msra.mxu0 %v759
  %920 = vmatmul.bf16.gmra.mxu0 %v564
  %v921 = vpop.f32.mrf.mxu0
  %v922 = vadd.f32 %v336, %v921
  %v923 = vpop.f32.mrf.mxu0
  %924 = vdwg.mxu0
  %925 = vmatpush.bf16.msra.mxu0 %v819
  %926 = vmatpush.bf16.msra.mxu0 %v815
  %927 = vmatpush.bf16.msra.mxu0 %v811
  %928 = vmatpush.bf16.msra.mxu0 %v807
  %929 = vmatpush.bf16.msra.mxu0 %v803
  %930 = vmatpush.bf16.msra.mxu0 %v799
  %931 = vmatpush.bf16.msra.mxu0 %v795
  %932 = vmatpush.bf16.msra.mxu0 %v791
  %933 = vmatmul.bf16.gmra.mxu0 %v565
  %v934 = vpop.f32.mrf.mxu0
  %v935 = vadd.f32 %v922, %v934
  %v936 = vpop.f32.mrf.mxu0
  %937 = vdwg.mxu0
  %938 = vmatpush.bf16.msra.mxu0 %v788
  %939 = vmatpush.bf16.msra.mxu0 %v784
  %940 = vmatpush.bf16.msra.mxu0 %v780
  %941 = vmatpush.bf16.msra.mxu0 %v776
  %942 = vmatpush.bf16.msra.mxu0 %v772
  %943 = vmatpush.bf16.msra.mxu0 %v768
  %944 = vmatpush.bf16.msra.mxu0 %v764
  %945 = vmatpush.bf16.msra.mxu0 %v760
  %946 = vmatmul.bf16.gmra.mxu0 %v564
  %v947 = vpop.f32.mrf.mxu0
  %v948 = vadd.f32 %v337, %v947
  %v949 = vpop.f32.mrf.mxu0
  %950 = vdwg.mxu0
  %951 = vmatpush.bf16.msra.mxu0 %v820
  %952 = vmatpush.bf16.msra.mxu0 %v816
  %953 = vmatpush.bf16.msra.mxu0 %v812
  %954 = vmatpush.bf16.msra.mxu0 %v808
  %955 = vmatpush.bf16.msra.mxu0 %v804
  %956 = vmatpush.bf16.msra.mxu0 %v800
  %957 = vmatpush.bf16.msra.mxu0 %v796
  %958 = vmatpush.bf16.msra.mxu0 %v792
  %959 = vmatmul.bf16.gmra.mxu0 %v565
  %v960 = vpop.f32.mrf.mxu0
  %v961 = vadd.f32 %v948, %v960
  %v962 = vpop.f32.mrf.mxu0
  %963 = vdwg.mxu0
  %964 = vmatpush.bf16.msra.mxu0 %v789
  %965 = vmatpush.bf16.msra.mxu0 %v785
  %966 = vmatpush.bf16.msra.mxu0 %v781
  %967 = vmatpush.bf16.msra.mxu0 %v777
  %968 = vmatpush.bf16.msra.mxu0 %v773
  %969 = vmatpush.bf16.msra.mxu0 %v769
  %970 = vmatpush.bf16.msra.mxu0 %v765
  %971 = vmatpush.bf16.msra.mxu0 %v761
  %972 = vmatmul.bf16.gmra.mxu0 %v564
  %v973 = vpop.f32.mrf.mxu0
  %v974 = vadd.f32 %v338, %v973
  %v975 = vpop.f32.mrf.mxu0
  %976 = vdwg.mxu0
  %977 = vmatpush.bf16.msra.mxu0 %v821
  %978 = vmatpush.bf16.msra.mxu0 %v817
  %979 = vmatpush.bf16.msra.mxu0 %v813
  %980 = vmatpush.bf16.msra.mxu0 %v809
  %981 = vmatpush.bf16.msra.mxu0 %v805
  %982 = vmatpush.bf16.msra.mxu0 %v801
  %983 = vmatpush.bf16.msra.mxu0 %v797
  %984 = vmatpush.bf16.msra.mxu0 %v793
  %985 = vmatmul.bf16.gmra.mxu0 %v565
  %v986 = vpop.f32.mrf.mxu0
  %v987 = vadd.f32 %v974, %v986
  %v988 = vpop.f32.mrf.mxu0
  %989 = vdwg.mxu0
  %v990 = vxor.u32 %v909, 2147483648
  %v991 = vmul.f32 %v990, 1.442695
  %v992 = vpow.pop %v991
  %v993 = vadd.f32 %v992, 1.0
  %v994 = vrcp.pop %v993
  %v995 = vmul.f32 %v993, %v994
  %v996 = vsub.f32 1.0, %v995
  %v997 = vmul.f32 %v994, %v996
  %v998 = vadd.f32 %v994, %v997
  %vm999 = vweird.f32 %v993
  %vm1000 = vweird.f32 %v994
  %vm1001 = vmor %vm999, %vm1000
  %v1002 = vsel %vm1001, %v994, %v998
  %v1003 = vand.u32 2147483647, %v993
  %vm1004 = vcmp.eq.f32.partialorder %v1003, 8.507059e+37
  %v1005 = vand.u32 %v993, 2147483648
  %v1006 = vor.u32 1.1754944e-38, %v1005
  %v1007 = vsel %vm1004, %v1006, %v1002
  %v1008 = vmul.f32 1.0, %v1007
  %v1009 = vxor.u32 %v935, 2147483648
  %v1010 = vmul.f32 %v1009, 1.442695
  %v1011 = vpow.pop %v1010
  %v1012 = vadd.f32 %v1011, 1.0
  %v1013 = vrcp.pop %v1012
  %v1014 = vmul.f32 %v1012, %v1013
  %v1015 = vsub.f32 1.0, %v1014
  %v1016 = vmul.f32 %v1013, %v1015
  %v1017 = vadd.f32 %v1013, %v1016
  %vm1018 = vweird.f32 %v1012
  %vm1019 = vweird.f32 %v1013
  %vm1020 = vmor %vm1018, %vm1019
  %v1021 = vsel %vm1020, %v1013, %v1017
  %v1022 = vand.u32 2147483647, %v1012
  %vm1023 = vcmp.eq.f32.partialorder %v1022, 8.507059e+37
  %v1024 = vand.u32 %v1012, 2147483648
  %v1025 = vor.u32 1.1754944e-38, %v1024
  %v1026 = vsel %vm1023, %v1025, %v1021
  %v1027 = vmul.f32 1.0, %v1026
  %v1028 = vmul.f32 %v1008, %v987
  %v1029 = vadd.f32 %v961, %v1028
  %v1030 = vtanh.pop %v1029
  %v1031 = vsub.f32 1.0, %v1027
  %v1032 = vmul.f32 %v1031, %v1030
  %v1033 = vmul.f32 %v1027, 0.0
  %v1034 = vadd.f32 %v1032, %v1033
  %s1035 = smul.u32 1, 3
  %s1036 = smul.addr %s1035, 8
  %s1037 = scalar_lea.vmem [#allocation2], %s1036
  %v1038 = vld [vmem:[%s1037] sm:$0xff]
  %v1039 = vld [vmem:[%s1037 + $0x8] sm:$0xff]
  %v1040 = vld [vmem:[%s1037 + $0x10] sm:$0xff]
  %1041 = vmatpush.bf16.msra.mxu0 %v450
  %1042 = vmatpush.bf16.msra.mxu0 %v447
  %1043 = vmatpush.bf16.msra.mxu0 %v444
  %1044 = vmatpush.bf16.msra.mxu0 %v441
  %1045 = vmatpush.bf16.msra.mxu0 %v438
  %1046 = vmatpush.bf16.msra.mxu0 %v435
  %1047 = vmatpush.bf16.msra.mxu0 %v432
  %1048 = vmatpush.bf16.msra.mxu0 %v429
  %1049 = vmatmul.bf16.gmra.mxu0 %v564
  %v1050 = vpop.f32.mrf.mxu0
  %v1051 = vadd.f32 0.0, %v1050
  %v1052 = vpop.f32.mrf.mxu0
  %1053 = vdwg.mxu0
  %1054 = vmatpush.bf16.msra.mxu0 %v451
  %1055 = vmatpush.bf16.msra.mxu0 %v448
  %1056 = vmatpush.bf16.msra.mxu0 %v445
  %1057 = vmatpush.bf16.msra.mxu0 %v442
  %1058 = vmatpush.bf16.msra.mxu0 %v439
  %1059 = vmatpush.bf16.msra.mxu0 %v436
  %1060 = vmatpush.bf16.msra.mxu0 %v433
  %1061 = vmatpush.bf16.msra.mxu0 %v430
  %1062 = vmatmul.bf16.gmra.mxu0 %v564
  %v1063 = vpop.f32.mrf.mxu0
  %v1064 = vadd.f32 0.0, %v1063
  %v1065 = vpop.f32.mrf.mxu0
  %1066 = vdwg.mxu0
  %1067 = vmatpush.bf16.msra.mxu0 %v452
  %1068 = vmatpush.bf16.msra.mxu0 %v449
  %1069 = vmatpush.bf16.msra.mxu0 %v446
  %1070 = vmatpush.bf16.msra.mxu0 %v443
  %1071 = vmatpush.bf16.msra.mxu0 %v440
  %1072 = vmatpush.bf16.msra.mxu0 %v437
  %1073 = vmatpush.bf16.msra.mxu0 %v434
  %1074 = vmatpush.bf16.msra.mxu0 %v431
  %1075 = vmatmul.bf16.gmra.mxu0 %v564
  %v1076 = vpop.f32.mrf.mxu0
  %v1077 = vadd.f32 0.0, %v1076
  %v1078 = vpop.f32.mrf.mxu0
  %1079 = vdwg.mxu0
  %v1080 = vadd.f32 %v1038, %v1051
  %v1081 = vxor.u32 %v1080, 2147483648
  %v1082 = vmul.f32 %v1081, 1.442695
  %v1083 = vpow.pop %v1082
  %v1084 = vadd.f32 %v1083, 1.0
  %v1085 = vrcp.pop %v1084
  %v1086 = vmul.f32 %v1084, %v1085
  %v1087 = vsub.f32 1.0, %v1086
  %v1088 = vmul.f32 %v1085, %v1087
  %v1089 = vadd.f32 %v1085, %v1088
  %vm1090 = vweird.f32 %v1084
  %vm1091 = vweird.f32 %v1085
  %vm1092 = vmor %vm1090, %vm1091
  %v1093 = vsel %vm1092, %v1085, %v1089
  %v1094 = vand.u32 2147483647, %v1084
  %vm1095 = vcmp.eq.f32.partialorder %v1094, 8.507059e+37
  %v1096 = vand.u32 %v1084, 2147483648
  %v1097 = vor.u32 1.1754944e-38, %v1096
  %v1098 = vsel %vm1095, %v1097, %v1093
  %v1099 = vmul.f32 1.0, %v1098
  %v1100 = vadd.f32 %v1039, %v1064
  %v1101 = vxor.u32 %v1100, 2147483648
  %v1102 = vmul.f32 %v1101, 1.442695
  %v1103 = vpow.pop %v1102
  %v1104 = vadd.f32 %v1103, 1.0
  %v1105 = vrcp.pop %v1104
  %v1106 = vmul.f32 %v1104, %v1105
  %v1107 = vsub.f32 1.0, %v1106
  %v1108 = vmul.f32 %v1105, %v1107
  %v1109 = vadd.f32 %v1105, %v1108
  %vm1110 = vweird.f32 %v1104
  %vm1111 = vweird.f32 %v1105
  %vm1112 = vmor %vm1110, %vm1111
  %v1113 = vsel %vm1112, %v1105, %v1109
  %v1114 = vand.u32 2147483647, %v1104
  %vm1115 = vcmp.eq.f32.partialorder %v1114, 8.507059e+37
  %v1116 = vand.u32 %v1104, 2147483648
  %v1117 = vor.u32 1.1754944e-38, %v1116
  %v1118 = vsel %vm1115, %v1117, %v1113
  %v1119 = vmul.f32 1.0, %v1118
  %v1120 = vadd.f32 %v1077, %v331
  %v1121 = vmul.f32 %v1099, %v1120
  %v1122 = vadd.f32 %v1040, %v1121
  %v1123 = vtanh.pop %v1122
  %v1124 = vsub.f32 1.0, %v1119
  %v1125 = vmul.f32 %v1124, %v1123
  %v1126 = vmul.f32 %v1119, %v563
  %v1127 = vadd.f32 %v1125, %v1126
  %v1128 = vpack.c.bf16 %v1127, %v1127
  %v1129 = vpack.c.bf16 %v1034, %v1034
  %1130 = vmatpush.bf16.msra.mxu0 %v786
  %1131 = vmatpush.bf16.msra.mxu0 %v782
  %1132 = vmatpush.bf16.msra.mxu0 %v778
  %1133 = vmatpush.bf16.msra.mxu0 %v774
  %1134 = vmatpush.bf16.msra.mxu0 %v770
  %1135 = vmatpush.bf16.msra.mxu0 %v766
  %1136 = vmatpush.bf16.msra.mxu0 %v762
  %1137 = vmatpush.bf16.msra.mxu0 %v758
  %1138 = vmatmul.bf16.gmra.mxu0 %v1128
  %v1139 = vpop.f32.mrf.mxu0
  %v1140 = vadd.f32 %v335, %v1139
  %v1141 = vpop.f32.mrf.mxu0
  %1142 = vdwg.mxu0
  %1143 = vmatpush.bf16.msra.mxu0 %v818
  %1144 = vmatpush.bf16.msra.mxu0 %v814
  %1145 = vmatpush.bf16.msra.mxu0 %v810
  %1146 = vmatpush.bf16.msra.mxu0 %v806
  %1147 = vmatpush.bf16.msra.mxu0 %v802
  %1148 = vmatpush.bf16.msra.mxu0 %v798
  %1149 = vmatpush.bf16.msra.mxu0 %v794
  %1150 = vmatpush.bf16.msra.mxu0 %v790
  %1151 = vmatmul.bf16.gmra.mxu0 %v1129
  %v1152 = vpop.f32.mrf.mxu0
  %v1153 = vadd.f32 %v1140, %v1152
  %v1154 = vpop.f32.mrf.mxu0
  %1155 = vdwg.mxu0
  %1156 = vmatpush.bf16.msra.mxu0 %v787
  %1157 = vmatpush.bf16.msra.mxu0 %v783
  %1158 = vmatpush.bf16.msra.mxu0 %v779
  %1159 = vmatpush.bf16.msra.mxu0 %v775
  %1160 = vmatpush.bf16.msra.mxu0 %v771
  %1161 = vmatpush.bf16.msra.mxu0 %v767
  %1162 = vmatpush.bf16.msra.mxu0 %v763
  %1163 = vmatpush.bf16.msra.mxu0 %v759
  %1164 = vmatmul.bf16.gmra.mxu0 %v1128
  %v1165 = vpop.f32.mrf.mxu0
  %v1166 = vadd.f32 %v336, %v1165
  %v1167 = vpop.f32.mrf.mxu0
  %1168 = vdwg.mxu0
  %1169 = vmatpush.bf16.msra.mxu0 %v819
  %1170 = vmatpush.bf16.msra.mxu0 %v815
  %1171 = vmatpush.bf16.msra.mxu0 %v811
  %1172 = vmatpush.bf16.msra.mxu0 %v807
  %1173 = vmatpush.bf16.msra.mxu0 %v803
  %1174 = vmatpush.bf16.msra.mxu0 %v799
  %1175 = vmatpush.bf16.msra.mxu0 %v795
  %1176 = vmatpush.bf16.msra.mxu0 %v791
  %1177 = vmatmul.bf16.gmra.mxu0 %v1129
  %v1178 = vpop.f32.mrf.mxu0
  %v1179 = vadd.f32 %v1166, %v1178
  %v1180 = vpop.f32.mrf.mxu0
  %1181 = vdwg.mxu0
  %1182 = vmatpush.bf16.msra.mxu0 %v788
  %1183 = vmatpush.bf16.msra.mxu0 %v784
  %1184 = vmatpush.bf16.msra.mxu0 %v780
  %1185 = vmatpush.bf16.msra.mxu0 %v776
  %1186 = vmatpush.bf16.msra.mxu0 %v772
  %1187 = vmatpush.bf16.msra.mxu0 %v768
  %1188 = vmatpush.bf16.msra.mxu0 %v764
  %1189 = vmatpush.bf16.msra.mxu0 %v760
  %1190 = vmatmul.bf16.gmra.mxu0 %v1128
  %v1191 = vpop.f32.mrf.mxu0
  %v1192 = vadd.f32 %v337, %v1191
  %v1193 = vpop.f32.mrf.mxu0
  %1194 = vdwg.mxu0
  %1195 = vmatpush.bf16.msra.mxu0 %v820
  %1196 = vmatpush.bf16.msra.mxu0 %v816
  %1197 = vmatpush.bf16.msra.mxu0 %v812
  %1198 = vmatpush.bf16.msra.mxu0 %v808
  %1199 = vmatpush.bf16.msra.mxu0 %v804
  %1200 = vmatpush.bf16.msra.mxu0 %v800
  %1201 = vmatpush.bf16.msra.mxu0 %v796
  %1202 = vmatpush.bf16.msra.mxu0 %v792
  %1203 = vmatmul.bf16.gmra.mxu0 %v1129
  %v1204 = vpop.f32.mrf.mxu0
  %v1205 = vadd.f32 %v1192, %v1204
  %v1206 = vpop.f32.mrf.mxu0
  %1207 = vdwg.mxu0
  %1208 = vmatpush.bf16.msra.mxu0 %v789
  %1209 = vmatpush.bf16.msra.mxu0 %v785
  %1210 = vmatpush.bf16.msra.mxu0 %v781
  %1211 = vmatpush.bf16.msra.mxu0 %v777
  %1212 = vmatpush.bf16.msra.mxu0 %v773
  %1213 = vmatpush.bf16.msra.mxu0 %v769
  %1214 = vmatpush.bf16.msra.mxu0 %v765
  %1215 = vmatpush.bf16.msra.mxu0 %v761
  %1216 = vmatmul.bf16.gmra.mxu0 %v1128
  %v1217 = vpop.f32.mrf.mxu0
  %v1218 = vadd.f32 %v338, %v1217
  %v1219 = vpop.f32.mrf.mxu0
  %1220 = vdwg.mxu0
  %1221 = vmatpush.bf16.msra.mxu0 %v821
  %1222 = vmatpush.bf16.msra.mxu0 %v817
  %1223 = vmatpush.bf16.msra.mxu0 %v813
  %1224 = vmatpush.bf16.msra.mxu0 %v809
  %1225 = vmatpush.bf16.msra.mxu0 %v805
  %1226 = vmatpush.bf16.msra.mxu0 %v801
  %1227 = vmatpush.bf16.msra.mxu0 %v797
  %1228 = vmatpush.bf16.msra.mxu0 %v793
  %1229 = vmatmul.bf16.gmra.mxu0 %v1129
  %v1230 = vpop.f32.mrf.mxu0
  %v1231 = vadd.f32 %v1218, %v1230
  %v1232 = vpop.f32.mrf.mxu0
  %1233 = vdwg.mxu0
  %v1234 = vxor.u32 %v1153, 2147483648
  %v1235 = vmul.f32 %v1234, 1.442695
  %v1236 = vpow.pop %v1235
  %v1237 = vadd.f32 %v1236, 1.0
  %v1238 = vrcp.pop %v1237
  %v1239 = vmul.f32 %v1237, %v1238
  %v1240 = vsub.f32 1.0, %v1239
  %v1241 = vmul.f32 %v1238, %v1240
  %v1242 = vadd.f32 %v1238, %v1241
  %vm1243 = vweird.f32 %v1237
  %vm1244 = vweird.f32 %v1238
  %vm1245 = vmor %vm1243, %vm1244
  %v1246 = vsel %vm1245, %v1238, %v1242
  %v1247 = vand.u32 2147483647, %v1237
  %vm1248 = vcmp.eq.f32.partialorder %v1247, 8.507059e+37
  %v1249 = vand.u32 %v1237, 2147483648
  %v1250 = vor.u32 1.1754944e-38, %v1249
  %v1251 = vsel %vm1248, %v1250, %v1246
  %v1252 = vmul.f32 1.0, %v1251
  %v1253 = vxor.u32 %v1179, 2147483648
  %v1254 = vmul.f32 %v1253, 1.442695
  %v1255 = vpow.pop %v1254
  %v1256 = vadd.f32 %v1255, 1.0
  %v1257 = vrcp.pop %v1256
  %v1258 = vmul.f32 %v1256, %v1257
  %v1259 = vsub.f32 1.0, %v1258
  %v1260 = vmul.f32 %v1257, %v1259
  %v1261 = vadd.f32 %v1257, %v1260
  %vm1262 = vweird.f32 %v1256
  %vm1263 = vweird.f32 %v1257
  %vm1264 = vmor %vm1262, %vm1263
  %v1265 = vsel %vm1264, %v1257, %v1261
  %v1266 = vand.u32 2147483647, %v1256
  %vm1267 = vcmp.eq.f32.partialorder %v1266, 8.507059e+37
  %v1268 = vand.u32 %v1256, 2147483648
  %v1269 = vor.u32 1.1754944e-38, %v1268
  %v1270 = vsel %vm1267, %v1269, %v1265
  %v1271 = vmul.f32 1.0, %v1270
  %v1272 = vmul.f32 %v1252, %v1231
  %v1273 = vadd.f32 %v1205, %v1272
  %v1274 = vtanh.pop %v1273
  %v1275 = vsub.f32 1.0, %v1271
  %v1276 = vmul.f32 %v1275, %v1274
  %v1277 = vmul.f32 %v1271, %v1034
  %v1278 = vadd.f32 %v1276, %v1277
  %s1279 = smul.u32 2, 3
  %s1280 = smul.addr %s1279, 8
  %s1281 = scalar_lea.vmem [#allocation2], %s1280
  %v1282 = vld [vmem:[%s1281] sm:$0xff]
  %v1283 = vld [vmem:[%s1281 + $0x8] sm:$0xff]
  %v1284 = vld [vmem:[%s1281 + $0x10] sm:$0xff]
  %1285 = vmatpush.bf16.msra.mxu0 %v450
  %1286 = vmatpush.bf16.msra.mxu0 %v447
  %1287 = vmatpush.bf16.msra.mxu0 %v444
  %1288 = vmatpush.bf16.msra.mxu0 %v441
  %1289 = vmatpush.bf16.msra.mxu0 %v438
  %1290 = vmatpush.bf16.msra.mxu0 %v435
  %1291 = vmatpush.bf16.msra.mxu0 %v432
  %1292 = vmatpush.bf16.msra.mxu0 %v429
  %1293 = vmatmul.bf16.gmra.mxu0 %v1128
  %v1294 = vpop.f32.mrf.mxu0
  %v1295 = vadd.f32 0.0, %v1294
  %v1296 = vpop.f32.mrf.mxu0
  %1297 = vdwg.mxu0
  %1298 = vmatpush.bf16.msra.mxu0 %v451
  %1299 = vmatpush.bf16.msra.mxu0 %v448
  %1300 = vmatpush.bf16.msra.mxu0 %v445
  %1301 = vmatpush.bf16.msra.mxu0 %v442
  %1302 = vmatpush.bf16.msra.mxu0 %v439
  %1303 = vmatpush.bf16.msra.mxu0 %v436
  %1304 = vmatpush.bf16.msra.mxu0 %v433
  %1305 = vmatpush.bf16.msra.mxu0 %v430
  %1306 = vmatmul.bf16.gmra.mxu0 %v1128
  %v1307 = vpop.f32.mrf.mxu0
  %v1308 = vadd.f32 0.0, %v1307
  %v1309 = vpop.f32.mrf.mxu0
  %1310 = vdwg.mxu0
  %1311 = vmatpush.bf16.msra.mxu0 %v452
  %1312 = vmatpush.bf16.msra.mxu0 %v449
  %1313 = vmatpush.bf16.msra.mxu0 %v446
  %1314 = vmatpush.bf16.msra.mxu0 %v443
  %1315 = vmatpush.bf16.msra.mxu0 %v440
  %1316 = vmatpush.bf16.msra.mxu0 %v437
  %1317 = vmatpush.bf16.msra.mxu0 %v434
  %1318 = vmatpush.bf16.msra.mxu0 %v431
  %1319 = vmatmul.bf16.gmra.mxu0 %v1128
  %v1320 = vpop.f32.mrf.mxu0
  %v1321 = vadd.f32 0.0, %v1320
  %v1322 = vpop.f32.mrf.mxu0
  %1323 = vdwg.mxu0
  %v1324 = vadd.f32 %v1282, %v1295
  %v1325 = vxor.u32 %v1324, 2147483648
  %v1326 = vmul.f32 %v1325, 1.442695
  %v1327 = vpow.pop %v1326
  %v1328 = vadd.f32 %v1327, 1.0
  %v1329 = vrcp.pop %v1328
  %v1330 = vmul.f32 %v1328, %v1329
  %v1331 = vsub.f32 1.0, %v1330
  %v1332 = vmul.f32 %v1329, %v1331
  %v1333 = vadd.f32 %v1329, %v1332
  %vm1334 = vweird.f32 %v1328
  %vm1335 = vweird.f32 %v1329
  %vm1336 = vmor %vm1334, %vm1335
  %v1337 = vsel %vm1336, %v1329, %v1333
  %v1338 = vand.u32 2147483647, %v1328
  %vm1339 = vcmp.eq.f32.partialorder %v1338, 8.507059e+37
  %v1340 = vand.u32 %v1328, 2147483648
  %v1341 = vor.u32 1.1754944e-38, %v1340
  %v1342 = vsel %vm1339, %v1341, %v1337
  %v1343 = vmul.f32 1.0, %v1342
  %v1344 = vadd.f32 %v1283, %v1308
  %v1345 = vxor.u32 %v1344, 2147483648
  %v1346 = vmul.f32 %v1345, 1.442695
  %v1347 = vpow.pop %v1346
  %v1348 = vadd.f32 %v1347, 1.0
  %v1349 = vrcp.pop %v1348
  %v1350 = vmul.f32 %v1348, %v1349
  %v1351 = vsub.f32 1.0, %v1350
  %v1352 = vmul.f32 %v1349, %v1351
  %v1353 = vadd.f32 %v1349, %v1352
  %vm1354 = vweird.f32 %v1348
  %vm1355 = vweird.f32 %v1349
  %vm1356 = vmor %vm1354, %vm1355
  %v1357 = vsel %vm1356, %v1349, %v1353
  %v1358 = vand.u32 2147483647, %v1348
  %vm1359 = vcmp.eq.f32.partialorder %v1358, 8.507059e+37
  %v1360 = vand.u32 %v1348, 2147483648
  %v1361 = vor.u32 1.1754944e-38, %v1360
  %v1362 = vsel %vm1359, %v1361, %v1357
  %v1363 = vmul.f32 1.0, %v1362
  %v1364 = vadd.f32 %v1321, %v331
  %v1365 = vmul.f32 %v1343, %v1364
  %v1366 = vadd.f32 %v1284, %v1365
  %v1367 = vtanh.pop %v1366
  %v1368 = vsub.f32 1.0, %v1363
  %v1369 = vmul.f32 %v1368, %v1367
  %v1370 = vmul.f32 %v1363, %v1127
  %v1371 = vadd.f32 %v1369, %v1370
  %v1372 = vpack.c.bf16 %v1371, %v1371
  %v1373 = vpack.c.bf16 %v1278, %v1278
  %1374 = vmatpush.bf16.msra.mxu0 %v786
  %1375 = vmatpush.bf16.msra.mxu0 %v782
  %1376 = vmatpush.bf16.msra.mxu0 %v778
  %1377 = vmatpush.bf16.msra.mxu0 %v774
  %1378 = vmatpush.bf16.msra.mxu0 %v770
  %1379 = vmatpush.bf16.msra.mxu0 %v766
  %1380 = vmatpush.bf16.msra.mxu0 %v762
  %1381 = vmatpush.bf16.msra.mxu0 %v758
  %1382 = vmatmul.bf16.gmra.mxu0 %v1372
  %v1383 = vpop.f32.mrf.mxu0
  %v1384 = vadd.f32 %v335, %v1383
  %v1385 = vpop.f32.mrf.mxu0
  %1386 = vdwg.mxu0
  %1387 = vmatpush.bf16.msra.mxu0 %v818
  %1388 = vmatpush.bf16.msra.mxu0 %v814
  %1389 = vmatpush.bf16.msra.mxu0 %v810
  %1390 = vmatpush.bf16.msra.mxu0 %v806
  %1391 = vmatpush.bf16.msra.mxu0 %v802
  %1392 = vmatpush.bf16.msra.mxu0 %v798
  %1393 = vmatpush.bf16.msra.mxu0 %v794
  %1394 = vmatpush.bf16.msra.mxu0 %v790
  %1395 = vmatmul.bf16.gmra.mxu0 %v1373
  %v1396 = vpop.f32.mrf.mxu0
  %v1397 = vadd.f32 %v1384, %v1396
  %v1398 = vpop.f32.mrf.mxu0
  %1399 = vdwg.mxu0
  %1400 = vmatpush.bf16.msra.mxu0 %v787
  %1401 = vmatpush.bf16.msra.mxu0 %v783
  %1402 = vmatpush.bf16.msra.mxu0 %v779
  %1403 = vmatpush.bf16.msra.mxu0 %v775
  %1404 = vmatpush.bf16.msra.mxu0 %v771
  %1405 = vmatpush.bf16.msra.mxu0 %v767
  %1406 = vmatpush.bf16.msra.mxu0 %v763
  %1407 = vmatpush.bf16.msra.mxu0 %v759
  %1408 = vmatmul.bf16.gmra.mxu0 %v1372
  %v1409 = vpop.f32.mrf.mxu0
  %v1410 = vadd.f32 %v336, %v1409
  %v1411 = vpop.f32.mrf.mxu0
  %1412 = vdwg.mxu0
  %1413 = vmatpush.bf16.msra.mxu0 %v819
  %1414 = vmatpush.bf16.msra.mxu0 %v815
  %1415 = vmatpush.bf16.msra.mxu0 %v811
  %1416 = vmatpush.bf16.msra.mxu0 %v807
  %1417 = vmatpush.bf16.msra.mxu0 %v803
  %1418 = vmatpush.bf16.msra.mxu0 %v799
  %1419 = vmatpush.bf16.msra.mxu0 %v795
  %1420 = vmatpush.bf16.msra.mxu0 %v791
  %1421 = vmatmul.bf16.gmra.mxu0 %v1373
  %v1422 = vpop.f32.mrf.mxu0
  %v1423 = vadd.f32 %v1410, %v1422
  %v1424 = vpop.f32.mrf.mxu0
  %1425 = vdwg.mxu0
  %1426 = vmatpush.bf16.msra.mxu0 %v788
  %1427 = vmatpush.bf16.msra.mxu0 %v784
  %1428 = vmatpush.bf16.msra.mxu0 %v780
  %1429 = vmatpush.bf16.msra.mxu0 %v776
  %1430 = vmatpush.bf16.msra.mxu0 %v772
  %1431 = vmatpush.bf16.msra.mxu0 %v768
  %1432 = vmatpush.bf16.msra.mxu0 %v764
  %1433 = vmatpush.bf16.msra.mxu0 %v760
  %1434 = vmatmul.bf16.gmra.mxu0 %v1372
  %v1435 = vpop.f32.mrf.mxu0
  %v1436 = vadd.f32 %v337, %v1435
  %v1437 = vpop.f32.mrf.mxu0
  %1438 = vdwg.mxu0
  %1439 = vmatpush.bf16.msra.mxu0 %v820
  %1440 = vmatpush.bf16.msra.mxu0 %v816
  %1441 = vmatpush.bf16.msra.mxu0 %v812
  %1442 = vmatpush.bf16.msra.mxu0 %v808
  %1443 = vmatpush.bf16.msra.mxu0 %v804
  %1444 = vmatpush.bf16.msra.mxu0 %v800
  %1445 = vmatpush.bf16.msra.mxu0 %v796
  %1446 = vmatpush.bf16.msra.mxu0 %v792
  %1447 = vmatmul.bf16.gmra.mxu0 %v1373
  %v1448 = vpop.f32.mrf.mxu0
  %v1449 = vadd.f32 %v1436, %v1448
  %v1450 = vpop.f32.mrf.mxu0
  %1451 = vdwg.mxu0
  %1452 = vmatpush.bf16.msra.mxu0 %v789
  %1453 = vmatpush.bf16.msra.mxu0 %v785
  %1454 = vmatpush.bf16.msra.mxu0 %v781
  %1455 = vmatpush.bf16.msra.mxu0 %v777
  %1456 = vmatpush.bf16.msra.mxu0 %v773
  %1457 = vmatpush.bf16.msra.mxu0 %v769
  %1458 = vmatpush.bf16.msra.mxu0 %v765
  %1459 = vmatpush.bf16.msra.mxu0 %v761
  %1460 = vmatmul.bf16.gmra.mxu0 %v1372
  %v1461 = vpop.f32.mrf.mxu0
  %v1462 = vadd.f32 %v338, %v1461
  %v1463 = vpop.f32.mrf.mxu0
  %1464 = vdwg.mxu0
  %1465 = vmatpush.bf16.msra.mxu0 %v821
  %1466 = vmatpush.bf16.msra.mxu0 %v817
  %1467 = vmatpush.bf16.msra.mxu0 %v813
  %1468 = vmatpush.bf16.msra.mxu0 %v809
  %1469 = vmatpush.bf16.msra.mxu0 %v805
  %1470 = vmatpush.bf16.msra.mxu0 %v801
  %1471 = vmatpush.bf16.msra.mxu0 %v797
  %1472 = vmatpush.bf16.msra.mxu0 %v793
  %1473 = vmatmul.bf16.gmra.mxu0 %v1373
  %v1474 = vpop.f32.mrf.mxu0
  %v1475 = vadd.f32 %v1462, %v1474
  %v1476 = vpop.f32.mrf.mxu0
  %1477 = vdwg.mxu0
  %v1478 = vxor.u32 %v1397, 2147483648
  %v1479 = vmul.f32 %v1478, 1.442695
  %v1480 = vpow.pop %v1479
  %v1481 = vadd.f32 %v1480, 1.0
  %v1482 = vrcp.pop %v1481
  %v1483 = vmul.f32 %v1481, %v1482
  %v1484 = vsub.f32 1.0, %v1483
  %v1485 = vmul.f32 %v1482, %v1484
  %v1486 = vadd.f32 %v1482, %v1485
  %vm1487 = vweird.f32 %v1481
  %vm1488 = vweird.f32 %v1482
  %vm1489 = vmor %vm1487, %vm1488
  %v1490 = vsel %vm1489, %v1482, %v1486
  %v1491 = vand.u32 2147483647, %v1481
  %vm1492 = vcmp.eq.f32.partialorder %v1491, 8.507059e+37
  %v1493 = vand.u32 %v1481, 2147483648
  %v1494 = vor.u32 1.1754944e-38, %v1493
  %v1495 = vsel %vm1492, %v1494, %v1490
  %v1496 = vmul.f32 1.0, %v1495
  %v1497 = vxor.u32 %v1423, 2147483648
  %v1498 = vmul.f32 %v1497, 1.442695
  %v1499 = vpow.pop %v1498
  %v1500 = vadd.f32 %v1499, 1.0
  %v1501 = vrcp.pop %v1500
  %v1502 = vmul.f32 %v1500, %v1501
  %v1503 = vsub.f32 1.0, %v1502
  %v1504 = vmul.f32 %v1501, %v1503
  %v1505 = vadd.f32 %v1501, %v1504
  %vm1506 = vweird.f32 %v1500
  %vm1507 = vweird.f32 %v1501
  %vm1508 = vmor %vm1506, %vm1507
  %v1509 = vsel %vm1508, %v1501, %v1505
  %v1510 = vand.u32 2147483647, %v1500
  %vm1511 = vcmp.eq.f32.partialorder %v1510, 8.507059e+37
  %v1512 = vand.u32 %v1500, 2147483648
  %v1513 = vor.u32 1.1754944e-38, %v1512
  %v1514 = vsel %vm1511, %v1513, %v1509
  %v1515 = vmul.f32 1.0, %v1514
  %v1516 = vmul.f32 %v1496, %v1475
  %v1517 = vadd.f32 %v1449, %v1516
  %v1518 = vtanh.pop %v1517
  %v1519 = vsub.f32 1.0, %v1515
  %v1520 = vmul.f32 %v1519, %v1518
  %v1521 = vmul.f32 %v1515, %v1278
  %v1522 = vadd.f32 %v1520, %v1521
  %s1523 = smul.u32 3, 3
  %s1524 = smul.addr %s1523, 8
  %s1525 = scalar_lea.vmem [#allocation2], %s1524
  %v1526 = vld [vmem:[%s1525] sm:$0xff]
  %v1527 = vld [vmem:[%s1525 + $0x8] sm:$0xff]
  %v1528 = vld [vmem:[%s1525 + $0x10] sm:$0xff]
  %1529 = vmatpush.bf16.msra.mxu0 %v450
  %1530 = vmatpush.bf16.msra.mxu0 %v447
  %1531 = vmatpush.bf16.msra.mxu0 %v444
  %1532 = vmatpush.bf16.msra.mxu0 %v441
  %1533 = vmatpush.bf16.msra.mxu0 %v438
  %1534 = vmatpush.bf16.msra.mxu0 %v435
  %1535 = vmatpush.bf16.msra.mxu0 %v432
  %1536 = vmatpush.bf16.msra.mxu0 %v429
  %1537 = vmatmul.bf16.gmra.mxu0 %v1372
  %v1538 = vpop.f32.mrf.mxu0
  %v1539 = vadd.f32 0.0, %v1538
  %v1540 = vpop.f32.mrf.mxu0
  %1541 = vdwg.mxu0
  %1542 = vmatpush.bf16.msra.mxu0 %v451
  %1543 = vmatpush.bf16.msra.mxu0 %v448
  %1544 = vmatpush.bf16.msra.mxu0 %v445
  %1545 = vmatpush.bf16.msra.mxu0 %v442
  %1546 = vmatpush.bf16.msra.mxu0 %v439
  %1547 = vmatpush.bf16.msra.mxu0 %v436
  %1548 = vmatpush.bf16.msra.mxu0 %v433
  %1549 = vmatpush.bf16.msra.mxu0 %v430
  %1550 = vmatmul.bf16.gmra.mxu0 %v1372
  %v1551 = vpop.f32.mrf.mxu0
  %v1552 = vadd.f32 0.0, %v1551
  %v1553 = vpop.f32.mrf.mxu0
  %1554 = vdwg.mxu0
  %1555 = vmatpush.bf16.msra.mxu0 %v452
  %1556 = vmatpush.bf16.msra.mxu0 %v449
  %1557 = vmatpush.bf16.msra.mxu0 %v446
  %1558 = vmatpush.bf16.msra.mxu0 %v443
  %1559 = vmatpush.bf16.msra.mxu0 %v440
  %1560 = vmatpush.bf16.msra.mxu0 %v437
  %1561 = vmatpush.bf16.msra.mxu0 %v434
  %1562 = vmatpush.bf16.msra.mxu0 %v431
  %1563 = vmatmul.bf16.gmra.mxu0 %v1372
  %v1564 = vpop.f32.mrf.mxu0
  %v1565 = vadd.f32 0.0, %v1564
  %v1566 = vpop.f32.mrf.mxu0
  %1567 = vdwg.mxu0
  %v1568 = vadd.f32 %v1526, %v1539
  %v1569 = vxor.u32 %v1568, 2147483648
  %v1570 = vmul.f32 %v1569, 1.442695
  %v1571 = vpow.pop %v1570
  %v1572 = vadd.f32 %v1571, 1.0
  %v1573 = vrcp.pop %v1572
  %v1574 = vmul.f32 %v1572, %v1573
  %v1575 = vsub.f32 1.0, %v1574
  %v1576 = vmul.f32 %v1573, %v1575
  %v1577 = vadd.f32 %v1573, %v1576
  %vm1578 = vweird.f32 %v1572
  %vm1579 = vweird.f32 %v1573
  %vm1580 = vmor %vm1578, %vm1579
  %v1581 = vsel %vm1580, %v1573, %v1577
  %v1582 = vand.u32 2147483647, %v1572
  %vm1583 = vcmp.eq.f32.partialorder %v1582, 8.507059e+37
  %v1584 = vand.u32 %v1572, 2147483648
  %v1585 = vor.u32 1.1754944e-38, %v1584
  %v1586 = vsel %vm1583, %v1585, %v1581
  %v1587 = vmul.f32 1.0, %v1586
  %v1588 = vadd.f32 %v1527, %v1552
  %v1589 = vxor.u32 %v1588, 2147483648
  %v1590 = vmul.f32 %v1589, 1.442695
  %v1591 = vpow.pop %v1590
  %v1592 = vadd.f32 %v1591, 1.0
  %v1593 = vrcp.pop %v1592
  %v1594 = vmul.f32 %v1592, %v1593
  %v1595 = vsub.f32 1.0, %v1594
  %v1596 = vmul.f32 %v1593, %v1595
  %v1597 = vadd.f32 %v1593, %v1596
  %vm1598 = vweird.f32 %v1592
  %vm1599 = vweird.f32 %v1593
  %vm1600 = vmor %vm1598, %vm1599
  %v1601 = vsel %vm1600, %v1593, %v1597
  %v1602 = vand.u32 2147483647, %v1592
  %vm1603 = vcmp.eq.f32.partialorder %v1602, 8.507059e+37
  %v1604 = vand.u32 %v1592, 2147483648
  %v1605 = vor.u32 1.1754944e-38, %v1604
  %v1606 = vsel %vm1603, %v1605, %v1601
  %v1607 = vmul.f32 1.0, %v1606
  %v1608 = vadd.f32 %v1565, %v331
  %v1609 = vmul.f32 %v1587, %v1608
  %v1610 = vadd.f32 %v1528, %v1609
  %v1611 = vtanh.pop %v1610
  %v1612 = vsub.f32 1.0, %v1607
  %v1613 = vmul.f32 %v1612, %v1611
  %v1614 = vmul.f32 %v1607, %v1371
  %v1615 = vadd.f32 %v1613, %v1614
  %v1616 = vpack.c.bf16 %v1615, %v1615
  %v1617 = vpack.c.bf16 %v1522, %v1522
  %1618 = vmatpush.bf16.msra.mxu0 %v786
  %1619 = vmatpush.bf16.msra.mxu0 %v782
  %1620 = vmatpush.bf16.msra.mxu0 %v778
  %1621 = vmatpush.bf16.msra.mxu0 %v774
  %1622 = vmatpush.bf16.msra.mxu0 %v770
  %1623 = vmatpush.bf16.msra.mxu0 %v766
  %1624 = vmatpush.bf16.msra.mxu0 %v762
  %1625 = vmatpush.bf16.msra.mxu0 %v758
  %1626 = vmatmul.bf16.gmra.mxu0 %v1616
  %v1627 = vpop.f32.mrf.mxu0
  %v1628 = vadd.f32 %v335, %v1627
  %v1629 = vpop.f32.mrf.mxu0
  %1630 = vdwg.mxu0
  %1631 = vmatpush.bf16.msra.mxu0 %v818
  %1632 = vmatpush.bf16.msra.mxu0 %v814
  %1633 = vmatpush.bf16.msra.mxu0 %v810
  %1634 = vmatpush.bf16.msra.mxu0 %v806
  %1635 = vmatpush.bf16.msra.mxu0 %v802
  %1636 = vmatpush.bf16.msra.mxu0 %v798
  %1637 = vmatpush.bf16.msra.mxu0 %v794
  %1638 = vmatpush.bf16.msra.mxu0 %v790
  %1639 = vmatmul.bf16.gmra.mxu0 %v1617
  %v1640 = vpop.f32.mrf.mxu0
  %v1641 = vadd.f32 %v1628, %v1640
  %v1642 = vpop.f32.mrf.mxu0
  %1643 = vdwg.mxu0
  %1644 = vmatpush.bf16.msra.mxu0 %v787
  %1645 = vmatpush.bf16.msra.mxu0 %v783
  %1646 = vmatpush.bf16.msra.mxu0 %v779
  %1647 = vmatpush.bf16.msra.mxu0 %v775
  %1648 = vmatpush.bf16.msra.mxu0 %v771
  %1649 = vmatpush.bf16.msra.mxu0 %v767
  %1650 = vmatpush.bf16.msra.mxu0 %v763
  %1651 = vmatpush.bf16.msra.mxu0 %v759
  %1652 = vmatmul.bf16.gmra.mxu0 %v1616
  %v1653 = vpop.f32.mrf.mxu0
  %v1654 = vadd.f32 %v336, %v1653
  %v1655 = vpop.f32.mrf.mxu0
  %1656 = vdwg.mxu0
  %1657 = vmatpush.bf16.msra.mxu0 %v819
  %1658 = vmatpush.bf16.msra.mxu0 %v815
  %1659 = vmatpush.bf16.msra.mxu0 %v811
  %1660 = vmatpush.bf16.msra.mxu0 %v807
  %1661 = vmatpush.bf16.msra.mxu0 %v803
  %1662 = vmatpush.bf16.msra.mxu0 %v799
  %1663 = vmatpush.bf16.msra.mxu0 %v795
  %1664 = vmatpush.bf16.msra.mxu0 %v791
  %1665 = vmatmul.bf16.gmra.mxu0 %v1617
  %v1666 = vpop.f32.mrf.mxu0
  %v1667 = vadd.f32 %v1654, %v1666
  %v1668 = vpop.f32.mrf.mxu0
  %1669 = vdwg.mxu0
  %1670 = vmatpush.bf16.msra.mxu0 %v788
  %1671 = vmatpush.bf16.msra.mxu0 %v784
  %1672 = vmatpush.bf16.msra.mxu0 %v780
  %1673 = vmatpush.bf16.msra.mxu0 %v776
  %1674 = vmatpush.bf16.msra.mxu0 %v772
  %1675 = vmatpush.bf16.msra.mxu0 %v768
  %1676 = vmatpush.bf16.msra.mxu0 %v764
  %1677 = vmatpush.bf16.msra.mxu0 %v760
  %1678 = vmatmul.bf16.gmra.mxu0 %v1616
  %v1679 = vpop.f32.mrf.mxu0
  %v1680 = vadd.f32 %v337, %v1679
  %v1681 = vpop.f32.mrf.mxu0
  %1682 = vdwg.mxu0
  %1683 = vmatpush.bf16.msra.mxu0 %v820
  %1684 = vmatpush.bf16.msra.mxu0 %v816
  %1685 = vmatpush.bf16.msra.mxu0 %v812
  %1686 = vmatpush.bf16.msra.mxu0 %v808
  %1687 = vmatpush.bf16.msra.mxu0 %v804
  %1688 = vmatpush.bf16.msra.mxu0 %v800
  %1689 = vmatpush.bf16.msra.mxu0 %v796
  %1690 = vmatpush.bf16.msra.mxu0 %v792
  %1691 = vmatmul.bf16.gmra.mxu0 %v1617
  %v1692 = vpop.f32.mrf.mxu0
  %v1693 = vadd.f32 %v1680, %v1692
  %v1694 = vpop.f32.mrf.mxu0
  %1695 = vdwg.mxu0
  %1696 = vmatpush.bf16.msra.mxu0 %v789
  %1697 = vmatpush.bf16.msra.mxu0 %v785
  %1698 = vmatpush.bf16.msra.mxu0 %v781
  %1699 = vmatpush.bf16.msra.mxu0 %v777
  %1700 = vmatpush.bf16.msra.mxu0 %v773
  %1701 = vmatpush.bf16.msra.mxu0 %v769
  %1702 = vmatpush.bf16.msra.mxu0 %v765
  %1703 = vmatpush.bf16.msra.mxu0 %v761
  %1704 = vmatmul.bf16.gmra.mxu0 %v1616
  %v1705 = vpop.f32.mrf.mxu0
  %v1706 = vadd.f32 %v338, %v1705
  %v1707 = vpop.f32.mrf.mxu0
  %1708 = vdwg.mxu0
  %1709 = vmatpush.bf16.msra.mxu0 %v821
  %1710 = vmatpush.bf16.msra.mxu0 %v817
  %1711 = vmatpush.bf16.msra.mxu0 %v813
  %1712 = vmatpush.bf16.msra.mxu0 %v809
  %1713 = vmatpush.bf16.msra.mxu0 %v805
  %1714 = vmatpush.bf16.msra.mxu0 %v801
  %1715 = vmatpush.bf16.msra.mxu0 %v797
  %1716 = vmatpush.bf16.msra.mxu0 %v793
  %1717 = vmatmul.bf16.gmra.mxu0 %v1617
  %v1718 = vpop.f32.mrf.mxu0
  %v1719 = vadd.f32 %v1706, %v1718
  %v1720 = vpop.f32.mrf.mxu0
  %1721 = vdwg.mxu0
  %v1722 = vxor.u32 %v1641, 2147483648
  %v1723 = vmul.f32 %v1722, 1.442695
  %v1724 = vpow.pop %v1723
  %v1725 = vadd.f32 %v1724, 1.0
  %v1726 = vrcp.pop %v1725
  %v1727 = vmul.f32 %v1725, %v1726
  %v1728 = vsub.f32 1.0, %v1727
  %v1729 = vmul.f32 %v1726, %v1728
  %v1730 = vadd.f32 %v1726, %v1729
  %vm1731 = vweird.f32 %v1725
  %vm1732 = vweird.f32 %v1726
  %vm1733 = vmor %vm1731, %vm1732
  %v1734 = vsel %vm1733, %v1726, %v1730
  %v1735 = vand.u32 2147483647, %v1725
  %vm1736 = vcmp.eq.f32.partialorder %v1735, 8.507059e+37
  %v1737 = vand.u32 %v1725, 2147483648
  %v1738 = vor.u32 1.1754944e-38, %v1737
  %v1739 = vsel %vm1736, %v1738, %v1734
  %v1740 = vmul.f32 1.0, %v1739
  %v1741 = vxor.u32 %v1667, 2147483648
  %v1742 = vmul.f32 %v1741, 1.442695
  %v1743 = vpow.pop %v1742
  %v1744 = vadd.f32 %v1743, 1.0
  %v1745 = vrcp.pop %v1744
  %v1746 = vmul.f32 %v1744, %v1745
  %v1747 = vsub.f32 1.0, %v1746
  %v1748 = vmul.f32 %v1745, %v1747
  %v1749 = vadd.f32 %v1745, %v1748
  %vm1750 = vweird.f32 %v1744
  %vm1751 = vweird.f32 %v1745
  %vm1752 = vmor %vm1750, %vm1751
  %v1753 = vsel %vm1752, %v1745, %v1749
  %v1754 = vand.u32 2147483647, %v1744
  %vm1755 = vcmp.eq.f32.partialorder %v1754, 8.507059e+37
  %v1756 = vand.u32 %v1744, 2147483648
  %v1757 = vor.u32 1.1754944e-38, %v1756
  %v1758 = vsel %vm1755, %v1757, %v1753
  %v1759 = vmul.f32 1.0, %v1758
  %v1760 = vmul.f32 %v1740, %v1719
  %v1761 = vadd.f32 %v1693, %v1760
  %v1762 = vtanh.pop %v1761
  %v1763 = vsub.f32 1.0, %v1759
  %v1764 = vmul.f32 %v1763, %v1762
  %v1765 = vmul.f32 %v1759, %v1522
  %v1766 = vadd.f32 %v1764, %v1765
  %s1767 = smul.u32 4, 3
  %s1768 = smul.addr %s1767, 8
  %s1769 = scalar_lea.vmem [#allocation2], %s1768
  %v1770 = vld [vmem:[%s1769] sm:$0xff]
  %v1771 = vld [vmem:[%s1769 + $0x8] sm:$0xff]
  %v1772 = vld [vmem:[%s1769 + $0x10] sm:$0xff]
  %1773 = vmatpush.bf16.msra.mxu0 %v450
  %1774 = vmatpush.bf16.msra.mxu0 %v447
  %1775 = vmatpush.bf16.msra.mxu0 %v444
  %1776 = vmatpush.bf16.msra.mxu0 %v441
  %1777 = vmatpush.bf16.msra.mxu0 %v438
  %1778 = vmatpush.bf16.msra.mxu0 %v435
  %1779 = vmatpush.bf16.msra.mxu0 %v432
  %1780 = vmatpush.bf16.msra.mxu0 %v429
  %1781 = vmatmul.bf16.gmra.mxu0 %v1616
  %v1782 = vpop.f32.mrf.mxu0
  %v1783 = vadd.f32 0.0, %v1782
  %v1784 = vpop.f32.mrf.mxu0
  %1785 = vdwg.mxu0
  %1786 = vmatpush.bf16.msra.mxu0 %v451
  %1787 = vmatpush.bf16.msra.mxu0 %v448
  %1788 = vmatpush.bf16.msra.mxu0 %v445
  %1789 = vmatpush.bf16.msra.mxu0 %v442
  %1790 = vmatpush.bf16.msra.mxu0 %v439
  %1791 = vmatpush.bf16.msra.mxu0 %v436
  %1792 = vmatpush.bf16.msra.mxu0 %v433
  %1793 = vmatpush.bf16.msra.mxu0 %v430
  %1794 = vmatmul.bf16.gmra.mxu0 %v1616
  %v1795 = vpop.f32.mrf.mxu0
  %v1796 = vadd.f32 0.0, %v1795
  %v1797 = vpop.f32.mrf.mxu0
  %1798 = vdwg.mxu0
  %1799 = vmatpush.bf16.msra.mxu0 %v452
  %1800 = vmatpush.bf16.msra.mxu0 %v449
  %1801 = vmatpush.bf16.msra.mxu0 %v446
  %1802 = vmatpush.bf16.msra.mxu0 %v443
  %1803 = vmatpush.bf16.msra.mxu0 %v440
  %1804 = vmatpush.bf16.msra.mxu0 %v437
  %1805 = vmatpush.bf16.msra.mxu0 %v434
  %1806 = vmatpush.bf16.msra.mxu0 %v431
  %1807 = vmatmul.bf16.gmra.mxu0 %v1616
  %v1808 = vpop.f32.mrf.mxu0
  %v1809 = vadd.f32 0.0, %v1808
  %v1810 = vpop.f32.mrf.mxu0
  %1811 = vdwg.mxu0
  %v1812 = vadd.f32 %v1770, %v1783
  %v1813 = vxor.u32 %v1812, 2147483648
  %v1814 = vmul.f32 %v1813, 1.442695
  %v1815 = vpow.pop %v1814
  %v1816 = vadd.f32 %v1815, 1.0
  %v1817 = vrcp.pop %v1816
  %v1818 = vmul.f32 %v1816, %v1817
  %v1819 = vsub.f32 1.0, %v1818
  %v1820 = vmul.f32 %v1817, %v1819
  %v1821 = vadd.f32 %v1817, %v1820
  %vm1822 = vweird.f32 %v1816
  %vm1823 = vweird.f32 %v1817
  %vm1824 = vmor %vm1822, %vm1823
  %v1825 = vsel %vm1824, %v1817, %v1821
  %v1826 = vand.u32 2147483647, %v1816
  %vm1827 = vcmp.eq.f32.partialorder %v1826, 8.507059e+37
  %v1828 = vand.u32 %v1816, 2147483648
  %v1829 = vor.u32 1.1754944e-38, %v1828
  %v1830 = vsel %vm1827, %v1829, %v1825
  %v1831 = vmul.f32 1.0, %v1830
  %v1832 = vadd.f32 %v1771, %v1796
  %v1833 = vxor.u32 %v1832, 2147483648
  %v1834 = vmul.f32 %v1833, 1.442695
  %v1835 = vpow.pop %v1834
  %v1836 = vadd.f32 %v1835, 1.0
  %v1837 = vrcp.pop %v1836
  %v1838 = vmul.f32 %v1836, %v1837
  %v1839 = vsub.f32 1.0, %v1838
  %v1840 = vmul.f32 %v1837, %v1839
  %v1841 = vadd.f32 %v1837, %v1840
  %vm1842 = vweird.f32 %v1836
  %vm1843 = vweird.f32 %v1837
  %vm1844 = vmor %vm1842, %vm1843
  %v1845 = vsel %vm1844, %v1837, %v1841
  %v1846 = vand.u32 2147483647, %v1836
  %vm1847 = vcmp.eq.f32.partialorder %v1846, 8.507059e+37
  %v1848 = vand.u32 %v1836, 2147483648
  %v1849 = vor.u32 1.1754944e-38, %v1848
  %v1850 = vsel %vm1847, %v1849, %v1845
  %v1851 = vmul.f32 1.0, %v1850
  %v1852 = vadd.f32 %v1809, %v331
  %v1853 = vmul.f32 %v1831, %v1852
  %v1854 = vadd.f32 %v1772, %v1853
  %v1855 = vtanh.pop %v1854
  %v1856 = vsub.f32 1.0, %v1851
  %v1857 = vmul.f32 %v1856, %v1855
  %v1858 = vmul.f32 %v1851, %v1615
  %v1859 = vadd.f32 %v1857, %v1858
  %v1860 = vpack.c.bf16 %v1859, %v1859
  %v1861 = vpack.c.bf16 %v1766, %v1766
  %1862 = vmatpush.bf16.msra.mxu0 %v786
  %1863 = vmatpush.bf16.msra.mxu0 %v782
  %1864 = vmatpush.bf16.msra.mxu0 %v778
  %1865 = vmatpush.bf16.msra.mxu0 %v774
  %1866 = vmatpush.bf16.msra.mxu0 %v770
  %1867 = vmatpush.bf16.msra.mxu0 %v766
  %1868 = vmatpush.bf16.msra.mxu0 %v762
  %1869 = vmatpush.bf16.msra.mxu0 %v758
  %1870 = vmatmul.bf16.gmra.mxu0 %v1860
  %v1871 = vpop.f32.mrf.mxu0
  %v1872 = vadd.f32 %v335, %v1871
  %v1873 = vpop.f32.mrf.mxu0
  %1874 = vdwg.mxu0
  %1875 = vmatpush.bf16.msra.mxu0 %v818
  %1876 = vmatpush.bf16.msra.mxu0 %v814
  %1877 = vmatpush.bf16.msra.mxu0 %v810
  %1878 = vmatpush.bf16.msra.mxu0 %v806
  %1879 = vmatpush.bf16.msra.mxu0 %v802
  %1880 = vmatpush.bf16.msra.mxu0 %v798
  %1881 = vmatpush.bf16.msra.mxu0 %v794
  %1882 = vmatpush.bf16.msra.mxu0 %v790
  %1883 = vmatmul.bf16.gmra.mxu0 %v1861
  %v1884 = vpop.f32.mrf.mxu0
  %v1885 = vadd.f32 %v1872, %v1884
  %v1886 = vpop.f32.mrf.mxu0
  %1887 = vdwg.mxu0
  %1888 = vmatpush.bf16.msra.mxu0 %v787
  %1889 = vmatpush.bf16.msra.mxu0 %v783
  %1890 = vmatpush.bf16.msra.mxu0 %v779
  %1891 = vmatpush.bf16.msra.mxu0 %v775
  %1892 = vmatpush.bf16.msra.mxu0 %v771
  %1893 = vmatpush.bf16.msra.mxu0 %v767
  %1894 = vmatpush.bf16.msra.mxu0 %v763
  %1895 = vmatpush.bf16.msra.mxu0 %v759
  %1896 = vmatmul.bf16.gmra.mxu0 %v1860
  %v1897 = vpop.f32.mrf.mxu0
  %v1898 = vadd.f32 %v336, %v1897
  %v1899 = vpop.f32.mrf.mxu0
  %1900 = vdwg.mxu0
  %1901 = vmatpush.bf16.msra.mxu0 %v819
  %1902 = vmatpush.bf16.msra.mxu0 %v815
  %1903 = vmatpush.bf16.msra.mxu0 %v811
  %1904 = vmatpush.bf16.msra.mxu0 %v807
  %1905 = vmatpush.bf16.msra.mxu0 %v803
  %1906 = vmatpush.bf16.msra.mxu0 %v799
  %1907 = vmatpush.bf16.msra.mxu0 %v795
  %1908 = vmatpush.bf16.msra.mxu0 %v791
  %1909 = vmatmul.bf16.gmra.mxu0 %v1861
  %v1910 = vpop.f32.mrf.mxu0
  %v1911 = vadd.f32 %v1898, %v1910
  %v1912 = vpop.f32.mrf.mxu0
  %1913 = vdwg.mxu0
  %1914 = vmatpush.bf16.msra.mxu0 %v788
  %1915 = vmatpush.bf16.msra.mxu0 %v784
  %1916 = vmatpush.bf16.msra.mxu0 %v780
  %1917 = vmatpush.bf16.msra.mxu0 %v776
  %1918 = vmatpush.bf16.msra.mxu0 %v772
  %1919 = vmatpush.bf16.msra.mxu0 %v768
  %1920 = vmatpush.bf16.msra.mxu0 %v764
  %1921 = vmatpush.bf16.msra.mxu0 %v760
  %1922 = vmatmul.bf16.gmra.mxu0 %v1860
  %v1923 = vpop.f32.mrf.mxu0
  %v1924 = vadd.f32 %v337, %v1923
  %v1925 = vpop.f32.mrf.mxu0
  %1926 = vdwg.mxu0
  %1927 = vmatpush.bf16.msra.mxu0 %v820
  %1928 = vmatpush.bf16.msra.mxu0 %v816
  %1929 = vmatpush.bf16.msra.mxu0 %v812
  %1930 = vmatpush.bf16.msra.mxu0 %v808
  %1931 = vmatpush.bf16.msra.mxu0 %v804
  %1932 = vmatpush.bf16.msra.mxu0 %v800
  %1933 = vmatpush.bf16.msra.mxu0 %v796
  %1934 = vmatpush.bf16.msra.mxu0 %v792
  %1935 = vmatmul.bf16.gmra.mxu0 %v1861
  %v1936 = vpop.f32.mrf.mxu0
  %v1937 = vadd.f32 %v1924, %v1936
  %v1938 = vpop.f32.mrf.mxu0
  %1939 = vdwg.mxu0
  %1940 = vmatpush.bf16.msra.mxu0 %v789
  %1941 = vmatpush.bf16.msra.mxu0 %v785
  %1942 = vmatpush.bf16.msra.mxu0 %v781
  %1943 = vmatpush.bf16.msra.mxu0 %v777
  %1944 = vmatpush.bf16.msra.mxu0 %v773
  %1945 = vmatpush.bf16.msra.mxu0 %v769
  %1946 = vmatpush.bf16.msra.mxu0 %v765
  %1947 = vmatpush.bf16.msra.mxu0 %v761
  %1948 = vmatmul.bf16.gmra.mxu0 %v1860
  %v1949 = vpop.f32.mrf.mxu0
  %v1950 = vadd.f32 %v338, %v1949
  %v1951 = vpop.f32.mrf.mxu0
  %1952 = vdwg.mxu0
  %1953 = vmatpush.bf16.msra.mxu0 %v821
  %1954 = vmatpush.bf16.msra.mxu0 %v817
  %1955 = vmatpush.bf16.msra.mxu0 %v813
  %1956 = vmatpush.bf16.msra.mxu0 %v809
  %1957 = vmatpush.bf16.msra.mxu0 %v805
  %1958 = vmatpush.bf16.msra.mxu0 %v801
  %1959 = vmatpush.bf16.msra.mxu0 %v797
  %1960 = vmatpush.bf16.msra.mxu0 %v793
  %1961 = vmatmul.bf16.gmra.mxu0 %v1861
  %v1962 = vpop.f32.mrf.mxu0
  %v1963 = vadd.f32 %v1950, %v1962
  %v1964 = vpop.f32.mrf.mxu0
  %1965 = vdwg.mxu0
  %v1966 = vxor.u32 %v1885, 2147483648
  %v1967 = vmul.f32 %v1966, 1.442695
  %v1968 = vpow.pop %v1967
  %v1969 = vadd.f32 %v1968, 1.0
  %v1970 = vrcp.pop %v1969
  %v1971 = vmul.f32 %v1969, %v1970
  %v1972 = vsub.f32 1.0, %v1971
  %v1973 = vmul.f32 %v1970, %v1972
  %v1974 = vadd.f32 %v1970, %v1973
  %vm1975 = vweird.f32 %v1969
  %vm1976 = vweird.f32 %v1970
  %vm1977 = vmor %vm1975, %vm1976
  %v1978 = vsel %vm1977, %v1970, %v1974
  %v1979 = vand.u32 2147483647, %v1969
  %vm1980 = vcmp.eq.f32.partialorder %v1979, 8.507059e+37
  %v1981 = vand.u32 %v1969, 2147483648
  %v1982 = vor.u32 1.1754944e-38, %v1981
  %v1983 = vsel %vm1980, %v1982, %v1978
  %v1984 = vmul.f32 1.0, %v1983
  %v1985 = vxor.u32 %v1911, 2147483648
  %v1986 = vmul.f32 %v1985, 1.442695
  %v1987 = vpow.pop %v1986
  %v1988 = vadd.f32 %v1987, 1.0
  %v1989 = vrcp.pop %v1988
  %v1990 = vmul.f32 %v1988, %v1989
  %v1991 = vsub.f32 1.0, %v1990
  %v1992 = vmul.f32 %v1989, %v1991
  %v1993 = vadd.f32 %v1989, %v1992
  %vm1994 = vweird.f32 %v1988
  %vm1995 = vweird.f32 %v1989
  %vm1996 = vmor %vm1994, %vm1995
  %v1997 = vsel %vm1996, %v1989, %v1993
  %v1998 = vand.u32 2147483647, %v1988
  %vm1999 = vcmp.eq.f32.partialorder %v1998, 8.507059e+37
  %v2000 = vand.u32 %v1988, 2147483648
  %v2001 = vor.u32 1.1754944e-38, %v2000
  %v2002 = vsel %vm1999, %v2001, %v1997
  %v2003 = vmul.f32 1.0, %v2002
  %v2004 = vmul.f32 %v1984, %v1963
  %v2005 = vadd.f32 %v1937, %v2004
  %v2006 = vtanh.pop %v2005
  %v2007 = vsub.f32 1.0, %v2003
  %v2008 = vmul.f32 %v2007, %v2006
  %v2009 = vmul.f32 %v2003, %v1766
  %v2010 = vadd.f32 %v2008, %v2009
  %s2011 = smul.u32 5, 3
  %s2012 = smul.addr %s2011, 8
  %s2013 = scalar_lea.vmem [#allocation2], %s2012
  %v2014 = vld [vmem:[%s2013] sm:$0xff]
  %v2015 = vld [vmem:[%s2013 + $0x8] sm:$0xff]
  %v2016 = vld [vmem:[%s2013 + $0x10] sm:$0xff]
  %2017 = vmatpush.bf16.msra.mxu0 %v450
  %2018 = vmatpush.bf16.msra.mxu0 %v447
  %2019 = vmatpush.bf16.msra.mxu0 %v444
  %2020 = vmatpush.bf16.msra.mxu0 %v441
  %2021 = vmatpush.bf16.msra.mxu0 %v438
  %2022 = vmatpush.bf16.msra.mxu0 %v435
  %2023 = vmatpush.bf16.msra.mxu0 %v432
  %2024 = vmatpush.bf16.msra.mxu0 %v429
  %2025 = vmatmul.bf16.gmra.mxu0 %v1860
  %v2026 = vpop.f32.mrf.mxu0
  %v2027 = vadd.f32 0.0, %v2026
  %v2028 = vpop.f32.mrf.mxu0
  %2029 = vdwg.mxu0
  %2030 = vmatpush.bf16.msra.mxu0 %v451
  %2031 = vmatpush.bf16.msra.mxu0 %v448
  %2032 = vmatpush.bf16.msra.mxu0 %v445
  %2033 = vmatpush.bf16.msra.mxu0 %v442
  %2034 = vmatpush.bf16.msra.mxu0 %v439
  %2035 = vmatpush.bf16.msra.mxu0 %v436
  %2036 = vmatpush.bf16.msra.mxu0 %v433
  %2037 = vmatpush.bf16.msra.mxu0 %v430
  %2038 = vmatmul.bf16.gmra.mxu0 %v1860
  %v2039 = vpop.f32.mrf.mxu0
  %v2040 = vadd.f32 0.0, %v2039
  %v2041 = vpop.f32.mrf.mxu0
  %2042 = vdwg.mxu0
  %2043 = vmatpush.bf16.msra.mxu0 %v452
  %2044 = vmatpush.bf16.msra.mxu0 %v449
  %2045 = vmatpush.bf16.msra.mxu0 %v446
  %2046 = vmatpush.bf16.msra.mxu0 %v443
  %2047 = vmatpush.bf16.msra.mxu0 %v440
  %2048 = vmatpush.bf16.msra.mxu0 %v437
  %2049 = vmatpush.bf16.msra.mxu0 %v434
  %2050 = vmatpush.bf16.msra.mxu0 %v431
  %2051 = vmatmul.bf16.gmra.mxu0 %v1860
  %v2052 = vpop.f32.mrf.mxu0
  %v2053 = vadd.f32 0.0, %v2052
  %v2054 = vpop.f32.mrf.mxu0
  %2055 = vdwg.mxu0
  %v2056 = vadd.f32 %v2014, %v2027
  %v2057 = vxor.u32 %v2056, 2147483648
  %v2058 = vmul.f32 %v2057, 1.442695
  %v2059 = vpow.pop %v2058
  %v2060 = vadd.f32 %v2059, 1.0
  %v2061 = vrcp.pop %v2060
  %v2062 = vmul.f32 %v2060, %v2061
  %v2063 = vsub.f32 1.0, %v2062
  %v2064 = vmul.f32 %v2061, %v2063
  %v2065 = vadd.f32 %v2061, %v2064
  %vm2066 = vweird.f32 %v2060
  %vm2067 = vweird.f32 %v2061
  %vm2068 = vmor %vm2066, %vm2067
  %v2069 = vsel %vm2068, %v2061, %v2065
  %v2070 = vand.u32 2147483647, %v2060
  %vm2071 = vcmp.eq.f32.partialorder %v2070, 8.507059e+37
  %v2072 = vand.u32 %v2060, 2147483648
  %v2073 = vor.u32 1.1754944e-38, %v2072
  %v2074 = vsel %vm2071, %v2073, %v2069
  %v2075 = vmul.f32 1.0, %v2074
  %v2076 = vadd.f32 %v2015, %v2040
  %v2077 = vxor.u32 %v2076, 2147483648
  %v2078 = vmul.f32 %v2077, 1.442695
  %v2079 = vpow.pop %v2078
  %v2080 = vadd.f32 %v2079, 1.0
  %v2081 = vrcp.pop %v2080
  %v2082 = vmul.f32 %v2080, %v2081
  %v2083 = vsub.f32 1.0, %v2082
  %v2084 = vmul.f32 %v2081, %v2083
  %v2085 = vadd.f32 %v2081, %v2084
  %vm2086 = vweird.f32 %v2080
  %vm2087 = vweird.f32 %v2081
  %vm2088 = vmor %vm2086, %vm2087
  %v2089 = vsel %vm2088, %v2081, %v2085
  %v2090 = vand.u32 2147483647, %v2080
  %vm2091 = vcmp.eq.f32.partialorder %v2090, 8.507059e+37
  %v2092 = vand.u32 %v2080, 2147483648
  %v2093 = vor.u32 1.1754944e-38, %v2092
  %v2094 = vsel %vm2091, %v2093, %v2089
  %v2095 = vmul.f32 1.0, %v2094
  %v2096 = vadd.f32 %v2053, %v331
  %v2097 = vmul.f32 %v2075, %v2096
  %v2098 = vadd.f32 %v2016, %v2097
  %v2099 = vtanh.pop %v2098
  %v2100 = vsub.f32 1.0, %v2095
  %v2101 = vmul.f32 %v2100, %v2099
  %v2102 = vmul.f32 %v2095, %v1859
  %v2103 = vadd.f32 %v2101, %v2102
  %v2104 = vpack.c.bf16 %v2103, %v2103
  %v2105 = vpack.c.bf16 %v2010, %v2010
  %2106 = vmatpush.bf16.msra.mxu0 %v786
  %2107 = vmatpush.bf16.msra.mxu0 %v782
  %2108 = vmatpush.bf16.msra.mxu0 %v778
  %2109 = vmatpush.bf16.msra.mxu0 %v774
  %2110 = vmatpush.bf16.msra.mxu0 %v770
  %2111 = vmatpush.bf16.msra.mxu0 %v766
  %2112 = vmatpush.bf16.msra.mxu0 %v762
  %2113 = vmatpush.bf16.msra.mxu0 %v758
  %2114 = vmatmul.bf16.gmra.mxu0 %v2104
  %v2115 = vpop.f32.mrf.mxu0
  %v2116 = vadd.f32 %v335, %v2115
  %v2117 = vpop.f32.mrf.mxu0
  %2118 = vdwg.mxu0
  %2119 = vmatpush.bf16.msra.mxu0 %v818
  %2120 = vmatpush.bf16.msra.mxu0 %v814
  %2121 = vmatpush.bf16.msra.mxu0 %v810
  %2122 = vmatpush.bf16.msra.mxu0 %v806
  %2123 = vmatpush.bf16.msra.mxu0 %v802
  %2124 = vmatpush.bf16.msra.mxu0 %v798
  %2125 = vmatpush.bf16.msra.mxu0 %v794
  %2126 = vmatpush.bf16.msra.mxu0 %v790
  %2127 = vmatmul.bf16.gmra.mxu0 %v2105
  %v2128 = vpop.f32.mrf.mxu0
  %v2129 = vadd.f32 %v2116, %v2128
  %v2130 = vpop.f32.mrf.mxu0
  %2131 = vdwg.mxu0
  %2132 = vmatpush.bf16.msra.mxu0 %v787
  %2133 = vmatpush.bf16.msra.mxu0 %v783
  %2134 = vmatpush.bf16.msra.mxu0 %v779
  %2135 = vmatpush.bf16.msra.mxu0 %v775
  %2136 = vmatpush.bf16.msra.mxu0 %v771
  %2137 = vmatpush.bf16.msra.mxu0 %v767
  %2138 = vmatpush.bf16.msra.mxu0 %v763
  %2139 = vmatpush.bf16.msra.mxu0 %v759
  %2140 = vmatmul.bf16.gmra.mxu0 %v2104
  %v2141 = vpop.f32.mrf.mxu0
  %v2142 = vadd.f32 %v336, %v2141
  %v2143 = vpop.f32.mrf.mxu0
  %2144 = vdwg.mxu0
  %2145 = vmatpush.bf16.msra.mxu0 %v819
  %2146 = vmatpush.bf16.msra.mxu0 %v815
  %2147 = vmatpush.bf16.msra.mxu0 %v811
  %2148 = vmatpush.bf16.msra.mxu0 %v807
  %2149 = vmatpush.bf16.msra.mxu0 %v803
  %2150 = vmatpush.bf16.msra.mxu0 %v799
  %2151 = vmatpush.bf16.msra.mxu0 %v795
  %2152 = vmatpush.bf16.msra.mxu0 %v791
  %2153 = vmatmul.bf16.gmra.mxu0 %v2105
  %v2154 = vpop.f32.mrf.mxu0
  %v2155 = vadd.f32 %v2142, %v2154
  %v2156 = vpop.f32.mrf.mxu0
  %2157 = vdwg.mxu0
  %2158 = vmatpush.bf16.msra.mxu0 %v788
  %2159 = vmatpush.bf16.msra.mxu0 %v784
  %2160 = vmatpush.bf16.msra.mxu0 %v780
  %2161 = vmatpush.bf16.msra.mxu0 %v776
  %2162 = vmatpush.bf16.msra.mxu0 %v772
  %2163 = vmatpush.bf16.msra.mxu0 %v768
  %2164 = vmatpush.bf16.msra.mxu0 %v764
  %2165 = vmatpush.bf16.msra.mxu0 %v760
  %2166 = vmatmul.bf16.gmra.mxu0 %v2104
  %v2167 = vpop.f32.mrf.mxu0
  %v2168 = vadd.f32 %v337, %v2167
  %v2169 = vpop.f32.mrf.mxu0
  %2170 = vdwg.mxu0
  %2171 = vmatpush.bf16.msra.mxu0 %v820
  %2172 = vmatpush.bf16.msra.mxu0 %v816
  %2173 = vmatpush.bf16.msra.mxu0 %v812
  %2174 = vmatpush.bf16.msra.mxu0 %v808
  %2175 = vmatpush.bf16.msra.mxu0 %v804
  %2176 = vmatpush.bf16.msra.mxu0 %v800
  %2177 = vmatpush.bf16.msra.mxu0 %v796
  %2178 = vmatpush.bf16.msra.mxu0 %v792
  %2179 = vmatmul.bf16.gmra.mxu0 %v2105
  %v2180 = vpop.f32.mrf.mxu0
  %v2181 = vadd.f32 %v2168, %v2180
  %v2182 = vpop.f32.mrf.mxu0
  %2183 = vdwg.mxu0
  %2184 = vmatpush.bf16.msra.mxu0 %v789
  %2185 = vmatpush.bf16.msra.mxu0 %v785
  %2186 = vmatpush.bf16.msra.mxu0 %v781
  %2187 = vmatpush.bf16.msra.mxu0 %v777
  %2188 = vmatpush.bf16.msra.mxu0 %v773
  %2189 = vmatpush.bf16.msra.mxu0 %v769
  %2190 = vmatpush.bf16.msra.mxu0 %v765
  %2191 = vmatpush.bf16.msra.mxu0 %v761
  %2192 = vmatmul.bf16.gmra.mxu0 %v2104
  %v2193 = vpop.f32.mrf.mxu0
  %v2194 = vadd.f32 %v338, %v2193
  %v2195 = vpop.f32.mrf.mxu0
  %2196 = vdwg.mxu0
  %2197 = vmatpush.bf16.msra.mxu0 %v821
  %2198 = vmatpush.bf16.msra.mxu0 %v817
  %2199 = vmatpush.bf16.msra.mxu0 %v813
  %2200 = vmatpush.bf16.msra.mxu0 %v809
  %2201 = vmatpush.bf16.msra.mxu0 %v805
  %2202 = vmatpush.bf16.msra.mxu0 %v801
  %2203 = vmatpush.bf16.msra.mxu0 %v797
  %2204 = vmatpush.bf16.msra.mxu0 %v793
  %2205 = vmatmul.bf16.gmra.mxu0 %v2105
  %v2206 = vpop.f32.mrf.mxu0
  %v2207 = vadd.f32 %v2194, %v2206
  %v2208 = vpop.f32.mrf.mxu0
  %2209 = vdwg.mxu0
  %v2210 = vxor.u32 %v2129, 2147483648
  %v2211 = vmul.f32 %v2210, 1.442695
  %v2212 = vpow.pop %v2211
  %v2213 = vadd.f32 %v2212, 1.0
  %v2214 = vrcp.pop %v2213
  %v2215 = vmul.f32 %v2213, %v2214
  %v2216 = vsub.f32 1.0, %v2215
  %v2217 = vmul.f32 %v2214, %v2216
  %v2218 = vadd.f32 %v2214, %v2217
  %vm2219 = vweird.f32 %v2213
  %vm2220 = vweird.f32 %v2214
  %vm2221 = vmor %vm2219, %vm2220
  %v2222 = vsel %vm2221, %v2214, %v2218
  %v2223 = vand.u32 2147483647, %v2213
  %vm2224 = vcmp.eq.f32.partialorder %v2223, 8.507059e+37
  %v2225 = vand.u32 %v2213, 2147483648
  %v2226 = vor.u32 1.1754944e-38, %v2225
  %v2227 = vsel %vm2224, %v2226, %v2222
  %v2228 = vmul.f32 1.0, %v2227
  %v2229 = vxor.u32 %v2155, 2147483648
  %v2230 = vmul.f32 %v2229, 1.442695
  %v2231 = vpow.pop %v2230
  %v2232 = vadd.f32 %v2231, 1.0
  %v2233 = vrcp.pop %v2232
  %v2234 = vmul.f32 %v2232, %v2233
  %v2235 = vsub.f32 1.0, %v2234
  %v2236 = vmul.f32 %v2233, %v2235
  %v2237 = vadd.f32 %v2233, %v2236
  %vm2238 = vweird.f32 %v2232
  %vm2239 = vweird.f32 %v2233
  %vm2240 = vmor %vm2238, %vm2239
  %v2241 = vsel %vm2240, %v2233, %v2237
  %v2242 = vand.u32 2147483647, %v2232
  %vm2243 = vcmp.eq.f32.partialorder %v2242, 8.507059e+37
  %v2244 = vand.u32 %v2232, 2147483648
  %v2245 = vor.u32 1.1754944e-38, %v2244
  %v2246 = vsel %vm2243, %v2245, %v2241
  %v2247 = vmul.f32 1.0, %v2246
  %v2248 = vmul.f32 %v2228, %v2207
  %v2249 = vadd.f32 %v2181, %v2248
  %v2250 = vtanh.pop %v2249
  %v2251 = vsub.f32 1.0, %v2247
  %v2252 = vmul.f32 %v2251, %v2250
  %v2253 = vmul.f32 %v2247, %v2010
  %v2254 = vadd.f32 %v2252, %v2253
  %s2255 = smul.u32 6, 3
  %s2256 = smul.addr %s2255, 8
  %s2257 = scalar_lea.vmem [#allocation2], %s2256
  %v2258 = vld [vmem:[%s2257] sm:$0xff]
  %v2259 = vld [vmem:[%s2257 + $0x8] sm:$0xff]
  %v2260 = vld [vmem:[%s2257 + $0x10] sm:$0xff]
  %2261 = vmatpush.bf16.msra.mxu0 %v450
  %2262 = vmatpush.bf16.msra.mxu0 %v447
  %2263 = vmatpush.bf16.msra.mxu0 %v444
  %2264 = vmatpush.bf16.msra.mxu0 %v441
  %2265 = vmatpush.bf16.msra.mxu0 %v438
  %2266 = vmatpush.bf16.msra.mxu0 %v435
  %2267 = vmatpush.bf16.msra.mxu0 %v432
  %2268 = vmatpush.bf16.msra.mxu0 %v429
  %2269 = vmatmul.bf16.gmra.mxu0 %v2104
  %v2270 = vpop.f32.mrf.mxu0
  %v2271 = vadd.f32 0.0, %v2270
  %v2272 = vpop.f32.mrf.mxu0
  %2273 = vdwg.mxu0
  %2274 = vmatpush.bf16.msra.mxu0 %v451
  %2275 = vmatpush.bf16.msra.mxu0 %v448
  %2276 = vmatpush.bf16.msra.mxu0 %v445
  %2277 = vmatpush.bf16.msra.mxu0 %v442
  %2278 = vmatpush.bf16.msra.mxu0 %v439
  %2279 = vmatpush.bf16.msra.mxu0 %v436
  %2280 = vmatpush.bf16.msra.mxu0 %v433
  %2281 = vmatpush.bf16.msra.mxu0 %v430
  %2282 = vmatmul.bf16.gmra.mxu0 %v2104
  %v2283 = vpop.f32.mrf.mxu0
  %v2284 = vadd.f32 0.0, %v2283
  %v2285 = vpop.f32.mrf.mxu0
  %2286 = vdwg.mxu0
  %2287 = vmatpush.bf16.msra.mxu0 %v452
  %2288 = vmatpush.bf16.msra.mxu0 %v449
  %2289 = vmatpush.bf16.msra.mxu0 %v446
  %2290 = vmatpush.bf16.msra.mxu0 %v443
  %2291 = vmatpush.bf16.msra.mxu0 %v440
  %2292 = vmatpush.bf16.msra.mxu0 %v437
  %2293 = vmatpush.bf16.msra.mxu0 %v434
  %2294 = vmatpush.bf16.msra.mxu0 %v431
  %2295 = vmatmul.bf16.gmra.mxu0 %v2104
  %v2296 = vpop.f32.mrf.mxu0
  %v2297 = vadd.f32 0.0, %v2296
  %v2298 = vpop.f32.mrf.mxu0
  %2299 = vdwg.mxu0
  %v2300 = vadd.f32 %v2258, %v2271
  %v2301 = vxor.u32 %v2300, 2147483648
  %v2302 = vmul.f32 %v2301, 1.442695
  %v2303 = vpow.pop %v2302
  %v2304 = vadd.f32 %v2303, 1.0
  %v2305 = vrcp.pop %v2304
  %v2306 = vmul.f32 %v2304, %v2305
  %v2307 = vsub.f32 1.0, %v2306
  %v2308 = vmul.f32 %v2305, %v2307
  %v2309 = vadd.f32 %v2305, %v2308
  %vm2310 = vweird.f32 %v2304
  %vm2311 = vweird.f32 %v2305
  %vm2312 = vmor %vm2310, %vm2311
  %v2313 = vsel %vm2312, %v2305, %v2309
  %v2314 = vand.u32 2147483647, %v2304
  %vm2315 = vcmp.eq.f32.partialorder %v2314, 8.507059e+37
  %v2316 = vand.u32 %v2304, 2147483648
  %v2317 = vor.u32 1.1754944e-38, %v2316
  %v2318 = vsel %vm2315, %v2317, %v2313
  %v2319 = vmul.f32 1.0, %v2318
  %v2320 = vadd.f32 %v2259, %v2284
  %v2321 = vxor.u32 %v2320, 2147483648
  %v2322 = vmul.f32 %v2321, 1.442695
  %v2323 = vpow.pop %v2322
  %v2324 = vadd.f32 %v2323, 1.0
  %v2325 = vrcp.pop %v2324
  %v2326 = vmul.f32 %v2324, %v2325
  %v2327 = vsub.f32 1.0, %v2326
  %v2328 = vmul.f32 %v2325, %v2327
  %v2329 = vadd.f32 %v2325, %v2328
  %vm2330 = vweird.f32 %v2324
  %vm2331 = vweird.f32 %v2325
  %vm2332 = vmor %vm2330, %vm2331
  %v2333 = vsel %vm2332, %v2325, %v2329
  %v2334 = vand.u32 2147483647, %v2324
  %vm2335 = vcmp.eq.f32.partialorder %v2334, 8.507059e+37
  %v2336 = vand.u32 %v2324, 2147483648
  %v2337 = vor.u32 1.1754944e-38, %v2336
  %v2338 = vsel %vm2335, %v2337, %v2333
  %v2339 = vmul.f32 1.0, %v2338
  %v2340 = vadd.f32 %v2297, %v331
  %v2341 = vmul.f32 %v2319, %v2340
  %v2342 = vadd.f32 %v2260, %v2341
  %v2343 = vtanh.pop %v2342
  %v2344 = vsub.f32 1.0, %v2339
  %v2345 = vmul.f32 %v2344, %v2343
  %v2346 = vmul.f32 %v2339, %v2103
  %v2347 = vadd.f32 %v2345, %v2346
  %v2348 = vpack.c.bf16 %v2347, %v2347
  %v2349 = vpack.c.bf16 %v2254, %v2254
  %2350 = vmatpush.bf16.msra.mxu0 %v786
  %2351 = vmatpush.bf16.msra.mxu0 %v782
  %2352 = vmatpush.bf16.msra.mxu0 %v778
  %2353 = vmatpush.bf16.msra.mxu0 %v774
  %2354 = vmatpush.bf16.msra.mxu0 %v770
  %2355 = vmatpush.bf16.msra.mxu0 %v766
  %2356 = vmatpush.bf16.msra.mxu0 %v762
  %2357 = vmatpush.bf16.msra.mxu0 %v758
  %2358 = vmatmul.bf16.gmra.mxu0 %v2348
  %v2359 = vpop.f32.mrf.mxu0
  %v2360 = vadd.f32 %v335, %v2359
  %v2361 = vpop.f32.mrf.mxu0
  %2362 = vdwg.mxu0
  %2363 = vmatpush.bf16.msra.mxu0 %v818
  %2364 = vmatpush.bf16.msra.mxu0 %v814
  %2365 = vmatpush.bf16.msra.mxu0 %v810
  %2366 = vmatpush.bf16.msra.mxu0 %v806
  %2367 = vmatpush.bf16.msra.mxu0 %v802
  %2368 = vmatpush.bf16.msra.mxu0 %v798
  %2369 = vmatpush.bf16.msra.mxu0 %v794
  %2370 = vmatpush.bf16.msra.mxu0 %v790
  %2371 = vmatmul.bf16.gmra.mxu0 %v2349
  %v2372 = vpop.f32.mrf.mxu0
  %v2373 = vadd.f32 %v2360, %v2372
  %v2374 = vpop.f32.mrf.mxu0
  %2375 = vdwg.mxu0
  %2376 = vmatpush.bf16.msra.mxu0 %v787
  %2377 = vmatpush.bf16.msra.mxu0 %v783
  %2378 = vmatpush.bf16.msra.mxu0 %v779
  %2379 = vmatpush.bf16.msra.mxu0 %v775
  %2380 = vmatpush.bf16.msra.mxu0 %v771
  %2381 = vmatpush.bf16.msra.mxu0 %v767
  %2382 = vmatpush.bf16.msra.mxu0 %v763
  %2383 = vmatpush.bf16.msra.mxu0 %v759
  %2384 = vmatmul.bf16.gmra.mxu0 %v2348
  %v2385 = vpop.f32.mrf.mxu0
  %v2386 = vadd.f32 %v336, %v2385
  %v2387 = vpop.f32.mrf.mxu0
  %2388 = vdwg.mxu0
  %2389 = vmatpush.bf16.msra.mxu0 %v819
  %2390 = vmatpush.bf16.msra.mxu0 %v815
  %2391 = vmatpush.bf16.msra.mxu0 %v811
  %2392 = vmatpush.bf16.msra.mxu0 %v807
  %2393 = vmatpush.bf16.msra.mxu0 %v803
  %2394 = vmatpush.bf16.msra.mxu0 %v799
  %2395 = vmatpush.bf16.msra.mxu0 %v795
  %2396 = vmatpush.bf16.msra.mxu0 %v791
  %2397 = vmatmul.bf16.gmra.mxu0 %v2349
  %v2398 = vpop.f32.mrf.mxu0
  %v2399 = vadd.f32 %v2386, %v2398
  %v2400 = vpop.f32.mrf.mxu0
  %2401 = vdwg.mxu0
  %2402 = vmatpush.bf16.msra.mxu0 %v788
  %2403 = vmatpush.bf16.msra.mxu0 %v784
  %2404 = vmatpush.bf16.msra.mxu0 %v780
  %2405 = vmatpush.bf16.msra.mxu0 %v776
  %2406 = vmatpush.bf16.msra.mxu0 %v772
  %2407 = vmatpush.bf16.msra.mxu0 %v768
  %2408 = vmatpush.bf16.msra.mxu0 %v764
  %2409 = vmatpush.bf16.msra.mxu0 %v760
  %2410 = vmatmul.bf16.gmra.mxu0 %v2348
  %v2411 = vpop.f32.mrf.mxu0
  %v2412 = vadd.f32 %v337, %v2411
  %v2413 = vpop.f32.mrf.mxu0
  %2414 = vdwg.mxu0
  %2415 = vmatpush.bf16.msra.mxu0 %v820
  %2416 = vmatpush.bf16.msra.mxu0 %v816
  %2417 = vmatpush.bf16.msra.mxu0 %v812
  %2418 = vmatpush.bf16.msra.mxu0 %v808
  %2419 = vmatpush.bf16.msra.mxu0 %v804
  %2420 = vmatpush.bf16.msra.mxu0 %v800
  %2421 = vmatpush.bf16.msra.mxu0 %v796
  %2422 = vmatpush.bf16.msra.mxu0 %v792
  %2423 = vmatmul.bf16.gmra.mxu0 %v2349
  %v2424 = vpop.f32.mrf.mxu0
  %v2425 = vadd.f32 %v2412, %v2424
  %v2426 = vpop.f32.mrf.mxu0
  %2427 = vdwg.mxu0
  %2428 = vmatpush.bf16.msra.mxu0 %v789
  %2429 = vmatpush.bf16.msra.mxu0 %v785
  %2430 = vmatpush.bf16.msra.mxu0 %v781
  %2431 = vmatpush.bf16.msra.mxu0 %v777
  %2432 = vmatpush.bf16.msra.mxu0 %v773
  %2433 = vmatpush.bf16.msra.mxu0 %v769
  %2434 = vmatpush.bf16.msra.mxu0 %v765
  %2435 = vmatpush.bf16.msra.mxu0 %v761
  %2436 = vmatmul.bf16.gmra.mxu0 %v2348
  %v2437 = vpop.f32.mrf.mxu0
  %v2438 = vadd.f32 %v338, %v2437
  %v2439 = vpop.f32.mrf.mxu0
  %2440 = vdwg.mxu0
  %2441 = vmatpush.bf16.msra.mxu0 %v821
  %2442 = vmatpush.bf16.msra.mxu0 %v817
  %2443 = vmatpush.bf16.msra.mxu0 %v813
  %2444 = vmatpush.bf16.msra.mxu0 %v809
  %2445 = vmatpush.bf16.msra.mxu0 %v805
  %2446 = vmatpush.bf16.msra.mxu0 %v801
  %2447 = vmatpush.bf16.msra.mxu0 %v797
  %2448 = vmatpush.bf16.msra.mxu0 %v793
  %2449 = vmatmul.bf16.gmra.mxu0 %v2349
  %v2450 = vpop.f32.mrf.mxu0
  %v2451 = vadd.f32 %v2438, %v2450
  %v2452 = vpop.f32.mrf.mxu0
  %2453 = vdwg.mxu0
  %v2454 = vxor.u32 %v2373, 2147483648
  %v2455 = vmul.f32 %v2454, 1.442695
  %v2456 = vpow.pop %v2455
  %v2457 = vadd.f32 %v2456, 1.0
  %v2458 = vrcp.pop %v2457
  %v2459 = vmul.f32 %v2457, %v2458
  %v2460 = vsub.f32 1.0, %v2459
  %v2461 = vmul.f32 %v2458, %v2460
  %v2462 = vadd.f32 %v2458, %v2461
  %vm2463 = vweird.f32 %v2457
  %vm2464 = vweird.f32 %v2458
  %vm2465 = vmor %vm2463, %vm2464
  %v2466 = vsel %vm2465, %v2458, %v2462
  %v2467 = vand.u32 2147483647, %v2457
  %vm2468 = vcmp.eq.f32.partialorder %v2467, 8.507059e+37
  %v2469 = vand.u32 %v2457, 2147483648
  %v2470 = vor.u32 1.1754944e-38, %v2469
  %v2471 = vsel %vm2468, %v2470, %v2466
  %v2472 = vmul.f32 1.0, %v2471
  %v2473 = vxor.u32 %v2399, 2147483648
  %v2474 = vmul.f32 %v2473, 1.442695
  %v2475 = vpow.pop %v2474
  %v2476 = vadd.f32 %v2475, 1.0
  %v2477 = vrcp.pop %v2476
  %v2478 = vmul.f32 %v2476, %v2477
  %v2479 = vsub.f32 1.0, %v2478
  %v2480 = vmul.f32 %v2477, %v2479
  %v2481 = vadd.f32 %v2477, %v2480
  %vm2482 = vweird.f32 %v2476
  %vm2483 = vweird.f32 %v2477
  %vm2484 = vmor %vm2482, %vm2483
  %v2485 = vsel %vm2484, %v2477, %v2481
  %v2486 = vand.u32 2147483647, %v2476
  %vm2487 = vcmp.eq.f32.partialorder %v2486, 8.507059e+37
  %v2488 = vand.u32 %v2476, 2147483648
  %v2489 = vor.u32 1.1754944e-38, %v2488
  %v2490 = vsel %vm2487, %v2489, %v2485
  %v2491 = vmul.f32 1.0, %v2490
  %v2492 = vmul.f32 %v2472, %v2451
  %v2493 = vadd.f32 %v2425, %v2492
  %v2494 = vtanh.pop %v2493
  %v2495 = vsub.f32 1.0, %v2491
  %v2496 = vmul.f32 %v2495, %v2494
  %v2497 = vmul.f32 %v2491, %v2254
  %v2498 = vadd.f32 %v2496, %v2497
  %s2499 = smul.u32 7, 3
  %s2500 = smul.addr %s2499, 8
  %s2501 = scalar_lea.vmem [#allocation2], %s2500
  %v2502 = vld [vmem:[%s2501] sm:$0xff]
  %v2503 = vld [vmem:[%s2501 + $0x8] sm:$0xff]
  %v2504 = vld [vmem:[%s2501 + $0x10] sm:$0xff]
  %2505 = vmatpush.bf16.msra.mxu0 %v450
  %2506 = vmatpush.bf16.msra.mxu0 %v447
  %2507 = vmatpush.bf16.msra.mxu0 %v444
  %2508 = vmatpush.bf16.msra.mxu0 %v441
  %2509 = vmatpush.bf16.msra.mxu0 %v438
  %2510 = vmatpush.bf16.msra.mxu0 %v435
  %2511 = vmatpush.bf16.msra.mxu0 %v432
  %2512 = vmatpush.bf16.msra.mxu0 %v429
  %2513 = vmatmul.bf16.gmra.mxu0 %v2348
  %v2514 = vpop.f32.mrf.mxu0
  %v2515 = vadd.f32 0.0, %v2514
  %v2516 = vpop.f32.mrf.mxu0
  %2517 = vdwg.mxu0
  %2518 = vmatpush.bf16.msra.mxu0 %v451
  %2519 = vmatpush.bf16.msra.mxu0 %v448
  %2520 = vmatpush.bf16.msra.mxu0 %v445
  %2521 = vmatpush.bf16.msra.mxu0 %v442
  %2522 = vmatpush.bf16.msra.mxu0 %v439
  %2523 = vmatpush.bf16.msra.mxu0 %v436
  %2524 = vmatpush.bf16.msra.mxu0 %v433
  %2525 = vmatpush.bf16.msra.mxu0 %v430
  %2526 = vmatmul.bf16.gmra.mxu0 %v2348
  %v2527 = vpop.f32.mrf.mxu0
  %v2528 = vadd.f32 0.0, %v2527
  %v2529 = vpop.f32.mrf.mxu0
  %2530 = vdwg.mxu0
  %2531 = vmatpush.bf16.msra.mxu0 %v452
  %2532 = vmatpush.bf16.msra.mxu0 %v449
  %2533 = vmatpush.bf16.msra.mxu0 %v446
  %2534 = vmatpush.bf16.msra.mxu0 %v443
  %2535 = vmatpush.bf16.msra.mxu0 %v440
  %2536 = vmatpush.bf16.msra.mxu0 %v437
  %2537 = vmatpush.bf16.msra.mxu0 %v434
  %2538 = vmatpush.bf16.msra.mxu0 %v431
  %2539 = vmatmul.bf16.gmra.mxu0 %v2348
  %v2540 = vpop.f32.mrf.mxu0
  %v2541 = vadd.f32 0.0, %v2540
  %v2542 = vpop.f32.mrf.mxu0
  %2543 = vdwg.mxu0
  %v2544 = vadd.f32 %v2502, %v2515
  %v2545 = vxor.u32 %v2544, 2147483648
  %v2546 = vmul.f32 %v2545, 1.442695
  %v2547 = vpow.pop %v2546
  %v2548 = vadd.f32 %v2547, 1.0
  %v2549 = vrcp.pop %v2548
  %v2550 = vmul.f32 %v2548, %v2549
  %v2551 = vsub.f32 1.0, %v2550
  %v2552 = vmul.f32 %v2549, %v2551
  %v2553 = vadd.f32 %v2549, %v2552
  %vm2554 = vweird.f32 %v2548
  %vm2555 = vweird.f32 %v2549
  %vm2556 = vmor %vm2554, %vm2555
  %v2557 = vsel %vm2556, %v2549, %v2553
  %v2558 = vand.u32 2147483647, %v2548
  %vm2559 = vcmp.eq.f32.partialorder %v2558, 8.507059e+37
  %v2560 = vand.u32 %v2548, 2147483648
  %v2561 = vor.u32 1.1754944e-38, %v2560
  %v2562 = vsel %vm2559, %v2561, %v2557
  %v2563 = vmul.f32 1.0, %v2562
  %v2564 = vadd.f32 %v2503, %v2528
  %v2565 = vxor.u32 %v2564, 2147483648
  %v2566 = vmul.f32 %v2565, 1.442695
  %v2567 = vpow.pop %v2566
  %v2568 = vadd.f32 %v2567, 1.0
  %v2569 = vrcp.pop %v2568
  %v2570 = vmul.f32 %v2568, %v2569
  %v2571 = vsub.f32 1.0, %v2570
  %v2572 = vmul.f32 %v2569, %v2571
  %v2573 = vadd.f32 %v2569, %v2572
  %vm2574 = vweird.f32 %v2568
  %vm2575 = vweird.f32 %v2569
  %vm2576 = vmor %vm2574, %vm2575
  %v2577 = vsel %vm2576, %v2569, %v2573
  %v2578 = vand.u32 2147483647, %v2568
  %vm2579 = vcmp.eq.f32.partialorder %v2578, 8.507059e+37
  %v2580 = vand.u32 %v2568, 2147483648
  %v2581 = vor.u32 1.1754944e-38, %v2580
  %v2582 = vsel %vm2579, %v2581, %v2577
  %v2583 = vmul.f32 1.0, %v2582
  %v2584 = vadd.f32 %v2541, %v331
  %v2585 = vmul.f32 %v2563, %v2584
  %v2586 = vadd.f32 %v2504, %v2585
  %v2587 = vtanh.pop %v2586
  %v2588 = vsub.f32 1.0, %v2583
  %v2589 = vmul.f32 %v2588, %v2587
  %v2590 = vmul.f32 %v2583, %v2347
  %v2591 = vadd.f32 %v2589, %v2590
  %v2592 = vpack.c.bf16 %v2591, %v2591
  %v2593 = vpack.c.bf16 %v2498, %v2498
  %2594 = vmatpush.bf16.msra.mxu0 %v786
  %2595 = vmatpush.bf16.msra.mxu0 %v782
  %2596 = vmatpush.bf16.msra.mxu0 %v778
  %2597 = vmatpush.bf16.msra.mxu0 %v774
  %2598 = vmatpush.bf16.msra.mxu0 %v770
  %2599 = vmatpush.bf16.msra.mxu0 %v766
  %2600 = vmatpush.bf16.msra.mxu0 %v762
  %2601 = vmatpush.bf16.msra.mxu0 %v758
  %2602 = vmatmul.bf16.gmra.mxu0 %v2592
  %v2603 = vpop.f32.mrf.mxu0
  %v2604 = vadd.f32 %v335, %v2603
  %v2605 = vpop.f32.mrf.mxu0
  %2606 = vdwg.mxu0
  %2607 = vmatpush.bf16.msra.mxu0 %v818
  %2608 = vmatpush.bf16.msra.mxu0 %v814
  %2609 = vmatpush.bf16.msra.mxu0 %v810
  %2610 = vmatpush.bf16.msra.mxu0 %v806
  %2611 = vmatpush.bf16.msra.mxu0 %v802
  %2612 = vmatpush.bf16.msra.mxu0 %v798
  %2613 = vmatpush.bf16.msra.mxu0 %v794
  %2614 = vmatpush.bf16.msra.mxu0 %v790
  %2615 = vmatmul.bf16.gmra.mxu0 %v2593
  %v2616 = vpop.f32.mrf.mxu0
  %v2617 = vadd.f32 %v2604, %v2616
  %v2618 = vpop.f32.mrf.mxu0
  %2619 = vdwg.mxu0
  %2620 = vmatpush.bf16.msra.mxu0 %v787
  %2621 = vmatpush.bf16.msra.mxu0 %v783
  %2622 = vmatpush.bf16.msra.mxu0 %v779
  %2623 = vmatpush.bf16.msra.mxu0 %v775
  %2624 = vmatpush.bf16.msra.mxu0 %v771
  %2625 = vmatpush.bf16.msra.mxu0 %v767
  %2626 = vmatpush.bf16.msra.mxu0 %v763
  %2627 = vmatpush.bf16.msra.mxu0 %v759
  %2628 = vmatmul.bf16.gmra.mxu0 %v2592
  %v2629 = vpop.f32.mrf.mxu0
  %v2630 = vadd.f32 %v336, %v2629
  %v2631 = vpop.f32.mrf.mxu0
  %2632 = vdwg.mxu0
  %2633 = vmatpush.bf16.msra.mxu0 %v819
  %2634 = vmatpush.bf16.msra.mxu0 %v815
  %2635 = vmatpush.bf16.msra.mxu0 %v811
  %2636 = vmatpush.bf16.msra.mxu0 %v807
  %2637 = vmatpush.bf16.msra.mxu0 %v803
  %2638 = vmatpush.bf16.msra.mxu0 %v799
  %2639 = vmatpush.bf16.msra.mxu0 %v795
  %2640 = vmatpush.bf16.msra.mxu0 %v791
  %2641 = vmatmul.bf16.gmra.mxu0 %v2593
  %v2642 = vpop.f32.mrf.mxu0
  %v2643 = vadd.f32 %v2630, %v2642
  %v2644 = vpop.f32.mrf.mxu0
  %2645 = vdwg.mxu0
  %2646 = vmatpush.bf16.msra.mxu0 %v788
  %2647 = vmatpush.bf16.msra.mxu0 %v784
  %2648 = vmatpush.bf16.msra.mxu0 %v780
  %2649 = vmatpush.bf16.msra.mxu0 %v776
  %2650 = vmatpush.bf16.msra.mxu0 %v772
  %2651 = vmatpush.bf16.msra.mxu0 %v768
  %2652 = vmatpush.bf16.msra.mxu0 %v764
  %2653 = vmatpush.bf16.msra.mxu0 %v760
  %2654 = vmatmul.bf16.gmra.mxu0 %v2592
  %v2655 = vpop.f32.mrf.mxu0
  %v2656 = vadd.f32 %v337, %v2655
  %v2657 = vpop.f32.mrf.mxu0
  %2658 = vdwg.mxu0
  %2659 = vmatpush.bf16.msra.mxu0 %v820
  %2660 = vmatpush.bf16.msra.mxu0 %v816
  %2661 = vmatpush.bf16.msra.mxu0 %v812
  %2662 = vmatpush.bf16.msra.mxu0 %v808
  %2663 = vmatpush.bf16.msra.mxu0 %v804
  %2664 = vmatpush.bf16.msra.mxu0 %v800
  %2665 = vmatpush.bf16.msra.mxu0 %v796
  %2666 = vmatpush.bf16.msra.mxu0 %v792
  %2667 = vmatmul.bf16.gmra.mxu0 %v2593
  %v2668 = vpop.f32.mrf.mxu0
  %v2669 = vadd.f32 %v2656, %v2668
  %v2670 = vpop.f32.mrf.mxu0
  %2671 = vdwg.mxu0
  %2672 = vmatpush.bf16.msra.mxu0 %v789
  %2673 = vmatpush.bf16.msra.mxu0 %v785
  %2674 = vmatpush.bf16.msra.mxu0 %v781
  %2675 = vmatpush.bf16.msra.mxu0 %v777
  %2676 = vmatpush.bf16.msra.mxu0 %v773
  %2677 = vmatpush.bf16.msra.mxu0 %v769
  %2678 = vmatpush.bf16.msra.mxu0 %v765
  %2679 = vmatpush.bf16.msra.mxu0 %v761
  %2680 = vmatmul.bf16.gmra.mxu0 %v2592
  %v2681 = vpop.f32.mrf.mxu0
  %v2682 = vadd.f32 %v338, %v2681
  %v2683 = vpop.f32.mrf.mxu0
  %2684 = vdwg.mxu0
  %2685 = vmatpush.bf16.msra.mxu0 %v821
  %2686 = vmatpush.bf16.msra.mxu0 %v817
  %2687 = vmatpush.bf16.msra.mxu0 %v813
  %2688 = vmatpush.bf16.msra.mxu0 %v809
  %2689 = vmatpush.bf16.msra.mxu0 %v805
  %2690 = vmatpush.bf16.msra.mxu0 %v801
  %2691 = vmatpush.bf16.msra.mxu0 %v797
  %2692 = vmatpush.bf16.msra.mxu0 %v793
  %2693 = vmatmul.bf16.gmra.mxu0 %v2593
  %v2694 = vpop.f32.mrf.mxu0
  %v2695 = vadd.f32 %v2682, %v2694
  %v2696 = vpop.f32.mrf.mxu0
  %2697 = vdwg.mxu0
  %v2698 = vxor.u32 %v2617, 2147483648
  %v2699 = vmul.f32 %v2698, 1.442695
  %v2700 = vpow.pop %v2699
  %v2701 = vadd.f32 %v2700, 1.0
  %v2702 = vrcp.pop %v2701
  %v2703 = vmul.f32 %v2701, %v2702
  %v2704 = vsub.f32 1.0, %v2703
  %v2705 = vmul.f32 %v2702, %v2704
  %v2706 = vadd.f32 %v2702, %v2705
  %vm2707 = vweird.f32 %v2701
  %vm2708 = vweird.f32 %v2702
  %vm2709 = vmor %vm2707, %vm2708
  %v2710 = vsel %vm2709, %v2702, %v2706
  %v2711 = vand.u32 2147483647, %v2701
  %vm2712 = vcmp.eq.f32.partialorder %v2711, 8.507059e+37
  %v2713 = vand.u32 %v2701, 2147483648
  %v2714 = vor.u32 1.1754944e-38, %v2713
  %v2715 = vsel %vm2712, %v2714, %v2710
  %v2716 = vmul.f32 1.0, %v2715
  %v2717 = vxor.u32 %v2643, 2147483648
  %v2718 = vmul.f32 %v2717, 1.442695
  %v2719 = vpow.pop %v2718
  %v2720 = vadd.f32 %v2719, 1.0
  %v2721 = vrcp.pop %v2720
  %v2722 = vmul.f32 %v2720, %v2721
  %v2723 = vsub.f32 1.0, %v2722
  %v2724 = vmul.f32 %v2721, %v2723
  %v2725 = vadd.f32 %v2721, %v2724
  %vm2726 = vweird.f32 %v2720
  %vm2727 = vweird.f32 %v2721
  %vm2728 = vmor %vm2726, %vm2727
  %v2729 = vsel %vm2728, %v2721, %v2725
  %v2730 = vand.u32 2147483647, %v2720
  %vm2731 = vcmp.eq.f32.partialorder %v2730, 8.507059e+37
  %v2732 = vand.u32 %v2720, 2147483648
  %v2733 = vor.u32 1.1754944e-38, %v2732
  %v2734 = vsel %vm2731, %v2733, %v2729
  %v2735 = vmul.f32 1.0, %v2734
  %v2736 = vmul.f32 %v2716, %v2695
  %v2737 = vadd.f32 %v2669, %v2736
  %v2738 = vtanh.pop %v2737
  %v2739 = vsub.f32 1.0, %v2735
  %v2740 = vmul.f32 %v2739, %v2738
  %v2741 = vmul.f32 %v2735, %v2498
  %v2742 = vadd.f32 %v2740, %v2741
  %v2743 = vpack.c.bf16 %v2742, %v2742
  %v2744 = vld [vmem:[%s7] sm:$0xf]
  %v2745 = vld [vmem:[%s7 + $0x4] sm:$0xf]
  %v2746 = vld [vmem:[%s7 + $0x8] sm:$0xf]
  %v2747 = vld [vmem:[%s7 + $0xc] sm:$0xf]
  %v2748 = vld [vmem:[%s7 + $0x10] sm:$0xf]
  %v2749 = vld [vmem:[%s7 + $0x14] sm:$0xf]
  %v2750 = vld [vmem:[%s7 + $0x18] sm:$0xf]
  %v2751 = vld [vmem:[%s7 + $0x1c] sm:$0xf]
  %v2752 = vld [vmem:[%s7 + $0x20] sm:$0xf]
  %v2753 = vld [vmem:[%s7 + $0x24] sm:$0xf]
  %v2754 = vld [vmem:[%s7 + $0x28] sm:$0xf]
  %v2755 = vld [vmem:[%s7 + $0x2c] sm:$0xf]
  %v2756 = vld [vmem:[%s7 + $0x30] sm:$0xf]
  %v2757 = vld [vmem:[%s7 + $0x34] sm:$0xf]
  %v2758 = vld [vmem:[%s7 + $0x38] sm:$0xf]
  %v2759 = vld [vmem:[%s7 + $0x3c] sm:$0xf]
  %v2760 = vld [vmem:[%s8] sm:$0x1]
  %v2762 = vperm.slane %v2760, 0
  %v2780 = vunpack.c.l.b16 %v2744
  %v2781 = vunpack.c.l.b16 %v2745
  %v2782 = vunpack.c.l.b16 %v2746
  %v2783 = vunpack.c.l.b16 %v2747
  %v2784 = vunpack.c.l.b16 %v2748
  %v2785 = vunpack.c.l.b16 %v2749
  %v2786 = vunpack.c.l.b16 %v2750
  %v2787 = vunpack.c.l.b16 %v2751
  %v2788 = vunpack.c.l.b16 %v2752
  %v2789 = vunpack.c.l.b16 %v2753
  %v2790 = vunpack.c.l.b16 %v2754
  %v2791 = vunpack.c.l.b16 %v2755
  %v2792 = vunpack.c.l.b16 %v2756
  %v2793 = vunpack.c.l.b16 %v2757
  %v2794 = vunpack.c.l.b16 %v2758
  %v2795 = vunpack.c.l.b16 %v2759
  %v2796 = vpack.c.b16 %v2781, %v2780
  %v2797 = vpack.c.b16 %v2783, %v2782
  %v2798 = vpack.c.b16 %v2785, %v2784
  %v2799 = vpack.c.b16 %v2787, %v2786
  %v2800 = vpack.c.b16 %v2789, %v2788
  %v2801 = vpack.c.b16 %v2791, %v2790
  %v2802 = vpack.c.b16 %v2793, %v2792
  %v2803 = vpack.c.b16 %v2795, %v2794
  %2812 = vmatpush.bf16.msra.mxu0 %v2803
  %2813 = vmatpush.bf16.msra.mxu0 %v2802
  %2814 = vmatpush.bf16.msra.mxu0 %v2801
  %2815 = vmatpush.bf16.msra.mxu0 %v2800
  %2816 = vmatpush.bf16.msra.mxu0 %v2799
  %2817 = vmatpush.bf16.msra.mxu0 %v2798
  %2818 = vmatpush.bf16.msra.mxu0 %v2797
  %2819 = vmatpush.bf16.msra.mxu0 %v2796
  %2820 = vmatmul.bf16.gmra.mxu0 %v2743
  %v2821 = vpop.f32.mrf.mxu0
  %v2822 = vadd.f32 %v2762, %v2821
  %v2823 = vpop.f32.mrf.mxu0
  %2824 = vdwg.mxu0
  %2825 = vst [vmem:[%s9] sm:$0xff] %v2822
  // Predicated region
  $region38: #{gru_model.1} parent=0 // pred_check
    _
  $region39: #{gru_model.1} parent=0 // pred_check_branch
    %2827 = sbr.rel (0) target = $region41
  $region40: #{gru_model.1} parent=0 // pred_region
    _
  $region41: #{gru_model.1} parent=0 // pred_fallthru
    _
  // Predicated region
  $region42: #{gru_model.1} parent=0 // pred_check
    _
  $region43: #{gru_model.1} parent=0 // pred_check_branch
    %2829 = sbr.rel (0) target = $region45
  $region44: #{gru_model.1} parent=0 // pred_region
    _
  $region45: #{gru_model.1} parent=0 // pred_fallthru
    _

</llo_original>
